<compile_context>
chip_gen: v6e
topology: v6e:2x2x1
jax: 0.10.0
libtpu: 0.0.40
codegen_flags: <defaults>
</compile_context>

<pallas_src>
import jax
import jax.numpy as jnp
from jax.experimental import pallas as pl
from jax.experimental.pallas import tpu as pltpu


SLICE_FACTOR = 16
CNN_KERNELS = [(8, 8), (4, 4), (2, 2)]
CNN_STRIDES = [(4, 4), (2, 2), (1, 1)]

# MXU operand dtype. bf16 is the native-rate MXU path on v5e/v6e/v7x; all
# accumulation / biases / ReLU / preprocess stay float32. Set to jnp.float32
# for bit-parity with the PyTorch reference numerics.
MXU_DTYPE = jnp.bfloat16


def _ceil8(n):
    return ((n + 7) // 8) * 8


def conv_output_dims(h, w):
    d = (h, w)
    for k, s in zip(CNN_KERNELS, CNN_STRIDES):
        d = ((d[0] - k[0]) // s[0] + 1, (d[1] - k[1]) // s[1] + 1)
    return d


# ----------------------------------------------------------------------------
# Fused forward: preprocess + conv1 + conv2 + conv3 + FC, one grid step / batch
# ----------------------------------------------------------------------------
def audio_cnn_forward(params, mixed_bin_audio_mag, pred_binSepMasks):
    obs = mixed_bin_audio_mag.astype(jnp.float32)
    msk = pred_binSepMasks.astype(jnp.float32)
    B, H, W, Cin = obs.shape
    assert Cin == 2
    ah, aw = H // SLICE_FACTOR, W                    # conv1 spatial input dims
    assert H % SLICE_FACTOR == 0 and ah % 4 == 0 and aw % 4 == 0

    hb1, wb1 = ah // 4, aw // 4                      # conv1 s2d block grid (stride 4)
    oh1, ow1 = hb1 - 1, wb1 - 1                      # valid conv1 output dims
    oh2, ow2 = (oh1 - 4) // 2 + 1, (ow1 - 4) // 2 + 1
    oh3, ow3 = oh2 - 1, ow2 - 1
    assert oh3 >= 1 and ow3 >= 1
    # Row-shift-on-flat-index safety (review note): every conv1/conv2 position
    # that is consumed downstream must be a non-wrapped, real-data position.
    # Both inequalities hold for any valid conv geometry; assert + document.
    assert 2 * oh2 + 1 <= oh1 - 1 and 2 * ow2 + 1 <= ow1 - 1

    C1, C2, C3 = 32, 64, 32                          # conv channel widths
    CIN1 = 2 * SLICE_FACTOR                          # conv1 input channels (32)
    K1 = 4 * 4 * CIN1                                # 512 s2d lanes per conv1 block
    OSZ = params['bl'].shape[0]
    FLAT = oh3 * ow3 * C3

    M1b = hb1 * wb1                                  # conv1 grid rows / batch elem
    M1bp = _ceil8(M1b)
    M2b = oh2 * ow2                                  # conv2 stride-2 rows / elem
    M2bp = _ceil8(M2b)
    A1R = M1bp + _ceil8(wb1 + 2)                     # + pad rows for conv1 shifts
    O1R = M1bp + 8                                   # + pad rows for j-pack shifts
    O2R = M2bp + _ceil8(ow2 + 2)                     # + pad rows for conv3 shifts

    # ---- host-side layout plumbing (one-shot, fused by XLA under jit) -------
    def to_s2d(x):                                   # [B,H,W,2] -> [B*M1bp, K1]
        x = x.reshape(B, SLICE_FACTOR, hb1, 4, wb1, 4, Cin)  # b s By dy Bx dx c
        x = x.transpose(0, 2, 4, 3, 5, 6, 1)                 # b By Bx dy dx c s
        x = x.reshape(B, M1b, K1)                            # lane = (dy,dx,c,s)
        if M1bp != M1b:
            x = jnp.pad(x, ((0, 0), (0, M1bp - M1b), (0, 0)))
        return x.reshape(B * M1bp, K1)

    obs2, msk2 = to_s2d(obs), to_s2d(msk)

    # conv1 weight -> per (bi,bj) block-offset matrices [K1, C1]
    w1p = params['w1'].reshape(C1, CIN1, 2, 4, 2, 4) \
                      .transpose(2, 4, 3, 5, 1, 0).reshape(4 * K1, C1)
    # conv2 / conv3 weights, K ordered (ki, kj, c_in)
    w2p = params['w2'].transpose(2, 3, 1, 0).reshape(16 * C1, C2)
    w3p = params['w3'].transpose(2, 3, 1, 0).reshape(4 * C2, C3)
    # linear weight: torch flatten is channel-major (c,y,x); reorder K to (y,x,c)
    wlp = params['wl'].reshape(OSZ, C3, oh3, ow3) \
                      .transpose(2, 3, 1, 0).reshape(FLAT, OSZ)
    # pre-cast every GEMM weight to the MXU operand dtype host-side (perf review)
    w1p, w2p, w3p, wlp = (w.astype(MXU_DTYPE) for w in (w1p, w2p, w3p, wlp))
    b1r = params['b1'].reshape(1, C1).astype(jnp.float32)
    b2r = params['b2'].reshape(1, C2).astype(jnp.float32)
    b3r = params['b3'].reshape(1, C3).astype(jnp.float32)
    blr = params['bl'].reshape(1, OSZ).astype(jnp.float32)

    PRE_CHUNK = 16

    # ---- the fused per-batch-element kernel ---------------------------------
    def kernel(obs_ref, msk_ref, w1_ref, b1_ref, w2_ref, b2_ref, w3_ref, b3_ref,
               wl_ref, bl_ref, out_ref,
               a1_ref, o1_ref, o1j_ref, a2_ref, o2_ref, a3_ref, fc_ref):
        f32 = jnp.float32

        def mm(a, w):                                # bf16 MXU, f32 accumulate
            return jnp.dot(a.astype(MXU_DTYPE), w, preferred_element_type=f32)

        # 0. zero ONLY the shift-padding rows (review).  Consumed outputs never
        #    read them (see host-side asserts); this just keeps stale VMEM junk
        #    out of the discarded rows.
        a1_ref[pl.ds(M1bp, A1R - M1bp), :] = jnp.zeros((A1R - M1bp, K1), f32)
        o1_ref[pl.ds(M1bp, O1R - M1bp), :] = jnp.zeros((O1R - M1bp, C1), f32)
        o2_ref[pl.ds(M2bp, O2R - M2bp), :] = jnp.zeros((O2R - M2bp, C2), f32)
        if M2bp > M2b:
            a2_ref[pl.ds(M2b, M2bp - M2b), :] = jnp.zeros((M2bp - M2b, 16 * C1), f32)

        # 1. preprocess y = log1p(max((exp(obs) - 1) * mask, 0)) on the lane-
        #    dense [M1bp, 512] slab, in row chunks to bound vreg live ranges.
        for r0 in range(0, M1bp, PRE_CHUNK):
            rs = min(PRE_CHUNK, M1bp - r0)
            ob = obs_ref[pl.ds(r0, rs), :]
            mb = msk_ref[pl.ds(r0, rs), :]
            a1_ref[pl.ds(r0, rs), :] = jnp.log1p(
                jnp.maximum((jnp.exp(ob) - 1.0) * mb, 0.0))

        # 2. conv1 (8x8 / s4) == 2x2 block conv on the s2d slab:
        #    four row-shifted [M1bp,512] x [512,32] MXU GEMMs, f32 accumulate.
        acc = mm(a1_ref[pl.ds(0, M1bp), :], w1_ref[pl.ds(0, K1), :])
        for blk, shift in ((1, 1), (2, wb1), (3, wb1 + 1)):
            acc = acc + mm(a1_ref[pl.ds(shift, M1bp), :],
                           w1_ref[pl.ds(blk * K1, K1), :])
        o1_ref[pl.ds(0, M1bp), :] = jnp.maximum(acc + b1_ref[...], 0.0)

        # 3. j-pack conv1 output: o1j[r, j*32:(j+1)*32] = o1[r + j]
        for j in range(4):
            o1j_ref[:, pl.ds(j * C1, C1)] = o1_ref[pl.ds(j, M1bp), :]

        # 4. stride-2 row gather + i-pack -> conv2 LHS [M2b, 4*4*32 = 512]
        #    (strided pl.ds copies of ow2 rows at a time; no dense conv2 work)
        for i in range(4):
            for p in range(oh2):
                a2_ref[pl.ds(p * ow2, ow2), pl.ds(i * 4 * C1, 4 * C1)] = \
                    o1j_ref[pl.ds((2 * p + i) * wb1, ow2, stride=2), :]

        # 5. conv2 (4x4 / s2): ONE [M2bp,512] x [512,64] GEMM on gathered rows.
        o2_ref[pl.ds(0, M2bp), :] = jnp.maximum(
            mm(a2_ref[...], w2_ref[...]) + b2_ref[...], 0.0)

        # 6. conv3 (2x2 / s1): K-pack the 2x2 window, ONE [M2bp,256]x[256,32] GEMM.
        for k, shift in enumerate((0, 1, ow2, ow2 + 1)):
            a3_ref[:, pl.ds(k * C2, C2)] = o2_ref[pl.ds(shift, M2bp), :]
        o3 = jnp.maximum(mm(a3_ref[...], w3_ref[...]) + b3_ref[...], 0.0)

        # 7. flatten the valid (oh3,ow3) positions into one lane-dense row and
        #    finish with a single [1,FLAT] x [FLAT,OSZ] GEMM + ReLU.
        for u in range(oh3):
            for v in range(ow3):
                fc_ref[:, pl.ds((u * ow3 + v) * C3, C3)] = \
                    o3[u * ow2 + v: u * ow2 + v + 1, :]
        res = jnp.maximum(mm(fc_ref[...], wl_ref[...]) + bl_ref[...], 0.0)
        out_ref[...] = res.reshape(1, 1, OSZ)

    ins = (obs2, msk2, w1p, b1r, w2p, b2r, w3p, b3r, wlp, blr)

    def whole(shape):
        return pl.BlockSpec(shape, lambda b: (0, 0))

    out = pl.pallas_call(
        kernel,
        out_shape=jax.ShapeDtypeStruct((B, 1, OSZ), jnp.float32),
        grid=(B,),
        in_specs=[
            pl.BlockSpec((M1bp, K1), lambda b: (b, 0)),   # obs2: 1 batch / step
            pl.BlockSpec((M1bp, K1), lambda b: (b, 0)),   # msk2
            whole(w1p.shape), whole(b1r.shape),
            whole(w2p.shape), whole(b2r.shape),
            whole(w3p.shape), whole(b3r.shape),
            whole(wlp.shape), whole(blr.shape),
        ],
        out_specs=pl.BlockSpec((1, 1, OSZ), lambda b: (b, 0, 0)),
        scratch_shapes=[
            pltpu.VMEM((A1R, K1), jnp.float32),        # conv1 LHS (s2d, preproc)
            pltpu.VMEM((O1R, C1), jnp.float32),        # conv1 output grid
            pltpu.VMEM((M1bp, 4 * C1), jnp.float32),   # j-packed conv1 output
            pltpu.VMEM((M2bp, 16 * C1), jnp.float32),  # conv2 LHS (stride-2 rows)
            pltpu.VMEM((O2R, C2), jnp.float32),        # conv2 output grid
            pltpu.VMEM((M2bp, 4 * C2), jnp.float32),   # conv3 K-packed LHS
            pltpu.VMEM((1, FLAT), jnp.float32),        # flattened conv3 features
        ],
        compiler_params=pltpu.CompilerParams(
            dimension_semantics=("parallel",),
            # per-step footprint is ~1.5 MiB; keep the scoped limit modest so
            # the same tiling fits v7x (64 MiB physical) as well as v5e/v6e.
            vmem_limit_bytes=32 * 1024 * 1024),
    )(*ins)
    return out.reshape(B, OSZ)


# ----------------------------------------------------------------------------
# Pure JAX/XLA reference (mirrors the PyTorch module; optional MXU-operand
# quantization so the kernel can be validated with a tight tolerance)
# ----------------------------------------------------------------------------
def audio_cnn_reference(params, obs, masks, mxu_dtype=None):
    x = jnp.log1p(jnp.maximum((jnp.exp(obs) - 1.0) * masks, 0.0))
    x = x.transpose(0, 3, 1, 2)
    B, C, H, W = x.shape
    x = x.reshape(B, C * SLICE_FACTOR, H // SLICE_FACTOR, W)

    def q(a):
        return a if mxu_dtype is None else a.astype(mxu_dtype)

    def conv(x, w, b, s):
        y = jax.lax.conv_general_dilated(
            q(x), q(w), window_strides=s, padding='VALID',
            dimension_numbers=('NCHW', 'OIHW', 'NCHW'),
            preferred_element_type=jnp.float32,
            precision=jax.lax.Precision.HIGHEST)
        return jnp.maximum(y + b[None, :, None, None], 0.0)

    x = conv(x, params['w1'], params['b1'], CNN_STRIDES[0])
    x = conv(x, params['w2'], params['b2'], CNN_STRIDES[1])
    x = conv(x, params['w3'], params['b3'], CNN_STRIDES[2])
    x = x.reshape(B, -1)
    y = jnp.dot(q(x), q(params['wl'].T), preferred_element_type=jnp.float32,
                precision=jax.lax.Precision.HIGHEST)
    return jnp.maximum(y + params['bl'], 0.0)


# ----------------------------------------------------------------------------
# Parameters (torch layouts, synthetic kaiming init like layer_init())
# ----------------------------------------------------------------------------
def init_params(key, n_input_audio, output_size, flat_dim):
    ks = jax.random.split(key, 4)

    def kaiming(k, shape, fan_in):
        return jax.random.normal(k, shape, jnp.float32) * jnp.sqrt(2.0 / float(fan_in))

    return {
        'w1': kaiming(ks[0], (32, n_input_audio, 8, 8), n_input_audio * 64),
        'b1': jnp.zeros((32,), jnp.float32),
        'w2': kaiming(ks[1], (64, 32, 4, 4), 32 * 16),
        'b2': jnp.zeros((64,), jnp.float32),
        'w3': kaiming(ks[2], (32, 64, 2, 2), 64 * 4),
        'b3': jnp.zeros((32,), jnp.float32),
        'wl': kaiming(ks[3], (output_size, flat_dim), flat_dim),  # torch [out, in]
        'bl': jnp.zeros((output_size,), jnp.float32),
    }


# ----------------------------------------------------------------------------
if __name__ == "__main__":
    # H must be divisible by 16; H/16 and W must be multiples of 4 and survive
    # the conv stack (>= 28).  Per-sample conv input is [32ch, 32, 32].
    B, H, W, C = 2, 512, 32, 2
    output_size = 32

    key = jax.random.PRNGKey(0)
    k_obs, k_msk, k_par = jax.random.split(key, 3)
    obs = jax.random.normal(k_obs, (B, H, W, C), jnp.float32) * 0.5
    masks = jax.random.uniform(k_msk, (B, H, W, C), jnp.float32)

    oh, ow = conv_output_dims(H // SLICE_FACTOR, W)
    flat_dim = 32 * oh * ow
    params = init_params(k_par, 2 * SLICE_FACTOR, output_size, flat_dim)

    fwd = jax.jit(audio_cnn_forward)
    out = jax.block_until_ready(fwd(params, obs, masks))
    assert out.shape == (B, output_size)
    assert bool(jnp.all(jnp.isfinite(out)))

    # Structural check: reference applies the same MXU-operand quantization
    # (bf16 GEMM operands, f32 accumulate), so the tolerance stays tight.
    ref_q = jax.jit(lambda p, o, m: audio_cnn_reference(p, o, m, MXU_DTYPE))(
        params, obs, masks)
    err_q = float(jnp.max(jnp.abs(out - ref_q)))
    assert err_q < 5e-3, f"mismatch vs quantization-matched reference: {err_q}"

    # Sanity check vs the exact f32 torch-parity reference (loose bound only
    # covers the intentional bf16 MXU-operand quantization).
    ref_f = jax.jit(audio_cnn_reference)(params, obs, masks)
    err_f = float(jnp.max(jnp.abs(out - ref_f)))
    assert err_f < 1e-1, f"mismatch vs f32 reference: {err_f}"

    print("KERNEL_OK")
</pallas_src>

<mosaic_0001>
module attributes {stable_mosaic.version = 11 : i64} {
  func.func @kernel(%arg0: i32, %arg1: memref<64x512xf32, #tpu.memory_space<vmem>>, %arg2: memref<64x512xf32, #tpu.memory_space<vmem>>, %arg3: memref<2048x32xbf16, #tpu.memory_space<vmem>>, %arg4: memref<1x32xf32, #tpu.memory_space<vmem>>, %arg5: memref<512x64xbf16, #tpu.memory_space<vmem>>, %arg6: memref<1x64xf32, #tpu.memory_space<vmem>>, %arg7: memref<256x32xbf16, #tpu.memory_space<vmem>>, %arg8: memref<1x32xf32, #tpu.memory_space<vmem>>, %arg9: memref<32x32xbf16, #tpu.memory_space<vmem>>, %arg10: memref<1x32xf32, #tpu.memory_space<vmem>>, %arg11: memref<1x1x32xf32, #tpu.memory_space<vmem>>, %arg12: memref<80x512xf32, #tpu.memory_space<vmem>>, %arg13: memref<72x32xf32, #tpu.memory_space<vmem>>, %arg14: memref<64x128xf32, #tpu.memory_space<vmem>>, %arg15: memref<8x512xf32, #tpu.memory_space<vmem>>, %arg16: memref<16x64xf32, #tpu.memory_space<vmem>>, %arg17: memref<8x256xf32, #tpu.memory_space<vmem>>, %arg18: memref<1x32xf32, #tpu.memory_space<vmem>>) attributes {dimension_semantics = [#tpu.dimension_semantics<parallel>], iteration_bounds = array<i64: 2>, scalar_prefetch = 0 : i64, scratch_operands = 7 : i64, tpu.core_type = #tpu.core_type<tc>, window_params = [{transform_indices = @transform_0, window_bounds = array<i64: 64, 512>}, {transform_indices = @transform_1, window_bounds = array<i64: 64, 512>}, {pipeline_mode = #tpu.pipeline_mode<synchronous>, transform_indices = @transform_2, window_bounds = array<i64: 2048, 32>}, {pipeline_mode = #tpu.pipeline_mode<synchronous>, transform_indices = @transform_3, window_bounds = array<i64: 1, 32>}, {pipeline_mode = #tpu.pipeline_mode<synchronous>, transform_indices = @transform_4, window_bounds = array<i64: 512, 64>}, {pipeline_mode = #tpu.pipeline_mode<synchronous>, transform_indices = @transform_5, window_bounds = array<i64: 1, 64>}, {pipeline_mode = #tpu.pipeline_mode<synchronous>, transform_indices = @transform_6, window_bounds = array<i64: 256, 32>}, {pipeline_mode = #tpu.pipeline_mode<synchronous>, transform_indices = @transform_7, window_bounds = array<i64: 1, 32>}, {pipeline_mode = #tpu.pipeline_mode<synchronous>, transform_indices = @transform_8, window_bounds = array<i64: 32, 32>}, {pipeline_mode = #tpu.pipeline_mode<synchronous>, transform_indices = @transform_9, window_bounds = array<i64: 1, 32>}, {transform_indices = @transform_10, window_bounds = array<i64: 1, 1, 32>}]} {
    %cst = arith.constant 0.000000e+00 : f32
    %0 = vector.broadcast %cst : f32 to vector<16x512xf32>
    %c64 = arith.constant 64 : index
    %c0 = arith.constant 0 : index
    %1 = vector.load %arg12[%c64, %c0] : memref<80x512xf32, #tpu.memory_space<vmem>>, vector<16x512xf32>
    tpu.vector_store %arg12[%c64, %c0], %0 {strides = array<i32>} : memref<80x512xf32, #tpu.memory_space<vmem>>, vector<16x512xf32>,
    %cst_0 = arith.constant 0.000000e+00 : f32
    %2 = vector.broadcast %cst_0 : f32 to vector<8x32xf32>
    %c64_1 = arith.constant 64 : index
    %c0_2 = arith.constant 0 : index
    %3 = vector.load %arg13[%c64_1, %c0_2] : memref<72x32xf32, #tpu.memory_space<vmem>>, vector<8x32xf32>
    tpu.vector_store %arg13[%c64_1, %c0_2], %2 {strides = array<i32>} : memref<72x32xf32, #tpu.memory_space<vmem>>, vector<8x32xf32>,
    %cst_3 = arith.constant 0.000000e+00 : f32
    %4 = vector.broadcast %cst_3 : f32 to vector<8x64xf32>
    %c8 = arith.constant 8 : index
    %c0_4 = arith.constant 0 : index
    %5 = vector.load %arg16[%c8, %c0_4] : memref<16x64xf32, #tpu.memory_space<vmem>>, vector<8x64xf32>
    tpu.vector_store %arg16[%c8, %c0_4], %4 {strides = array<i32>} : memref<16x64xf32, #tpu.memory_space<vmem>>, vector<8x64xf32>,
    %cst_5 = arith.constant 0.000000e+00 : f32
    %6 = vector.broadcast %cst_5 : f32 to vector<4x512xf32>
    %c4 = arith.constant 4 : index
    %c0_6 = arith.constant 0 : index
    %7 = vector.load %arg15[%c4, %c0_6] : memref<8x512xf32, #tpu.memory_space<vmem>>, vector<4x512xf32>
    tpu.vector_store %arg15[%c4, %c0_6], %6 {strides = array<i32>} : memref<8x512xf32, #tpu.memory_space<vmem>>, vector<4x512xf32>,
    %c0_7 = arith.constant 0 : index
    %c0_8 = arith.constant 0 : index
    %8 = vector.load %arg1[%c0_7, %c0_8] : memref<64x512xf32, #tpu.memory_space<vmem>>, vector<16x512xf32>
    %c0_9 = arith.constant 0 : index
    %c0_10 = arith.constant 0 : index
    %9 = vector.load %arg2[%c0_9, %c0_10] : memref<64x512xf32, #tpu.memory_space<vmem>>, vector<16x512xf32>
    %10 = math.exp %8 : vector<16x512xf32>
    %cst_11 = arith.constant 1.000000e+00 : f32
    %11 = vector.broadcast %cst_11 : f32 to vector<16x512xf32>
    %12 = arith.subf %10, %11 : vector<16x512xf32>
    %13 = arith.mulf %12, %9 : vector<16x512xf32>
    %cst_12 = arith.constant 0.000000e+00 : f32
    %14 = vector.broadcast %cst_12 : f32 to vector<16x512xf32>
    %15 = arith.maximumf %13, %14 : vector<16x512xf32>
    %16 = math.log1p %15 : vector<16x512xf32>
    %c0_13 = arith.constant 0 : index
    %c0_14 = arith.constant 0 : index
    %17 = vector.load %arg12[%c0_13, %c0_14] : memref<80x512xf32, #tpu.memory_space<vmem>>, vector<16x512xf32>
    tpu.vector_store %arg12[%c0_13, %c0_14], %16 {strides = array<i32>} : memref<80x512xf32, #tpu.memory_space<vmem>>, vector<16x512xf32>,
    %c16 = arith.constant 16 : index
    %c0_15 = arith.constant 0 : index
    %18 = vector.load %arg1[%c16, %c0_15] : memref<64x512xf32, #tpu.memory_space<vmem>>, vector<16x512xf32>
    %c16_16 = arith.constant 16 : index
    %c0_17 = arith.constant 0 : index
    %19 = vector.load %arg2[%c16_16, %c0_17] : memref<64x512xf32, #tpu.memory_space<vmem>>, vector<16x512xf32>
    %20 = math.exp %18 : vector<16x512xf32>
    %cst_18 = arith.constant 1.000000e+00 : f32
    %21 = vector.broadcast %cst_18 : f32 to vector<16x512xf32>
    %22 = arith.subf %20, %21 : vector<16x512xf32>
    %23 = arith.mulf %22, %19 : vector<16x512xf32>
    %cst_19 = arith.constant 0.000000e+00 : f32
    %24 = vector.broadcast %cst_19 : f32 to vector<16x512xf32>
    %25 = arith.maximumf %23, %24 : vector<16x512xf32>
    %26 = math.log1p %25 : vector<16x512xf32>
    %c16_20 = arith.constant 16 : index
    %c0_21 = arith.constant 0 : index
    %27 = vector.load %arg12[%c16_20, %c0_21] : memref<80x512xf32, #tpu.memory_space<vmem>>, vector<16x512xf32>
    tpu.vector_store %arg12[%c16_20, %c0_21], %26 {strides = array<i32>} : memref<80x512xf32, #tpu.memory_space<vmem>>, vector<16x512xf32>,
    %c32 = arith.constant 32 : index
    %c0_22 = arith.constant 0 : index
    %28 = vector.load %arg1[%c32, %c0_22] : memref<64x512xf32, #tpu.memory_space<vmem>>, vector<16x512xf32>
    %c32_23 = arith.constant 32 : index
    %c0_24 = arith.constant 0 : index
    %29 = vector.load %arg2[%c32_23, %c0_24] : memref<64x512xf32, #tpu.memory_space<vmem>>, vector<16x512xf32>
    %30 = math.exp %28 : vector<16x512xf32>
    %cst_25 = arith.constant 1.000000e+00 : f32
    %31 = vector.broadcast %cst_25 : f32 to vector<16x512xf32>
    %32 = arith.subf %30, %31 : vector<16x512xf32>
    %33 = arith.mulf %32, %29 : vector<16x512xf32>
    %cst_26 = arith.constant 0.000000e+00 : f32
    %34 = vector.broadcast %cst_26 : f32 to vector<16x512xf32>
    %35 = arith.maximumf %33, %34 : vector<16x512xf32>
    %36 = math.log1p %35 : vector<16x512xf32>
    %c32_27 = arith.constant 32 : index
    %c0_28 = arith.constant 0 : index
    %37 = vector.load %arg12[%c32_27, %c0_28] : memref<80x512xf32, #tpu.memory_space<vmem>>, vector<16x512xf32>
    tpu.vector_store %arg12[%c32_27, %c0_28], %36 {strides = array<i32>} : memref<80x512xf32, #tpu.memory_space<vmem>>, vector<16x512xf32>,
    %c48 = arith.constant 48 : index
    %c0_29 = arith.constant 0 : index
    %38 = vector.load %arg1[%c48, %c0_29] : memref<64x512xf32, #tpu.memory_space<vmem>>, vector<16x512xf32>
    %c48_30 = arith.constant 48 : index
    %c0_31 = arith.constant 0 : index
    %39 = vector.load %arg2[%c48_30, %c0_31] : memref<64x512xf32, #tpu.memory_space<vmem>>, vector<16x512xf32>
    %40 = math.exp %38 : vector<16x512xf32>
    %cst_32 = arith.constant 1.000000e+00 : f32
    %41 = vector.broadcast %cst_32 : f32 to vector<16x512xf32>
    %42 = arith.subf %40, %41 : vector<16x512xf32>
    %43 = arith.mulf %42, %39 : vector<16x512xf32>
    %cst_33 = arith.constant 0.000000e+00 : f32
    %44 = vector.broadcast %cst_33 : f32 to vector<16x512xf32>
    %45 = arith.maximumf %43, %44 : vector<16x512xf32>
    %46 = math.log1p %45 : vector<16x512xf32>
    %c48_34 = arith.constant 48 : index
    %c0_35 = arith.constant 0 : index
    %47 = vector.load %arg12[%c48_34, %c0_35] : memref<80x512xf32, #tpu.memory_space<vmem>>, vector<16x512xf32>
    tpu.vector_store %arg12[%c48_34, %c0_35], %46 {strides = array<i32>} : memref<80x512xf32, #tpu.memory_space<vmem>>, vector<16x512xf32>,
    %c0_36 = arith.constant 0 : index
    %c0_37 = arith.constant 0 : index
    %48 = vector.load %arg12[%c0_36, %c0_37] : memref<80x512xf32, #tpu.memory_space<vmem>>, vector<64x512xf32>
    %c0_38 = arith.constant 0 : index
    %c0_39 = arith.constant 0 : index
    %49 = vector.load %arg3[%c0_38, %c0_39] : memref<2048x32xbf16, #tpu.memory_space<vmem>>, vector<512x32xbf16>
    %50 = arith.truncf %48 : vector<64x512xf32> to vector<64x512xbf16>
    %cst_40 = arith.constant dense<0.000000e+00> : vector<64x32xf32>
    %51 = tpu.matmul %50, %49, %cst_40 {dimension_numbers = #tpu.dot_dimension_numbers<[1], [0], [0], [1], [0, 0, 1, 1], [], []>} : vector<64x512xbf16>, vector<512x32xbf16>, vector<64x32xf32> -> vector<64x32xf32>
    %c1 = arith.constant 1 : index
    %c0_41 = arith.constant 0 : index
    %52 = vector.load %arg12[%c1, %c0_41] : memref<80x512xf32, #tpu.memory_space<vmem>>, vector<64x512xf32>
    %c512 = arith.constant 512 : index
    %c0_42 = arith.constant 0 : index
    %53 = vector.load %arg3[%c512, %c0_42] : memref<2048x32xbf16, #tpu.memory_space<vmem>>, vector<512x32xbf16>
    %54 = arith.truncf %52 : vector<64x512xf32> to vector<64x512xbf16>
    %cst_43 = arith.constant dense<0.000000e+00> : vector<64x32xf32>
    %55 = tpu.matmul %54, %53, %cst_43 {dimension_numbers = #tpu.dot_dimension_numbers<[1], [0], [0], [1], [0, 0, 1, 1], [], []>} : vector<64x512xbf16>, vector<512x32xbf16>, vector<64x32xf32> -> vector<64x32xf32>
    %56 = arith.addf %51, %55 : vector<64x32xf32>
    %c8_44 = arith.constant 8 : index
    %c0_45 = arith.constant 0 : index
    %57 = vector.load %arg12[%c8_44, %c0_45] : memref<80x512xf32, #tpu.memory_space<vmem>>, vector<64x512xf32>
    %c1024 = arith.constant 1024 : index
    %c0_46 = arith.constant 0 : index
    %58 = vector.load %arg3[%c1024, %c0_46] : memref<2048x32xbf16, #tpu.memory_space<vmem>>, vector<512x32xbf16>
    %59 = arith.truncf %57 : vector<64x512xf32> to vector<64x512xbf16>
    %cst_47 = arith.constant dense<0.000000e+00> : vector<64x32xf32>
    %60 = tpu.matmul %59, %58, %cst_47 {dimension_numbers = #tpu.dot_dimension_numbers<[1], [0], [0], [1], [0, 0, 1, 1], [], []>} : vector<64x512xbf16>, vector<512x32xbf16>, vector<64x32xf32> -> vector<64x32xf32>
    %61 = arith.addf %56, %60 : vector<64x32xf32>
    %c9 = arith.constant 9 : index
    %c0_48 = arith.constant 0 : index
    %62 = vector.load %arg12[%c9, %c0_48] : memref<80x512xf32, #tpu.memory_space<vmem>>, vector<64x512xf32>
    %c1536 = arith.constant 1536 : index
    %c0_49 = arith.constant 0 : index
    %63 = vector.load %arg3[%c1536, %c0_49] : memref<2048x32xbf16, #tpu.memory_space<vmem>>, vector<512x32xbf16>
    %64 = arith.truncf %62 : vector<64x512xf32> to vector<64x512xbf16>
    %cst_50 = arith.constant dense<0.000000e+00> : vector<64x32xf32>
    %65 = tpu.matmul %64, %63, %cst_50 {dimension_numbers = #tpu.dot_dimension_numbers<[1], [0], [0], [1], [0, 0, 1, 1], [], []>} : vector<64x512xbf16>, vector<512x32xbf16>, vector<64x32xf32> -> vector<64x32xf32>
    %66 = arith.addf %61, %65 : vector<64x32xf32>
    %c0_51 = arith.constant 0 : index
    %c0_52 = arith.constant 0 : index
    %67 = vector.load %arg4[%c0_51, %c0_52] : memref<1x32xf32, #tpu.memory_space<vmem>>, vector<1x32xf32>
    %68 = vector.broadcast %67 : vector<1x32xf32> to vector<64x32xf32>
    %69 = arith.addf %66, %68 : vector<64x32xf32>
    %cst_53 = arith.constant 0.000000e+00 : f32
    %70 = vector.broadcast %cst_53 : f32 to vector<64x32xf32>
    %71 = arith.maximumf %69, %70 : vector<64x32xf32>
    %c0_54 = arith.constant 0 : index
    %c0_55 = arith.constant 0 : index
    %72 = vector.load %arg13[%c0_54, %c0_55] : memref<72x32xf32, #tpu.memory_space<vmem>>, vector<64x32xf32>
    tpu.vector_store %arg13[%c0_54, %c0_55], %71 {strides = array<i32>} : memref<72x32xf32, #tpu.memory_space<vmem>>, vector<64x32xf32>,
    %c0_56 = arith.constant 0 : index
    %c0_57 = arith.constant 0 : index
    %73 = vector.load %arg13[%c0_56, %c0_57] : memref<72x32xf32, #tpu.memory_space<vmem>>, vector<64x32xf32>
    %c0_58 = arith.constant 0 : index
    %c0_59 = arith.constant 0 : index
    %74 = vector.load %arg14[%c0_58, %c0_59] : memref<64x128xf32, #tpu.memory_space<vmem>>, vector<64x32xf32>
    tpu.vector_store %arg14[%c0_58, %c0_59], %73 {strides = array<i32>} : memref<64x128xf32, #tpu.memory_space<vmem>>, vector<64x32xf32>,
    %c1_60 = arith.constant 1 : index
    %c0_61 = arith.constant 0 : index
    %75 = vector.load %arg13[%c1_60, %c0_61] : memref<72x32xf32, #tpu.memory_space<vmem>>, vector<64x32xf32>
    %c0_62 = arith.constant 0 : index
    %c32_63 = arith.constant 32 : index
    %76 = vector.load %arg14[%c0_62, %c32_63] : memref<64x128xf32, #tpu.memory_space<vmem>>, vector<64x32xf32>
    tpu.vector_store %arg14[%c0_62, %c32_63], %75 {strides = array<i32>} : memref<64x128xf32, #tpu.memory_space<vmem>>, vector<64x32xf32>,
    %c2 = arith.constant 2 : index
    %c0_64 = arith.constant 0 : index
    %77 = vector.load %arg13[%c2, %c0_64] : memref<72x32xf32, #tpu.memory_space<vmem>>, vector<64x32xf32>
    %c0_65 = arith.constant 0 : index
    %c64_66 = arith.constant 64 : index
    %78 = vector.load %arg14[%c0_65, %c64_66] : memref<64x128xf32, #tpu.memory_space<vmem>>, vector<64x32xf32>
    tpu.vector_store %arg14[%c0_65, %c64_66], %77 {strides = array<i32>} : memref<64x128xf32, #tpu.memory_space<vmem>>, vector<64x32xf32>,
    %c3 = arith.constant 3 : index
    %c0_67 = arith.constant 0 : index
    %79 = vector.load %arg13[%c3, %c0_67] : memref<72x32xf32, #tpu.memory_space<vmem>>, vector<64x32xf32>
    %c0_68 = arith.constant 0 : index
    %c96 = arith.constant 96 : index
    %80 = vector.load %arg14[%c0_68, %c96] : memref<64x128xf32, #tpu.memory_space<vmem>>, vector<64x32xf32>
    tpu.vector_store %arg14[%c0_68, %c96], %79 {strides = array<i32>} : memref<64x128xf32, #tpu.memory_space<vmem>>, vector<64x32xf32>,
    %c0_69 = arith.constant 0 : index
    %c0_70 = arith.constant 0 : index
    %81 = tpu.strided_load %arg14[%c0_69, %c0_70] {strides = array<i32: 2, 1>} : memref<64x128xf32, #tpu.memory_space<vmem>>, vector<2x128xf32>
    %c0_71 = arith.constant 0 : index
    %c0_72 = arith.constant 0 : index
    %82 = vector.load %arg15[%c0_71, %c0_72] : memref<8x512xf32, #tpu.memory_space<vmem>>, vector<2x128xf32>
    tpu.vector_store %arg15[%c0_71, %c0_72], %81 {strides = array<i32>} : memref<8x512xf32, #tpu.memory_space<vmem>>, vector<2x128xf32>,
    %c16_73 = arith.constant 16 : index
    %c0_74 = arith.constant 0 : index
    %83 = tpu.strided_load %arg14[%c16_73, %c0_74] {strides = array<i32: 2, 1>} : memref<64x128xf32, #tpu.memory_space<vmem>>, vector<2x128xf32>
    %c2_75 = arith.constant 2 : index
    %c0_76 = arith.constant 0 : index
    %84 = vector.load %arg15[%c2_75, %c0_76] : memref<8x512xf32, #tpu.memory_space<vmem>>, vector<2x128xf32>
    tpu.vector_store %arg15[%c2_75, %c0_76], %83 {strides = array<i32>} : memref<8x512xf32, #tpu.memory_space<vmem>>, vector<2x128xf32>,
    %c8_77 = arith.constant 8 : index
    %c0_78 = arith.constant 0 : index
    %85 = tpu.strided_load %arg14[%c8_77, %c0_78] {strides = array<i32: 2, 1>} : memref<64x128xf32, #tpu.memory_space<vmem>>, vector<2x128xf32>
    %c0_79 = arith.constant 0 : index
    %c128 = arith.constant 128 : index
    %86 = vector.load %arg15[%c0_79, %c128] : memref<8x512xf32, #tpu.memory_space<vmem>>, vector<2x128xf32>
    tpu.vector_store %arg15[%c0_79, %c128], %85 {strides = array<i32>} : memref<8x512xf32, #tpu.memory_space<vmem>>, vector<2x128xf32>,
    %c24 = arith.constant 24 : index
    %c0_80 = arith.constant 0 : index
    %87 = tpu.strided_load %arg14[%c24, %c0_80] {strides = array<i32: 2, 1>} : memref<64x128xf32, #tpu.memory_space<vmem>>, vector<2x128xf32>
    %c2_81 = arith.constant 2 : index
    %c128_82 = arith.constant 128 : index
    %88 = vector.load %arg15[%c2_81, %c128_82] : memref<8x512xf32, #tpu.memory_space<vmem>>, vector<2x128xf32>
    tpu.vector_store %arg15[%c2_81, %c128_82], %87 {strides = array<i32>} : memref<8x512xf32, #tpu.memory_space<vmem>>, vector<2x128xf32>,
    %c16_83 = arith.constant 16 : index
    %c0_84 = arith.constant 0 : index
    %89 = tpu.strided_load %arg14[%c16_83, %c0_84] {strides = array<i32: 2, 1>} : memref<64x128xf32, #tpu.memory_space<vmem>>, vector<2x128xf32>
    %c0_85 = arith.constant 0 : index
    %c256 = arith.constant 256 : index
    %90 = vector.load %arg15[%c0_85, %c256] : memref<8x512xf32, #tpu.memory_space<vmem>>, vector<2x128xf32>
    tpu.vector_store %arg15[%c0_85, %c256], %89 {strides = array<i32>} : memref<8x512xf32, #tpu.memory_space<vmem>>, vector<2x128xf32>,
    %c32_86 = arith.constant 32 : index
    %c0_87 = arith.constant 0 : index
    %91 = tpu.strided_load %arg14[%c32_86, %c0_87] {strides = array<i32: 2, 1>} : memref<64x128xf32, #tpu.memory_space<vmem>>, vector<2x128xf32>
    %c2_88 = arith.constant 2 : index
    %c256_89 = arith.constant 256 : index
    %92 = vector.load %arg15[%c2_88, %c256_89] : memref<8x512xf32, #tpu.memory_space<vmem>>, vector<2x128xf32>
    tpu.vector_store %arg15[%c2_88, %c256_89], %91 {strides = array<i32>} : memref<8x512xf32, #tpu.memory_space<vmem>>, vector<2x128xf32>,
    %c24_90 = arith.constant 24 : index
    %c0_91 = arith.constant 0 : index
    %93 = tpu.strided_load %arg14[%c24_90, %c0_91] {strides = array<i32: 2, 1>} : memref<64x128xf32, #tpu.memory_space<vmem>>, vector<2x128xf32>
    %c0_92 = arith.constant 0 : index
    %c384 = arith.constant 384 : index
    %94 = vector.load %arg15[%c0_92, %c384] : memref<8x512xf32, #tpu.memory_space<vmem>>, vector<2x128xf32>
    tpu.vector_store %arg15[%c0_92, %c384], %93 {strides = array<i32>} : memref<8x512xf32, #tpu.memory_space<vmem>>, vector<2x128xf32>,
    %c40 = arith.constant 40 : index
    %c0_93 = arith.constant 0 : index
    %95 = tpu.strided_load %arg14[%c40, %c0_93] {strides = array<i32: 2, 1>} : memref<64x128xf32, #tpu.memory_space<vmem>>, vector<2x128xf32>
    %c2_94 = arith.constant 2 : index
    %c384_95 = arith.constant 384 : index
    %96 = vector.load %arg15[%c2_94, %c384_95] : memref<8x512xf32, #tpu.memory_space<vmem>>, vector<2x128xf32>
    tpu.vector_store %arg15[%c2_94, %c384_95], %95 {strides = array<i32>} : memref<8x512xf32, #tpu.memory_space<vmem>>, vector<2x128xf32>,
    %c0_96 = arith.constant 0 : index
    %c0_97 = arith.constant 0 : index
    %97 = vector.load %arg15[%c0_96, %c0_97] : memref<8x512xf32, #tpu.memory_space<vmem>>, vector<8x512xf32>
    %c0_98 = arith.constant 0 : index
    %c0_99 = arith.constant 0 : index
    %98 = vector.load %arg5[%c0_98, %c0_99] : memref<512x64xbf16, #tpu.memory_space<vmem>>, vector<512x64xbf16>
    %99 = arith.truncf %97 : vector<8x512xf32> to vector<8x512xbf16>
    %cst_100 = arith.constant dense<0.000000e+00> : vector<8x64xf32>
    %100 = tpu.matmul %99, %98, %cst_100 {dimension_numbers = #tpu.dot_dimension_numbers<[1], [0], [0], [1], [0, 0, 1, 1], [], []>} : vector<8x512xbf16>, vector<512x64xbf16>, vector<8x64xf32> -> vector<8x64xf32>
    %c0_101 = arith.constant 0 : index
    %c0_102 = arith.constant 0 : index
    %101 = vector.load %arg6[%c0_101, %c0_102] : memref<1x64xf32, #tpu.memory_space<vmem>>, vector<1x64xf32>
    %102 = vector.broadcast %101 : vector<1x64xf32> to vector<8x64xf32>
    %103 = arith.addf %100, %102 : vector<8x64xf32>
    %cst_103 = arith.constant 0.000000e+00 : f32
    %104 = vector.broadcast %cst_103 : f32 to vector<8x64xf32>
    %105 = arith.maximumf %103, %104 : vector<8x64xf32>
    %c0_104 = arith.constant 0 : index
    %c0_105 = arith.constant 0 : index
    %106 = vector.load %arg16[%c0_104, %c0_105] : memref<16x64xf32, #tpu.memory_space<vmem>>, vector<8x64xf32>
    tpu.vector_store %arg16[%c0_104, %c0_105], %105 {strides = array<i32>} : memref<16x64xf32, #tpu.memory_space<vmem>>, vector<8x64xf32>,
    %c0_106 = arith.constant 0 : index
    %c0_107 = arith.constant 0 : index
    %107 = vector.load %arg16[%c0_106, %c0_107] : memref<16x64xf32, #tpu.memory_space<vmem>>, vector<8x64xf32>
    %c0_108 = arith.constant 0 : index
    %c0_109 = arith.constant 0 : index
    %108 = vector.load %arg17[%c0_108, %c0_109] : memref<8x256xf32, #tpu.memory_space<vmem>>, vector<8x64xf32>
    tpu.vector_store %arg17[%c0_108, %c0_109], %107 {strides = array<i32>} : memref<8x256xf32, #tpu.memory_space<vmem>>, vector<8x64xf32>,
    %c1_110 = arith.constant 1 : index
    %c0_111 = arith.constant 0 : index
    %109 = vector.load %arg16[%c1_110, %c0_111] : memref<16x64xf32, #tpu.memory_space<vmem>>, vector<8x64xf32>
    %c0_112 = arith.constant 0 : index
    %c64_113 = arith.constant 64 : index
    %110 = vector.load %arg17[%c0_112, %c64_113] : memref<8x256xf32, #tpu.memory_space<vmem>>, vector<8x64xf32>
    tpu.vector_store %arg17[%c0_112, %c64_113], %109 {strides = array<i32>} : memref<8x256xf32, #tpu.memory_space<vmem>>, vector<8x64xf32>,
    %c2_114 = arith.constant 2 : index
    %c0_115 = arith.constant 0 : index
    %111 = vector.load %arg16[%c2_114, %c0_115] : memref<16x64xf32, #tpu.memory_space<vmem>>, vector<8x64xf32>
    %c0_116 = arith.constant 0 : index
    %c128_117 = arith.constant 128 : index
    %112 = vector.load %arg17[%c0_116, %c128_117] : memref<8x256xf32, #tpu.memory_space<vmem>>, vector<8x64xf32>
    tpu.vector_store %arg17[%c0_116, %c128_117], %111 {strides = array<i32>} : memref<8x256xf32, #tpu.memory_space<vmem>>, vector<8x64xf32>,
    %c3_118 = arith.constant 3 : index
    %c0_119 = arith.constant 0 : index
    %113 = vector.load %arg16[%c3_118, %c0_119] : memref<16x64xf32, #tpu.memory_space<vmem>>, vector<8x64xf32>
    %c0_120 = arith.constant 0 : index
    %c192 = arith.constant 192 : index
    %114 = vector.load %arg17[%c0_120, %c192] : memref<8x256xf32, #tpu.memory_space<vmem>>, vector<8x64xf32>
    tpu.vector_store %arg17[%c0_120, %c192], %113 {strides = array<i32>} : memref<8x256xf32, #tpu.memory_space<vmem>>, vector<8x64xf32>,
    %c0_121 = arith.constant 0 : index
    %c0_122 = arith.constant 0 : index
    %115 = vector.load %arg17[%c0_121, %c0_122] : memref<8x256xf32, #tpu.memory_space<vmem>>, vector<8x256xf32>
    %c0_123 = arith.constant 0 : index
    %c0_124 = arith.constant 0 : index
    %116 = vector.load %arg7[%c0_123, %c0_124] : memref<256x32xbf16, #tpu.memory_space<vmem>>, vector<256x32xbf16>
    %117 = arith.truncf %115 : vector<8x256xf32> to vector<8x256xbf16>
    %cst_125 = arith.constant dense<0.000000e+00> : vector<8x32xf32>
    %118 = tpu.matmul %117, %116, %cst_125 {dimension_numbers = #tpu.dot_dimension_numbers<[1], [0], [0], [1], [0, 0, 1, 1], [], []>} : vector<8x256xbf16>, vector<256x32xbf16>, vector<8x32xf32> -> vector<8x32xf32>
    %c0_126 = arith.constant 0 : index
    %c0_127 = arith.constant 0 : index
    %119 = vector.load %arg8[%c0_126, %c0_127] : memref<1x32xf32, #tpu.memory_space<vmem>>, vector<1x32xf32>
    %120 = vector.broadcast %119 : vector<1x32xf32> to vector<8x32xf32>
    %121 = arith.addf %118, %120 : vector<8x32xf32>
    %cst_128 = arith.constant 0.000000e+00 : f32
    %122 = vector.broadcast %cst_128 : f32 to vector<8x32xf32>
    %123 = arith.maximumf %121, %122 : vector<8x32xf32>
    %124 = vector.extract_strided_slice %123 {offsets = [0, 0], sizes = [1, 32], strides = [1, 1]} : vector<8x32xf32> to vector<1x32xf32>
    %c0_129 = arith.constant 0 : index
    %c0_130 = arith.constant 0 : index
    %125 = vector.load %arg18[%c0_129, %c0_130] : memref<1x32xf32, #tpu.memory_space<vmem>>, vector<1x32xf32>
    tpu.vector_store %arg18[%c0_129, %c0_130], %124 {strides = array<i32>} : memref<1x32xf32, #tpu.memory_space<vmem>>, vector<1x32xf32>,
    %c0_131 = arith.constant 0 : index
    %c0_132 = arith.constant 0 : index
    %126 = vector.load %arg18[%c0_131, %c0_132] : memref<1x32xf32, #tpu.memory_space<vmem>>, vector<1x32xf32>
    %c0_133 = arith.constant 0 : index
    %c0_134 = arith.constant 0 : index
    %127 = vector.load %arg9[%c0_133, %c0_134] : memref<32x32xbf16, #tpu.memory_space<vmem>>, vector<32x32xbf16>
    %128 = arith.truncf %126 : vector<1x32xf32> to vector<1x32xbf16>
    %cst_135 = arith.constant dense<0.000000e+00> : vector<1x32xf32>
    %129 = tpu.matmul %128, %127, %cst_135 {dimension_numbers = #tpu.dot_dimension_numbers<[1], [0], [0], [1], [0, 0, 1, 1], [], []>} : vector<1x32xbf16>, vector<32x32xbf16>, vector<1x32xf32> -> vector<1x32xf32>
    %c0_136 = arith.constant 0 : index
    %c0_137 = arith.constant 0 : index
    %130 = vector.load %arg10[%c0_136, %c0_137] : memref<1x32xf32, #tpu.memory_space<vmem>>, vector<1x32xf32>
    %131 = arith.addf %129, %130 : vector<1x32xf32>
    %cst_138 = arith.constant 0.000000e+00 : f32
    %132 = vector.broadcast %cst_138 : f32 to vector<1x32xf32>
    %133 = arith.maximumf %131, %132 : vector<1x32xf32>
    %134 = vector.shape_cast %133 : vector<1x32xf32> to vector<1x1x32xf32>
    %c0_139 = arith.constant 0 : index
    %c0_140 = arith.constant 0 : index
    %c0_141 = arith.constant 0 : index
    %135 = vector.load %arg11[%c0_139, %c0_140, %c0_141] : memref<1x1x32xf32, #tpu.memory_space<vmem>>, vector<1x1x32xf32>
    tpu.vector_store %arg11[%c0_139, %c0_140, %c0_141], %134 {strides = array<i32>} : memref<1x1x32xf32, #tpu.memory_space<vmem>>, vector<1x1x32xf32>,
    return
  }
  func.func @transform_0(%arg0: i32) -> (i32, i32) {
    %c0_i32 = arith.constant 0 : i32
    %c0_i32_0 = arith.constant 0 : i32
    return %arg0, %c0_i32 : i32, i32
  }
  func.func @transform_1(%arg0: i32) -> (i32, i32) {
    %c0_i32 = arith.constant 0 : i32
    %c0_i32_0 = arith.constant 0 : i32
    return %arg0, %c0_i32 : i32, i32
  }
  func.func @transform_2(%arg0: i32) -> (i32, i32) {
    %c0_i32 = arith.constant 0 : i32
    %c0_i32_0 = arith.constant 0 : i32
    %c0_i32_1 = arith.constant 0 : i32
    return %c0_i32, %c0_i32_0 : i32, i32
  }
  func.func @transform_3(%arg0: i32) -> (i32, i32) {
    %c0_i32 = arith.constant 0 : i32
    %c0_i32_0 = arith.constant 0 : i32
    %c0_i32_1 = arith.constant 0 : i32
    return %c0_i32, %c0_i32_0 : i32, i32
  }
  func.func @transform_4(%arg0: i32) -> (i32, i32) {
    %c0_i32 = arith.constant 0 : i32
    %c0_i32_0 = arith.constant 0 : i32
    %c0_i32_1 = arith.constant 0 : i32
    return %c0_i32, %c0_i32_0 : i32, i32
  }
  func.func @transform_5(%arg0: i32) -> (i32, i32) {
    %c0_i32 = arith.constant 0 : i32
    %c0_i32_0 = arith.constant 0 : i32
    %c0_i32_1 = arith.constant 0 : i32
    return %c0_i32, %c0_i32_0 : i32, i32
  }
  func.func @transform_6(%arg0: i32) -> (i32, i32) {
    %c0_i32 = arith.constant 0 : i32
    %c0_i32_0 = arith.constant 0 : i32
    %c0_i32_1 = arith.constant 0 : i32
    return %c0_i32, %c0_i32_0 : i32, i32
  }
  func.func @transform_7(%arg0: i32) -> (i32, i32) {
    %c0_i32 = arith.constant 0 : i32
    %c0_i32_0 = arith.constant 0 : i32
    %c0_i32_1 = arith.constant 0 : i32
    return %c0_i32, %c0_i32_0 : i32, i32
  }
  func.func @transform_8(%arg0: i32) -> (i32, i32) {
    %c0_i32 = arith.constant 0 : i32
    %c0_i32_0 = arith.constant 0 : i32
    %c0_i32_1 = arith.constant 0 : i32
    return %c0_i32, %c0_i32_0 : i32, i32
  }
  func.func @transform_9(%arg0: i32) -> (i32, i32) {
    %c0_i32 = arith.constant 0 : i32
    %c0_i32_0 = arith.constant 0 : i32
    %c0_i32_1 = arith.constant 0 : i32
    return %c0_i32, %c0_i32_0 : i32, i32
  }
  func.func @transform_10(%arg0: i32) -> (i32, i32, i32) {
    %c0_i32 = arith.constant 0 : i32
    %c0_i32_0 = arith.constant 0 : i32
    %c0_i32_1 = arith.constant 0 : i32
    return %arg0, %c0_i32, %c0_i32_0 : i32, i32, i32
  }
}

</mosaic_0001>

<llo_original>
// kernel: audio_cnn_forward.1
$region0: #{audio_cnn_forward.1}
  #allocation0 [shape = 'u32[]', space=smem, size = 0x4, offset = 0x4, fixed_abs, tag = 'smem constant byte address 0x4 - core index']
  #allocation1 [shape = 'u32[144,128]{1,0:T(1,128)}', space=vmem, size = 0x12000, scoped, tag = 'internal scratch']
  #allocation2 [shape = 'f32[80,512]{1,0:T(8,128)}', space=vmem, size = 0x28000, scoped, tag = 'scratch operand']
  #allocation3 [shape = 'f32[72,32]{1,0:T(8,128)}', space=vmem, size = 0x9000, scoped, tag = 'scratch operand']
  #allocation4 [shape = 'f32[64,128]{1,0:T(8,128)}', space=vmem, size = 0x8000, scoped, tag = 'scratch operand']
  #allocation5 [shape = 'f32[8,512]{1,0:T(8,128)}', space=vmem, size = 0x4000, scoped, tag = 'scratch operand']
  #allocation6 [shape = 'f32[16,64]{1,0:T(8,128)}', space=vmem, size = 0x2000, scoped, tag = 'scratch operand']
  #allocation7 [shape = 'f32[8,256]{1,0:T(8,128)}', space=vmem, size = 0x2000, scoped, tag = 'scratch operand']
  #allocation8 [shape = 'f32[1,32]{1,0:T(1,128)}', space=vmem, size = 0x200, scoped, tag = 'scratch operand']
  %s0 = inlined_call_operand.vmem [shape: f32[128,512], index: 0, kind: input, shape index: {}]
  %s1 = inlined_call_operand.vmem [shape: f32[128,512], index: 1, kind: input, shape index: {}]
  %s2 = inlined_call_operand.vmem [shape: bf16[2048,32], index: 2, kind: input, shape index: {}]
  %s3 = inlined_call_operand.vmem [shape: f32[1,32], index: 3, kind: input, shape index: {}]
  %s4 = inlined_call_operand.vmem [shape: bf16[512,64], index: 4, kind: input, shape index: {}]
  %s5 = inlined_call_operand.vmem [shape: f32[1,64], index: 5, kind: input, shape index: {}]
  %s6 = inlined_call_operand.vmem [shape: bf16[256,32], index: 6, kind: input, shape index: {}]
  %s7 = inlined_call_operand.vmem [shape: f32[1,32], index: 7, kind: input, shape index: {}]
  %s8 = inlined_call_operand.vmem [shape: bf16[32,32], index: 8, kind: input, shape index: {}]
  %s9 = inlined_call_operand.vmem [shape: f32[1,32], index: 9, kind: input, shape index: {}]
  %s10 = inlined_call_operand.hbm [shape: f32[2,1,32], index: 10, kind: output, shape index: {}]
  %s11 = sld [smem:[#allocation0]]
  $region73: #{audio_cnn_forward.1} parent=0
    _
  %s13 = ssub.s32 1, %s11
  %s14 = scalar_select 0, %s13, %s11
  $region1: #{audio_cnn_forward.1} parent=0
    #allocation9 [shape = 'u8[1024]{0}', space=vmem, size = 0x400, scoped, tag = 'output window, operand 0']
    #allocation10 [shape = 's32[2]{0}', space=sflag, size = 0x8, scoped, tag = 'scoped memory for audio_cnn_forward.1']
    %15 = vsyncpa [#allocation10], 0
    %s16 = scalar_lea.sflag [#allocation10], 1
    %17 = vsyncpa %s16, 0
    loop: start=0, step=1, limit=4
    $region2: #{audio_cnn_forward.1} parent=1 // loop_pre_header
      _
    $region3: #{audio_cnn_forward.1} parent=1 // loop_header
      %s19 = sphi 0, %s23
      %p20 = scmp.ge.s32.totalorder %s19, 4
      %s29 = sphi 0, %s31
      %s32 = sphi 0, %s29
      %s33 = sphi 0, %s32
      %s49 = sphi 0, %s33
      %s55 = sphi 0, %s57
      %s58 = sphi 0, %s55
      %s59 = sphi 0, %s58
      %s75 = sphi 0, %s59
      %s79 = sphi 0, %s79
      %s81 = sphi 0, %s79
      %s82 = sphi 0, %s81
      %s96 = sphi 0, %s82
      %s100 = sphi 0, %s100
      %s102 = sphi 0, %s100
      %s103 = sphi 0, %s102
      %s117 = sphi 0, %s103
      %s121 = sphi 0, %s121
      %s123 = sphi 0, %s121
      %s124 = sphi 0, %s123
      %s138 = sphi 0, %s124
      %s142 = sphi 0, %s142
      %s144 = sphi 0, %s142
      %s145 = sphi 0, %s144
      %s159 = sphi 0, %s145
      %s163 = sphi 0, %s163
      %s165 = sphi 0, %s163
      %s166 = sphi 0, %s165
      %s180 = sphi 0, %s166
      %s184 = sphi 0, %s184
      %s186 = sphi 0, %s184
      %s187 = sphi 0, %s186
      %s201 = sphi 0, %s187
      %s205 = sphi 0, %s205
      %s207 = sphi 0, %s205
      %s208 = sphi 0, %s207
      %s222 = sphi 0, %s208
      %s226 = sphi 0, %s226
      %s228 = sphi 0, %s226
      %s229 = sphi 0, %s228
      %s243 = sphi 0, %s229
      %s249 = sphi 0, %s251
      %s252 = sphi 0, %s249
      %s253 = sphi 0, %s252
      %s269 = sphi 0, %s253
    $region4: #{audio_cnn_forward.1} parent=1 // loop_header_branch
      %22 = sbr.rel (%p20) target = $region8
    $region5: #{audio_cnn_forward.1} parent=1 // loop_body
      %s24 = ssub.s32 %s19, 1
      %s25 = ssub.s32 %s19, 2
      %s26 = sadd.s32 %s19, 1
      %s27 = ssub.s32 %s19, %s26
      %p28 = scmp.eq.s32.totalorder %s27, 0
      %s30 = sadd.s32 %s29, 1
      %s31 = scalar_select %p28, %s29, %s30
      %p34 = pneg %p28
      %p35 = scmp.eq.s32.totalorder %s19, 1
      %p36 = por %p34, %p35
      %p37 = scmp.ne.s32.totalorder %s29, %s32
      %p38 = scmp.eq.s32.totalorder %s19, 0
      %p39 = por %p37, %p38
      %p40 = scmp.ne.s32.totalorder %s29, %s32
      %p41 = scmp.eq.s32.totalorder %s24, 1
      %p42 = por %p40, %p41
      %p43 = scmp.ne.s32.totalorder %s32, %s33
      %p44 = scmp.eq.s32.totalorder %s24, 0
      %p45 = por %p43, %p44
      %p46 = scmp.ne.s32.totalorder %s32, %s33
      %p47 = scmp.eq.s32.totalorder %s25, 1
      %p48 = por %p46, %p47
      %p50 = scmp.ne.s32.totalorder %s33, %s49
      %p51 = scmp.eq.s32.totalorder %s25, 0
      %p52 = por %p50, %p51
      %s53 = ssub.s32 %s19, %s26
      %p54 = scmp.eq.s32.totalorder %s53, 0
      %s56 = sadd.s32 %s55, 1
      %s57 = scalar_select %p54, %s55, %s56
      %p60 = pneg %p54
      %p61 = scmp.eq.s32.totalorder %s19, 1
      %p62 = por %p60, %p61
      %p63 = scmp.ne.s32.totalorder %s55, %s58
      %p64 = scmp.eq.s32.totalorder %s19, 0
      %p65 = por %p63, %p64
      %p66 = scmp.ne.s32.totalorder %s55, %s58
      %p67 = scmp.eq.s32.totalorder %s24, 1
      %p68 = por %p66, %p67
      %p69 = scmp.ne.s32.totalorder %s58, %s59
      %p70 = scmp.eq.s32.totalorder %s24, 0
      %p71 = por %p69, %p70
      %p72 = scmp.ne.s32.totalorder %s58, %s59
      %p73 = scmp.eq.s32.totalorder %s25, 1
      %p74 = por %p72, %p73
      %p76 = scmp.ne.s32.totalorder %s59, %s75
      %p77 = scmp.eq.s32.totalorder %s25, 0
      %p78 = por %p76, %p77
      %s80 = sadd.s32 %s79, 1
      %p83 = scmp.eq.s32.totalorder %s19, 1
      %p84 = scmp.ne.s32.totalorder %s79, %s81
      %p85 = scmp.eq.s32.totalorder %s19, 0
      %p86 = por %p84, %p85
      %p87 = scmp.ne.s32.totalorder %s79, %s81
      %p88 = scmp.eq.s32.totalorder %s24, 1
      %p89 = por %p87, %p88
      %p90 = scmp.ne.s32.totalorder %s81, %s82
      %p91 = scmp.eq.s32.totalorder %s24, 0
      %p92 = por %p90, %p91
      %p93 = scmp.ne.s32.totalorder %s81, %s82
      %p94 = scmp.eq.s32.totalorder %s25, 1
      %p95 = por %p93, %p94
      %p97 = scmp.ne.s32.totalorder %s82, %s96
      %p98 = scmp.eq.s32.totalorder %s25, 0
      %p99 = por %p97, %p98
      %s101 = sadd.s32 %s100, 1
      %p104 = scmp.eq.s32.totalorder %s19, 1
      %p105 = scmp.ne.s32.totalorder %s100, %s102
      %p106 = scmp.eq.s32.totalorder %s19, 0
      %p107 = por %p105, %p106
      %p108 = scmp.ne.s32.totalorder %s100, %s102
      %p109 = scmp.eq.s32.totalorder %s24, 1
      %p110 = por %p108, %p109
      %p111 = scmp.ne.s32.totalorder %s102, %s103
      %p112 = scmp.eq.s32.totalorder %s24, 0
      %p113 = por %p111, %p112
      %p114 = scmp.ne.s32.totalorder %s102, %s103
      %p115 = scmp.eq.s32.totalorder %s25, 1
      %p116 = por %p114, %p115
      %p118 = scmp.ne.s32.totalorder %s103, %s117
      %p119 = scmp.eq.s32.totalorder %s25, 0
      %p120 = por %p118, %p119
      %s122 = sadd.s32 %s121, 1
      %p125 = scmp.eq.s32.totalorder %s19, 1
      %p126 = scmp.ne.s32.totalorder %s121, %s123
      %p127 = scmp.eq.s32.totalorder %s19, 0
      %p128 = por %p126, %p127
      %p129 = scmp.ne.s32.totalorder %s121, %s123
      %p130 = scmp.eq.s32.totalorder %s24, 1
      %p131 = por %p129, %p130
      %p132 = scmp.ne.s32.totalorder %s123, %s124
      %p133 = scmp.eq.s32.totalorder %s24, 0
      %p134 = por %p132, %p133
      %p135 = scmp.ne.s32.totalorder %s123, %s124
      %p136 = scmp.eq.s32.totalorder %s25, 1
      %p137 = por %p135, %p136
      %p139 = scmp.ne.s32.totalorder %s124, %s138
      %p140 = scmp.eq.s32.totalorder %s25, 0
      %p141 = por %p139, %p140
      %s143 = sadd.s32 %s142, 1
      %p146 = scmp.eq.s32.totalorder %s19, 1
      %p147 = scmp.ne.s32.totalorder %s142, %s144
      %p148 = scmp.eq.s32.totalorder %s19, 0
      %p149 = por %p147, %p148
      %p150 = scmp.ne.s32.totalorder %s142, %s144
      %p151 = scmp.eq.s32.totalorder %s24, 1
      %p152 = por %p150, %p151
      %p153 = scmp.ne.s32.totalorder %s144, %s145
      %p154 = scmp.eq.s32.totalorder %s24, 0
      %p155 = por %p153, %p154
      %p156 = scmp.ne.s32.totalorder %s144, %s145
      %p157 = scmp.eq.s32.totalorder %s25, 1
      %p158 = por %p156, %p157
      %p160 = scmp.ne.s32.totalorder %s145, %s159
      %p161 = scmp.eq.s32.totalorder %s25, 0
      %p162 = por %p160, %p161
      %s164 = sadd.s32 %s163, 1
      %p167 = scmp.eq.s32.totalorder %s19, 1
      %p168 = scmp.ne.s32.totalorder %s163, %s165
      %p169 = scmp.eq.s32.totalorder %s19, 0
      %p170 = por %p168, %p169
      %p171 = scmp.ne.s32.totalorder %s163, %s165
      %p172 = scmp.eq.s32.totalorder %s24, 1
      %p173 = por %p171, %p172
      %p174 = scmp.ne.s32.totalorder %s165, %s166
      %p175 = scmp.eq.s32.totalorder %s24, 0
      %p176 = por %p174, %p175
      %p177 = scmp.ne.s32.totalorder %s165, %s166
      %p178 = scmp.eq.s32.totalorder %s25, 1
      %p179 = por %p177, %p178
      %p181 = scmp.ne.s32.totalorder %s166, %s180
      %p182 = scmp.eq.s32.totalorder %s25, 0
      %p183 = por %p181, %p182
      %s185 = sadd.s32 %s184, 1
      %p188 = scmp.eq.s32.totalorder %s19, 1
      %p189 = scmp.ne.s32.totalorder %s184, %s186
      %p190 = scmp.eq.s32.totalorder %s19, 0
      %p191 = por %p189, %p190
      %p192 = scmp.ne.s32.totalorder %s184, %s186
      %p193 = scmp.eq.s32.totalorder %s24, 1
      %p194 = por %p192, %p193
      %p195 = scmp.ne.s32.totalorder %s186, %s187
      %p196 = scmp.eq.s32.totalorder %s24, 0
      %p197 = por %p195, %p196
      %p198 = scmp.ne.s32.totalorder %s186, %s187
      %p199 = scmp.eq.s32.totalorder %s25, 1
      %p200 = por %p198, %p199
      %p202 = scmp.ne.s32.totalorder %s187, %s201
      %p203 = scmp.eq.s32.totalorder %s25, 0
      %p204 = por %p202, %p203
      %s206 = sadd.s32 %s205, 1
      %p209 = scmp.eq.s32.totalorder %s19, 1
      %p210 = scmp.ne.s32.totalorder %s205, %s207
      %p211 = scmp.eq.s32.totalorder %s19, 0
      %p212 = por %p210, %p211
      %p213 = scmp.ne.s32.totalorder %s205, %s207
      %p214 = scmp.eq.s32.totalorder %s24, 1
      %p215 = por %p213, %p214
      %p216 = scmp.ne.s32.totalorder %s207, %s208
      %p217 = scmp.eq.s32.totalorder %s24, 0
      %p218 = por %p216, %p217
      %p219 = scmp.ne.s32.totalorder %s207, %s208
      %p220 = scmp.eq.s32.totalorder %s25, 1
      %p221 = por %p219, %p220
      %p223 = scmp.ne.s32.totalorder %s208, %s222
      %p224 = scmp.eq.s32.totalorder %s25, 0
      %p225 = por %p223, %p224
      %s227 = sadd.s32 %s226, 1
      %p230 = scmp.eq.s32.totalorder %s19, 1
      %p231 = scmp.ne.s32.totalorder %s226, %s228
      %p232 = scmp.eq.s32.totalorder %s19, 0
      %p233 = por %p231, %p232
      %p234 = scmp.ne.s32.totalorder %s226, %s228
      %p235 = scmp.eq.s32.totalorder %s24, 1
      %p236 = por %p234, %p235
      %p237 = scmp.ne.s32.totalorder %s228, %s229
      %p238 = scmp.eq.s32.totalorder %s24, 0
      %p239 = por %p237, %p238
      %p240 = scmp.ne.s32.totalorder %s228, %s229
      %p241 = scmp.eq.s32.totalorder %s25, 1
      %p242 = por %p240, %p241
      %p244 = scmp.ne.s32.totalorder %s229, %s243
      %p245 = scmp.eq.s32.totalorder %s25, 0
      %p246 = por %p244, %p245
      %s247 = ssub.s32 %s19, %s26
      %p248 = scmp.eq.s32.totalorder %s247, 0
      %s250 = sadd.s32 %s249, 1
      %s251 = scalar_select %p248, %s249, %s250
      %p254 = pneg %p248
      %p255 = scmp.eq.s32.totalorder %s19, 1
      %p256 = por %p254, %p255
      %p257 = scmp.ne.s32.totalorder %s249, %s252
      %p258 = scmp.eq.s32.totalorder %s19, 0
      %p259 = por %p257, %p258
      %p260 = scmp.ne.s32.totalorder %s249, %s252
      %p261 = scmp.eq.s32.totalorder %s24, 1
      %p262 = por %p260, %p261
      %p263 = scmp.ne.s32.totalorder %s252, %s253
      %p264 = scmp.eq.s32.totalorder %s24, 0
      %p265 = por %p263, %p264
      %p266 = scmp.ne.s32.totalorder %s252, %s253
      %p267 = scmp.eq.s32.totalorder %s25, 1
      %p268 = por %p266, %p267
      %p270 = scmp.ne.s32.totalorder %s253, %s269
      %p271 = scmp.eq.s32.totalorder %s25, 0
      %p272 = por %p270, %p271
      %p273 = scmp.le.s32.totalorder 1, %s19
      %p274 = scmp.lt.s32.totalorder %s19, 3
      %p275 = pnand %p273, %p274
      %p276 = pneg %p275
      // Predicated region
      $region9: #{audio_cnn_forward.1} parent=5 // pred_check
        _
      $region10: #{audio_cnn_forward.1} parent=5 // pred_check_branch
        %278 = sbr.rel (%p275) target = $region12
      $region11: #{audio_cnn_forward.1} parent=5 // pred_region
        %s279 = ssub.s32 %s19, 1
        // Predicated region
        $region13: #{audio_cnn_forward.1} parent=11 // pred_check
          %p280 = pneg %p92
        $region14: #{audio_cnn_forward.1} parent=11 // pred_check_branch
          %282 = sbr.rel (%p280) target = $region16
        $region15: #{audio_cnn_forward.1} parent=11 // pred_region
          _
        $region16: #{audio_cnn_forward.1} parent=11 // pred_fallthru
          _
        // Predicated region
        $region17: #{audio_cnn_forward.1} parent=11 // pred_check
          %p283 = pneg %p113
        $region18: #{audio_cnn_forward.1} parent=11 // pred_check_branch
          %285 = sbr.rel (%p283) target = $region20
        $region19: #{audio_cnn_forward.1} parent=11 // pred_region
          _
        $region20: #{audio_cnn_forward.1} parent=11 // pred_fallthru
          _
        // Predicated region
        $region21: #{audio_cnn_forward.1} parent=11 // pred_check
          %p286 = pneg %p134
        $region22: #{audio_cnn_forward.1} parent=11 // pred_check_branch
          %288 = sbr.rel (%p286) target = $region24
        $region23: #{audio_cnn_forward.1} parent=11 // pred_region
          _
        $region24: #{audio_cnn_forward.1} parent=11 // pred_fallthru
          _
        // Predicated region
        $region25: #{audio_cnn_forward.1} parent=11 // pred_check
          %p289 = pneg %p155
        $region26: #{audio_cnn_forward.1} parent=11 // pred_check_branch
          %291 = sbr.rel (%p289) target = $region28
        $region27: #{audio_cnn_forward.1} parent=11 // pred_region
          _
        $region28: #{audio_cnn_forward.1} parent=11 // pred_fallthru
          _
        // Predicated region
        $region29: #{audio_cnn_forward.1} parent=11 // pred_check
          %p292 = pneg %p176
        $region30: #{audio_cnn_forward.1} parent=11 // pred_check_branch
          %294 = sbr.rel (%p292) target = $region32
        $region31: #{audio_cnn_forward.1} parent=11 // pred_region
          _
        $region32: #{audio_cnn_forward.1} parent=11 // pred_fallthru
          _
        // Predicated region
        $region33: #{audio_cnn_forward.1} parent=11 // pred_check
          %p295 = pneg %p197
        $region34: #{audio_cnn_forward.1} parent=11 // pred_check_branch
          %297 = sbr.rel (%p295) target = $region36
        $region35: #{audio_cnn_forward.1} parent=11 // pred_region
          _
        $region36: #{audio_cnn_forward.1} parent=11 // pred_fallthru
          _
        // Predicated region
        $region37: #{audio_cnn_forward.1} parent=11 // pred_check
          %p298 = pneg %p218
        $region38: #{audio_cnn_forward.1} parent=11 // pred_check_branch
          %300 = sbr.rel (%p298) target = $region40
        $region39: #{audio_cnn_forward.1} parent=11 // pred_region
          _
        $region40: #{audio_cnn_forward.1} parent=11 // pred_fallthru
          _
        // Predicated region
        $region41: #{audio_cnn_forward.1} parent=11 // pred_check
          %p301 = pneg %p239
        $region42: #{audio_cnn_forward.1} parent=11 // pred_check_branch
          %303 = sbr.rel (%p301) target = $region44
        $region43: #{audio_cnn_forward.1} parent=11 // pred_region
          _
        $region44: #{audio_cnn_forward.1} parent=11 // pred_fallthru
          _
      $region12: #{audio_cnn_forward.1} parent=5 // pred_fallthru
        _
      %p304 = scmp.lt.s32.totalorder %s19, 2
      // Predicated region
      $region45: #{audio_cnn_forward.1} parent=5 // pred_check
        %p305 = pneg %p304
      $region46: #{audio_cnn_forward.1} parent=5 // pred_check_branch
        %307 = sbr.rel (%p305) target = $region48
      $region47: #{audio_cnn_forward.1} parent=5 // pred_region
        // Predicated region
        $region49: #{audio_cnn_forward.1} parent=47 // pred_check
          %p308 = pneg %p39
        $region50: #{audio_cnn_forward.1} parent=47 // pred_check_branch
          %310 = sbr.rel (%p308) target = $region52
        $region51: #{audio_cnn_forward.1} parent=47 // pred_region
          %s311 = smul.u32 8, %s19
          %p312 = scmp.lt.s32.totalorder %s311, 15
          %s313 = scalar_select %p312, %s311, 15
          %s314 = smul.addr %s313, 4
          %s315 = smul.addr %s314, 8
          %s316 = scalar_lea.vmem %s0, %s315
          %s317 = smul.u32 8, %s19
        $region52: #{audio_cnn_forward.1} parent=47 // pred_fallthru
          _
        // Predicated region
        $region53: #{audio_cnn_forward.1} parent=47 // pred_check
          %p318 = pneg %p65
        $region54: #{audio_cnn_forward.1} parent=47 // pred_check_branch
          %320 = sbr.rel (%p318) target = $region56
        $region55: #{audio_cnn_forward.1} parent=47 // pred_region
          %s321 = smul.u32 8, %s19
          %p322 = scmp.lt.s32.totalorder %s321, 15
          %s323 = scalar_select %p322, %s321, 15
          %s324 = smul.addr %s323, 4
          %s325 = smul.addr %s324, 8
          %s326 = scalar_lea.vmem %s1, %s325
          %s327 = smul.u32 8, %s19
        $region56: #{audio_cnn_forward.1} parent=47 // pred_fallthru
          _
      $region48: #{audio_cnn_forward.1} parent=5 // pred_fallthru
        _
      %p328 = scmp.le.s32.totalorder 1, %s19
      %p329 = scmp.lt.s32.totalorder %s19, 3
      %p330 = pnand %p328, %p329
      %p331 = pneg %p330
      // Predicated region
      $region57: #{audio_cnn_forward.1} parent=5 // pred_check
        _
      $region58: #{audio_cnn_forward.1} parent=5 // pred_check_branch
        %333 = sbr.rel (%p330) target = $region60
      $region59: #{audio_cnn_forward.1} parent=5 // pred_region
        %s334 = ssub.s32 %s19, 1
        %s335 = smul.u32 8, %s24
        %p336 = scmp.lt.s32.totalorder %s335, 15
        %s337 = scalar_select %p336, %s335, 15
        %s338 = smul.addr %s337, 4
        %s339 = smul.addr %s338, 8
        %s340 = scalar_lea.vmem %s0, %s339
        %p341 = pneg %p45
        %p342 = pneg %p42
        %s343 = smul.u32 8, %s24
        %p344 = scmp.lt.s32.totalorder %s343, 15
        %s345 = scalar_select %p344, %s343, 15
        %s346 = smul.addr %s345, 4
        %s347 = smul.addr %s346, 8
        %s348 = scalar_lea.vmem %s1, %s347
        %p349 = pneg %p71
        %p350 = pneg %p68
        %p351 = pneg %p92
        %p352 = pneg %p89
        %p353 = pneg %p113
        %p354 = pneg %p110
        %p355 = pneg %p134
        %p356 = pneg %p131
        %p357 = pneg %p155
        %p358 = pneg %p152
        %p359 = pneg %p176
        %p360 = pneg %p173
        %p361 = pneg %p197
        %p362 = pneg %p194
        %p363 = pneg %p218
        %p364 = pneg %p215
        %p365 = pneg %p239
        %p366 = pneg %p236
        %p367 = pneg %p265
        %p368 = pneg %p262
        %s369 = sand.u32 %s252, 1
        %s370 = scalar_lea.sflag [#allocation10], %s369
        %s371 = sand.u32 %s252, 1
        %s372 = scalar_lea.vmem [#allocation9], %s371
        %s373 = smul.u32 8, %s24
        %p374 = scmp.lt.s32.totalorder %s373, 15
        %s375 = scalar_select %p374, %s373, 15
        %s376 = smul.addr %s375, 4
        %s377 = smul.addr %s376, 8
        %s378 = scalar_lea.vmem %s0, %s377
        %s379 = smul.u32 8, %s24
        %s380 = smul.u32 8, %s24
        %p381 = scmp.lt.s32.totalorder %s380, 15
        %s382 = scalar_select %p381, %s380, 15
        %s383 = smul.addr %s382, 4
        %s384 = smul.addr %s383, 8
        %s385 = scalar_lea.vmem %s1, %s384
        %s386 = smul.u32 8, %s24
        %388 = vst [vmem:[#allocation2 + $0x100] sm:$0xff] 0.0
        %389 = vst [vmem:[#allocation2 + $0x108] sm:$0xff] 0.0
        %390 = vst [vmem:[#allocation2 + $0x110] sm:$0xff] 0.0
        %391 = vst [vmem:[#allocation2 + $0x118] sm:$0xff] 0.0
        %392 = vst [vmem:[#allocation2 + $0x120] sm:$0xff] 0.0
        %393 = vst [vmem:[#allocation2 + $0x128] sm:$0xff] 0.0
        %394 = vst [vmem:[#allocation2 + $0x130] sm:$0xff] 0.0
        %395 = vst [vmem:[#allocation2 + $0x138] sm:$0xff] 0.0
        %vm396 = vcmask 261120
        %397 = vst.msk [vmem:[#allocation3 + $0x40] sm:$0xff] %vm396, 0.0
        %vm398 = vcmask 523264
        %399 = vst.msk [vmem:[#allocation6 + $0x8] sm:$0xff] %vm398, 0.0
        %400 = vst [vmem:[#allocation5] sm:$0xf0] 0.0
        %401 = vst [vmem:[#allocation5 + $0x8] sm:$0xf0] 0.0
        %402 = vst [vmem:[#allocation5 + $0x10] sm:$0xf0] 0.0
        %403 = vst [vmem:[#allocation5 + $0x18] sm:$0xf0] 0.0
        %v404 = vld [vmem:[%s378] sm:$0xff]
        %v405 = vld [vmem:[%s378 + $0x8] sm:$0xff]
        %v406 = vld [vmem:[%s378 + $0x10] sm:$0xff]
        %v407 = vld [vmem:[%s378 + $0x18] sm:$0xff]
        %v408 = vld [vmem:[%s378 + $0x20] sm:$0xff]
        %v409 = vld [vmem:[%s378 + $0x28] sm:$0xff]
        %v410 = vld [vmem:[%s378 + $0x30] sm:$0xff]
        %v411 = vld [vmem:[%s378 + $0x38] sm:$0xff]
        %v412 = vld [vmem:[%s385] sm:$0xff]
        %v413 = vld [vmem:[%s385 + $0x8] sm:$0xff]
        %v414 = vld [vmem:[%s385 + $0x10] sm:$0xff]
        %v415 = vld [vmem:[%s385 + $0x18] sm:$0xff]
        %v416 = vld [vmem:[%s385 + $0x20] sm:$0xff]
        %v417 = vld [vmem:[%s385 + $0x28] sm:$0xff]
        %v418 = vld [vmem:[%s385 + $0x30] sm:$0xff]
        %v419 = vld [vmem:[%s385 + $0x38] sm:$0xff]
        %v420 = vmul.f32 %v404, 1.442695
        %v421 = vpow.pop %v420
        %v422 = vmul.f32 %v405, 1.442695
        %v423 = vpow.pop %v422
        %v424 = vmul.f32 %v406, 1.442695
        %v425 = vpow.pop %v424
        %v426 = vmul.f32 %v407, 1.442695
        %v427 = vpow.pop %v426
        %v428 = vmul.f32 %v408, 1.442695
        %v429 = vpow.pop %v428
        %v430 = vmul.f32 %v409, 1.442695
        %v431 = vpow.pop %v430
        %v432 = vmul.f32 %v410, 1.442695
        %v433 = vpow.pop %v432
        %v434 = vmul.f32 %v411, 1.442695
        %v435 = vpow.pop %v434
        %v436 = vsub.f32 %v421, 1.0
        %v437 = vsub.f32 %v423, 1.0
        %v438 = vsub.f32 %v425, 1.0
        %v439 = vsub.f32 %v427, 1.0
        %v440 = vsub.f32 %v429, 1.0
        %v441 = vsub.f32 %v431, 1.0
        %v442 = vsub.f32 %v433, 1.0
        %v443 = vsub.f32 %v435, 1.0
        %v444 = vmul.f32 %v436, %v412
        %v445 = vmul.f32 %v437, %v413
        %v446 = vmul.f32 %v438, %v414
        %v447 = vmul.f32 %v439, %v415
        %v448 = vmul.f32 %v440, %v416
        %v449 = vmul.f32 %v441, %v417
        %v450 = vmul.f32 %v442, %v418
        %v451 = vmul.f32 %v443, %v419
        %v452 = vmax.f32 %v444, 0.0
        %v453 = vmax.f32 %v445, 0.0
        %v454 = vmax.f32 %v446, 0.0
        %v455 = vmax.f32 %v447, 0.0
        %v456 = vmax.f32 %v448, 0.0
        %v457 = vmax.f32 %v449, 0.0
        %v458 = vmax.f32 %v450, 0.0
        %v459 = vmax.f32 %v451, 0.0
        %v460 = vadd.f32 %v452, 1.0
        %v461 = vlog2.pop %v460
        %v462 = vmul.f32 %v461, 0.6931472
        %v463 = vmul.f32 -0.5, %v452
        %v464 = vadd.f32 %v463, 1.0
        %v465 = vmul.f32 %v464, %v452
        %v466 = vand.u32 2147483647, %v452
        %vm467 = vcmp.lt.f32.partialorder %v466, 0.0004427343
        %v468 = vsel %vm467, %v465, %v462
        %v469 = vadd.f32 %v453, 1.0
        %v470 = vlog2.pop %v469
        %v471 = vmul.f32 %v470, 0.6931472
        %v472 = vmul.f32 -0.5, %v453
        %v473 = vadd.f32 %v472, 1.0
        %v474 = vmul.f32 %v473, %v453
        %v475 = vand.u32 2147483647, %v453
        %vm476 = vcmp.lt.f32.partialorder %v475, 0.0004427343
        %v477 = vsel %vm476, %v474, %v471
        %v478 = vadd.f32 %v454, 1.0
        %v479 = vlog2.pop %v478
        %v480 = vmul.f32 %v479, 0.6931472
        %v481 = vmul.f32 -0.5, %v454
        %v482 = vadd.f32 %v481, 1.0
        %v483 = vmul.f32 %v482, %v454
        %v484 = vand.u32 2147483647, %v454
        %vm485 = vcmp.lt.f32.partialorder %v484, 0.0004427343
        %v486 = vsel %vm485, %v483, %v480
        %v487 = vadd.f32 %v455, 1.0
        %v488 = vlog2.pop %v487
        %v489 = vmul.f32 %v488, 0.6931472
        %v490 = vmul.f32 -0.5, %v455
        %v491 = vadd.f32 %v490, 1.0
        %v492 = vmul.f32 %v491, %v455
        %v493 = vand.u32 2147483647, %v455
        %vm494 = vcmp.lt.f32.partialorder %v493, 0.0004427343
        %v495 = vsel %vm494, %v492, %v489
        %v496 = vadd.f32 %v456, 1.0
        %v497 = vlog2.pop %v496
        %v498 = vmul.f32 %v497, 0.6931472
        %v499 = vmul.f32 -0.5, %v456
        %v500 = vadd.f32 %v499, 1.0
        %v501 = vmul.f32 %v500, %v456
        %v502 = vand.u32 2147483647, %v456
        %vm503 = vcmp.lt.f32.partialorder %v502, 0.0004427343
        %v504 = vsel %vm503, %v501, %v498
        %v505 = vadd.f32 %v457, 1.0
        %v506 = vlog2.pop %v505
        %v507 = vmul.f32 %v506, 0.6931472
        %v508 = vmul.f32 -0.5, %v457
        %v509 = vadd.f32 %v508, 1.0
        %v510 = vmul.f32 %v509, %v457
        %v511 = vand.u32 2147483647, %v457
        %vm512 = vcmp.lt.f32.partialorder %v511, 0.0004427343
        %v513 = vsel %vm512, %v510, %v507
        %v514 = vadd.f32 %v458, 1.0
        %v515 = vlog2.pop %v514
        %v516 = vmul.f32 %v515, 0.6931472
        %v517 = vmul.f32 -0.5, %v458
        %v518 = vadd.f32 %v517, 1.0
        %v519 = vmul.f32 %v518, %v458
        %v520 = vand.u32 2147483647, %v458
        %vm521 = vcmp.lt.f32.partialorder %v520, 0.0004427343
        %v522 = vsel %vm521, %v519, %v516
        %v523 = vadd.f32 %v459, 1.0
        %v524 = vlog2.pop %v523
        %v525 = vmul.f32 %v524, 0.6931472
        %v526 = vmul.f32 -0.5, %v459
        %v527 = vadd.f32 %v526, 1.0
        %v528 = vmul.f32 %v527, %v459
        %v529 = vand.u32 2147483647, %v459
        %vm530 = vcmp.lt.f32.partialorder %v529, 0.0004427343
        %v531 = vsel %vm530, %v528, %v525
        %532 = vst [vmem:[#allocation2] sm:$0xff] %v468
        %533 = vst [vmem:[#allocation2 + $0x8] sm:$0xff] %v477
        %534 = vst [vmem:[#allocation2 + $0x10] sm:$0xff] %v486
        %535 = vst [vmem:[#allocation2 + $0x18] sm:$0xff] %v495
        %536 = vst [vmem:[#allocation2 + $0x20] sm:$0xff] %v504
        %537 = vst [vmem:[#allocation2 + $0x28] sm:$0xff] %v513
        %538 = vst [vmem:[#allocation2 + $0x30] sm:$0xff] %v522
        %539 = vst [vmem:[#allocation2 + $0x38] sm:$0xff] %v531
        %v540 = vld [vmem:[%s378 + $0x40] sm:$0xff]
        %v541 = vld [vmem:[%s378 + $0x48] sm:$0xff]
        %v542 = vld [vmem:[%s378 + $0x50] sm:$0xff]
        %v543 = vld [vmem:[%s378 + $0x58] sm:$0xff]
        %v544 = vld [vmem:[%s378 + $0x60] sm:$0xff]
        %v545 = vld [vmem:[%s378 + $0x68] sm:$0xff]
        %v546 = vld [vmem:[%s378 + $0x70] sm:$0xff]
        %v547 = vld [vmem:[%s378 + $0x78] sm:$0xff]
        %v548 = vld [vmem:[%s385 + $0x40] sm:$0xff]
        %v549 = vld [vmem:[%s385 + $0x48] sm:$0xff]
        %v550 = vld [vmem:[%s385 + $0x50] sm:$0xff]
        %v551 = vld [vmem:[%s385 + $0x58] sm:$0xff]
        %v552 = vld [vmem:[%s385 + $0x60] sm:$0xff]
        %v553 = vld [vmem:[%s385 + $0x68] sm:$0xff]
        %v554 = vld [vmem:[%s385 + $0x70] sm:$0xff]
        %v555 = vld [vmem:[%s385 + $0x78] sm:$0xff]
        %v556 = vmul.f32 %v540, 1.442695
        %v557 = vpow.pop %v556
        %v558 = vmul.f32 %v541, 1.442695
        %v559 = vpow.pop %v558
        %v560 = vmul.f32 %v542, 1.442695
        %v561 = vpow.pop %v560
        %v562 = vmul.f32 %v543, 1.442695
        %v563 = vpow.pop %v562
        %v564 = vmul.f32 %v544, 1.442695
        %v565 = vpow.pop %v564
        %v566 = vmul.f32 %v545, 1.442695
        %v567 = vpow.pop %v566
        %v568 = vmul.f32 %v546, 1.442695
        %v569 = vpow.pop %v568
        %v570 = vmul.f32 %v547, 1.442695
        %v571 = vpow.pop %v570
        %v572 = vsub.f32 %v557, 1.0
        %v573 = vsub.f32 %v559, 1.0
        %v574 = vsub.f32 %v561, 1.0
        %v575 = vsub.f32 %v563, 1.0
        %v576 = vsub.f32 %v565, 1.0
        %v577 = vsub.f32 %v567, 1.0
        %v578 = vsub.f32 %v569, 1.0
        %v579 = vsub.f32 %v571, 1.0
        %v580 = vmul.f32 %v572, %v548
        %v581 = vmul.f32 %v573, %v549
        %v582 = vmul.f32 %v574, %v550
        %v583 = vmul.f32 %v575, %v551
        %v584 = vmul.f32 %v576, %v552
        %v585 = vmul.f32 %v577, %v553
        %v586 = vmul.f32 %v578, %v554
        %v587 = vmul.f32 %v579, %v555
        %v588 = vmax.f32 %v580, 0.0
        %v589 = vmax.f32 %v581, 0.0
        %v590 = vmax.f32 %v582, 0.0
        %v591 = vmax.f32 %v583, 0.0
        %v592 = vmax.f32 %v584, 0.0
        %v593 = vmax.f32 %v585, 0.0
        %v594 = vmax.f32 %v586, 0.0
        %v595 = vmax.f32 %v587, 0.0
        %v596 = vadd.f32 %v588, 1.0
        %v597 = vlog2.pop %v596
        %v598 = vmul.f32 %v597, 0.6931472
        %v599 = vmul.f32 -0.5, %v588
        %v600 = vadd.f32 %v599, 1.0
        %v601 = vmul.f32 %v600, %v588
        %v602 = vand.u32 2147483647, %v588
        %vm603 = vcmp.lt.f32.partialorder %v602, 0.0004427343
        %v604 = vsel %vm603, %v601, %v598
        %v605 = vadd.f32 %v589, 1.0
        %v606 = vlog2.pop %v605
        %v607 = vmul.f32 %v606, 0.6931472
        %v608 = vmul.f32 -0.5, %v589
        %v609 = vadd.f32 %v608, 1.0
        %v610 = vmul.f32 %v609, %v589
        %v611 = vand.u32 2147483647, %v589
        %vm612 = vcmp.lt.f32.partialorder %v611, 0.0004427343
        %v613 = vsel %vm612, %v610, %v607
        %v614 = vadd.f32 %v590, 1.0
        %v615 = vlog2.pop %v614
        %v616 = vmul.f32 %v615, 0.6931472
        %v617 = vmul.f32 -0.5, %v590
        %v618 = vadd.f32 %v617, 1.0
        %v619 = vmul.f32 %v618, %v590
        %v620 = vand.u32 2147483647, %v590
        %vm621 = vcmp.lt.f32.partialorder %v620, 0.0004427343
        %v622 = vsel %vm621, %v619, %v616
        %v623 = vadd.f32 %v591, 1.0
        %v624 = vlog2.pop %v623
        %v625 = vmul.f32 %v624, 0.6931472
        %v626 = vmul.f32 -0.5, %v591
        %v627 = vadd.f32 %v626, 1.0
        %v628 = vmul.f32 %v627, %v591
        %v629 = vand.u32 2147483647, %v591
        %vm630 = vcmp.lt.f32.partialorder %v629, 0.0004427343
        %v631 = vsel %vm630, %v628, %v625
        %v632 = vadd.f32 %v592, 1.0
        %v633 = vlog2.pop %v632
        %v634 = vmul.f32 %v633, 0.6931472
        %v635 = vmul.f32 -0.5, %v592
        %v636 = vadd.f32 %v635, 1.0
        %v637 = vmul.f32 %v636, %v592
        %v638 = vand.u32 2147483647, %v592
        %vm639 = vcmp.lt.f32.partialorder %v638, 0.0004427343
        %v640 = vsel %vm639, %v637, %v634
        %v641 = vadd.f32 %v593, 1.0
        %v642 = vlog2.pop %v641
        %v643 = vmul.f32 %v642, 0.6931472
        %v644 = vmul.f32 -0.5, %v593
        %v645 = vadd.f32 %v644, 1.0
        %v646 = vmul.f32 %v645, %v593
        %v647 = vand.u32 2147483647, %v593
        %vm648 = vcmp.lt.f32.partialorder %v647, 0.0004427343
        %v649 = vsel %vm648, %v646, %v643
        %v650 = vadd.f32 %v594, 1.0
        %v651 = vlog2.pop %v650
        %v652 = vmul.f32 %v651, 0.6931472
        %v653 = vmul.f32 -0.5, %v594
        %v654 = vadd.f32 %v653, 1.0
        %v655 = vmul.f32 %v654, %v594
        %v656 = vand.u32 2147483647, %v594
        %vm657 = vcmp.lt.f32.partialorder %v656, 0.0004427343
        %v658 = vsel %vm657, %v655, %v652
        %v659 = vadd.f32 %v595, 1.0
        %v660 = vlog2.pop %v659
        %v661 = vmul.f32 %v660, 0.6931472
        %v662 = vmul.f32 -0.5, %v595
        %v663 = vadd.f32 %v662, 1.0
        %v664 = vmul.f32 %v663, %v595
        %v665 = vand.u32 2147483647, %v595
        %vm666 = vcmp.lt.f32.partialorder %v665, 0.0004427343
        %v667 = vsel %vm666, %v664, %v661
        %668 = vst [vmem:[#allocation2 + $0x40] sm:$0xff] %v604
        %669 = vst [vmem:[#allocation2 + $0x48] sm:$0xff] %v613
        %670 = vst [vmem:[#allocation2 + $0x50] sm:$0xff] %v622
        %671 = vst [vmem:[#allocation2 + $0x58] sm:$0xff] %v631
        %672 = vst [vmem:[#allocation2 + $0x60] sm:$0xff] %v640
        %673 = vst [vmem:[#allocation2 + $0x68] sm:$0xff] %v649
        %674 = vst [vmem:[#allocation2 + $0x70] sm:$0xff] %v658
        %675 = vst [vmem:[#allocation2 + $0x78] sm:$0xff] %v667
        %v676 = vld [vmem:[%s378 + $0x80] sm:$0xff]
        %v677 = vld [vmem:[%s378 + $0x88] sm:$0xff]
        %v678 = vld [vmem:[%s378 + $0x90] sm:$0xff]
        %v679 = vld [vmem:[%s378 + $0x98] sm:$0xff]
        %v680 = vld [vmem:[%s378 + $0xa0] sm:$0xff]
        %v681 = vld [vmem:[%s378 + $0xa8] sm:$0xff]
        %v682 = vld [vmem:[%s378 + $0xb0] sm:$0xff]
        %v683 = vld [vmem:[%s378 + $0xb8] sm:$0xff]
        %v684 = vld [vmem:[%s385 + $0x80] sm:$0xff]
        %v685 = vld [vmem:[%s385 + $0x88] sm:$0xff]
        %v686 = vld [vmem:[%s385 + $0x90] sm:$0xff]
        %v687 = vld [vmem:[%s385 + $0x98] sm:$0xff]
        %v688 = vld [vmem:[%s385 + $0xa0] sm:$0xff]
        %v689 = vld [vmem:[%s385 + $0xa8] sm:$0xff]
        %v690 = vld [vmem:[%s385 + $0xb0] sm:$0xff]
        %v691 = vld [vmem:[%s385 + $0xb8] sm:$0xff]
        %v692 = vmul.f32 %v676, 1.442695
        %v693 = vpow.pop %v692
        %v694 = vmul.f32 %v677, 1.442695
        %v695 = vpow.pop %v694
        %v696 = vmul.f32 %v678, 1.442695
        %v697 = vpow.pop %v696
        %v698 = vmul.f32 %v679, 1.442695
        %v699 = vpow.pop %v698
        %v700 = vmul.f32 %v680, 1.442695
        %v701 = vpow.pop %v700
        %v702 = vmul.f32 %v681, 1.442695
        %v703 = vpow.pop %v702
        %v704 = vmul.f32 %v682, 1.442695
        %v705 = vpow.pop %v704
        %v706 = vmul.f32 %v683, 1.442695
        %v707 = vpow.pop %v706
        %v708 = vsub.f32 %v693, 1.0
        %v709 = vsub.f32 %v695, 1.0
        %v710 = vsub.f32 %v697, 1.0
        %v711 = vsub.f32 %v699, 1.0
        %v712 = vsub.f32 %v701, 1.0
        %v713 = vsub.f32 %v703, 1.0
        %v714 = vsub.f32 %v705, 1.0
        %v715 = vsub.f32 %v707, 1.0
        %v716 = vmul.f32 %v708, %v684
        %v717 = vmul.f32 %v709, %v685
        %v718 = vmul.f32 %v710, %v686
        %v719 = vmul.f32 %v711, %v687
        %v720 = vmul.f32 %v712, %v688
        %v721 = vmul.f32 %v713, %v689
        %v722 = vmul.f32 %v714, %v690
        %v723 = vmul.f32 %v715, %v691
        %v724 = vmax.f32 %v716, 0.0
        %v725 = vmax.f32 %v717, 0.0
        %v726 = vmax.f32 %v718, 0.0
        %v727 = vmax.f32 %v719, 0.0
        %v728 = vmax.f32 %v720, 0.0
        %v729 = vmax.f32 %v721, 0.0
        %v730 = vmax.f32 %v722, 0.0
        %v731 = vmax.f32 %v723, 0.0
        %v732 = vadd.f32 %v724, 1.0
        %v733 = vlog2.pop %v732
        %v734 = vmul.f32 %v733, 0.6931472
        %v735 = vmul.f32 -0.5, %v724
        %v736 = vadd.f32 %v735, 1.0
        %v737 = vmul.f32 %v736, %v724
        %v738 = vand.u32 2147483647, %v724
        %vm739 = vcmp.lt.f32.partialorder %v738, 0.0004427343
        %v740 = vsel %vm739, %v737, %v734
        %v741 = vadd.f32 %v725, 1.0
        %v742 = vlog2.pop %v741
        %v743 = vmul.f32 %v742, 0.6931472
        %v744 = vmul.f32 -0.5, %v725
        %v745 = vadd.f32 %v744, 1.0
        %v746 = vmul.f32 %v745, %v725
        %v747 = vand.u32 2147483647, %v725
        %vm748 = vcmp.lt.f32.partialorder %v747, 0.0004427343
        %v749 = vsel %vm748, %v746, %v743
        %v750 = vadd.f32 %v726, 1.0
        %v751 = vlog2.pop %v750
        %v752 = vmul.f32 %v751, 0.6931472
        %v753 = vmul.f32 -0.5, %v726
        %v754 = vadd.f32 %v753, 1.0
        %v755 = vmul.f32 %v754, %v726
        %v756 = vand.u32 2147483647, %v726
        %vm757 = vcmp.lt.f32.partialorder %v756, 0.0004427343
        %v758 = vsel %vm757, %v755, %v752
        %v759 = vadd.f32 %v727, 1.0
        %v760 = vlog2.pop %v759
        %v761 = vmul.f32 %v760, 0.6931472
        %v762 = vmul.f32 -0.5, %v727
        %v763 = vadd.f32 %v762, 1.0
        %v764 = vmul.f32 %v763, %v727
        %v765 = vand.u32 2147483647, %v727
        %vm766 = vcmp.lt.f32.partialorder %v765, 0.0004427343
        %v767 = vsel %vm766, %v764, %v761
        %v768 = vadd.f32 %v728, 1.0
        %v769 = vlog2.pop %v768
        %v770 = vmul.f32 %v769, 0.6931472
        %v771 = vmul.f32 -0.5, %v728
        %v772 = vadd.f32 %v771, 1.0
        %v773 = vmul.f32 %v772, %v728
        %v774 = vand.u32 2147483647, %v728
        %vm775 = vcmp.lt.f32.partialorder %v774, 0.0004427343
        %v776 = vsel %vm775, %v773, %v770
        %v777 = vadd.f32 %v729, 1.0
        %v778 = vlog2.pop %v777
        %v779 = vmul.f32 %v778, 0.6931472
        %v780 = vmul.f32 -0.5, %v729
        %v781 = vadd.f32 %v780, 1.0
        %v782 = vmul.f32 %v781, %v729
        %v783 = vand.u32 2147483647, %v729
        %vm784 = vcmp.lt.f32.partialorder %v783, 0.0004427343
        %v785 = vsel %vm784, %v782, %v779
        %v786 = vadd.f32 %v730, 1.0
        %v787 = vlog2.pop %v786
        %v788 = vmul.f32 %v787, 0.6931472
        %v789 = vmul.f32 -0.5, %v730
        %v790 = vadd.f32 %v789, 1.0
        %v791 = vmul.f32 %v790, %v730
        %v792 = vand.u32 2147483647, %v730
        %vm793 = vcmp.lt.f32.partialorder %v792, 0.0004427343
        %v794 = vsel %vm793, %v791, %v788
        %v795 = vadd.f32 %v731, 1.0
        %v796 = vlog2.pop %v795
        %v797 = vmul.f32 %v796, 0.6931472
        %v798 = vmul.f32 -0.5, %v731
        %v799 = vadd.f32 %v798, 1.0
        %v800 = vmul.f32 %v799, %v731
        %v801 = vand.u32 2147483647, %v731
        %vm802 = vcmp.lt.f32.partialorder %v801, 0.0004427343
        %v803 = vsel %vm802, %v800, %v797
        %804 = vst [vmem:[#allocation2 + $0x80] sm:$0xff] %v740
        %805 = vst [vmem:[#allocation2 + $0x88] sm:$0xff] %v749
        %806 = vst [vmem:[#allocation2 + $0x90] sm:$0xff] %v758
        %807 = vst [vmem:[#allocation2 + $0x98] sm:$0xff] %v767
        %808 = vst [vmem:[#allocation2 + $0xa0] sm:$0xff] %v776
        %809 = vst [vmem:[#allocation2 + $0xa8] sm:$0xff] %v785
        %810 = vst [vmem:[#allocation2 + $0xb0] sm:$0xff] %v794
        %811 = vst [vmem:[#allocation2 + $0xb8] sm:$0xff] %v803
        %v812 = vld [vmem:[%s378 + $0xc0] sm:$0xff]
        %v813 = vld [vmem:[%s378 + $0xc8] sm:$0xff]
        %v814 = vld [vmem:[%s378 + $0xd0] sm:$0xff]
        %v815 = vld [vmem:[%s378 + $0xd8] sm:$0xff]
        %v816 = vld [vmem:[%s378 + $0xe0] sm:$0xff]
        %v817 = vld [vmem:[%s378 + $0xe8] sm:$0xff]
        %v818 = vld [vmem:[%s378 + $0xf0] sm:$0xff]
        %v819 = vld [vmem:[%s378 + $0xf8] sm:$0xff]
        %v820 = vld [vmem:[%s385 + $0xc0] sm:$0xff]
        %v821 = vld [vmem:[%s385 + $0xc8] sm:$0xff]
        %v822 = vld [vmem:[%s385 + $0xd0] sm:$0xff]
        %v823 = vld [vmem:[%s385 + $0xd8] sm:$0xff]
        %v824 = vld [vmem:[%s385 + $0xe0] sm:$0xff]
        %v825 = vld [vmem:[%s385 + $0xe8] sm:$0xff]
        %v826 = vld [vmem:[%s385 + $0xf0] sm:$0xff]
        %v827 = vld [vmem:[%s385 + $0xf8] sm:$0xff]
        %v828 = vmul.f32 %v812, 1.442695
        %v829 = vpow.pop %v828
        %v830 = vmul.f32 %v813, 1.442695
        %v831 = vpow.pop %v830
        %v832 = vmul.f32 %v814, 1.442695
        %v833 = vpow.pop %v832
        %v834 = vmul.f32 %v815, 1.442695
        %v835 = vpow.pop %v834
        %v836 = vmul.f32 %v816, 1.442695
        %v837 = vpow.pop %v836
        %v838 = vmul.f32 %v817, 1.442695
        %v839 = vpow.pop %v838
        %v840 = vmul.f32 %v818, 1.442695
        %v841 = vpow.pop %v840
        %v842 = vmul.f32 %v819, 1.442695
        %v843 = vpow.pop %v842
        %v844 = vsub.f32 %v829, 1.0
        %v845 = vsub.f32 %v831, 1.0
        %v846 = vsub.f32 %v833, 1.0
        %v847 = vsub.f32 %v835, 1.0
        %v848 = vsub.f32 %v837, 1.0
        %v849 = vsub.f32 %v839, 1.0
        %v850 = vsub.f32 %v841, 1.0
        %v851 = vsub.f32 %v843, 1.0
        %v852 = vmul.f32 %v844, %v820
        %v853 = vmul.f32 %v845, %v821
        %v854 = vmul.f32 %v846, %v822
        %v855 = vmul.f32 %v847, %v823
        %v856 = vmul.f32 %v848, %v824
        %v857 = vmul.f32 %v849, %v825
        %v858 = vmul.f32 %v850, %v826
        %v859 = vmul.f32 %v851, %v827
        %v860 = vmax.f32 %v852, 0.0
        %v861 = vmax.f32 %v853, 0.0
        %v862 = vmax.f32 %v854, 0.0
        %v863 = vmax.f32 %v855, 0.0
        %v864 = vmax.f32 %v856, 0.0
        %v865 = vmax.f32 %v857, 0.0
        %v866 = vmax.f32 %v858, 0.0
        %v867 = vmax.f32 %v859, 0.0
        %v868 = vadd.f32 %v860, 1.0
        %v869 = vlog2.pop %v868
        %v870 = vmul.f32 %v869, 0.6931472
        %v871 = vmul.f32 -0.5, %v860
        %v872 = vadd.f32 %v871, 1.0
        %v873 = vmul.f32 %v872, %v860
        %v874 = vand.u32 2147483647, %v860
        %vm875 = vcmp.lt.f32.partialorder %v874, 0.0004427343
        %v876 = vsel %vm875, %v873, %v870
        %v877 = vadd.f32 %v861, 1.0
        %v878 = vlog2.pop %v877
        %v879 = vmul.f32 %v878, 0.6931472
        %v880 = vmul.f32 -0.5, %v861
        %v881 = vadd.f32 %v880, 1.0
        %v882 = vmul.f32 %v881, %v861
        %v883 = vand.u32 2147483647, %v861
        %vm884 = vcmp.lt.f32.partialorder %v883, 0.0004427343
        %v885 = vsel %vm884, %v882, %v879
        %v886 = vadd.f32 %v862, 1.0
        %v887 = vlog2.pop %v886
        %v888 = vmul.f32 %v887, 0.6931472
        %v889 = vmul.f32 -0.5, %v862
        %v890 = vadd.f32 %v889, 1.0
        %v891 = vmul.f32 %v890, %v862
        %v892 = vand.u32 2147483647, %v862
        %vm893 = vcmp.lt.f32.partialorder %v892, 0.0004427343
        %v894 = vsel %vm893, %v891, %v888
        %v895 = vadd.f32 %v863, 1.0
        %v896 = vlog2.pop %v895
        %v897 = vmul.f32 %v896, 0.6931472
        %v898 = vmul.f32 -0.5, %v863
        %v899 = vadd.f32 %v898, 1.0
        %v900 = vmul.f32 %v899, %v863
        %v901 = vand.u32 2147483647, %v863
        %vm902 = vcmp.lt.f32.partialorder %v901, 0.0004427343
        %v903 = vsel %vm902, %v900, %v897
        %v904 = vadd.f32 %v864, 1.0
        %v905 = vlog2.pop %v904
        %v906 = vmul.f32 %v905, 0.6931472
        %v907 = vmul.f32 -0.5, %v864
        %v908 = vadd.f32 %v907, 1.0
        %v909 = vmul.f32 %v908, %v864
        %v910 = vand.u32 2147483647, %v864
        %vm911 = vcmp.lt.f32.partialorder %v910, 0.0004427343
        %v912 = vsel %vm911, %v909, %v906
        %v913 = vadd.f32 %v865, 1.0
        %v914 = vlog2.pop %v913
        %v915 = vmul.f32 %v914, 0.6931472
        %v916 = vmul.f32 -0.5, %v865
        %v917 = vadd.f32 %v916, 1.0
        %v918 = vmul.f32 %v917, %v865
        %v919 = vand.u32 2147483647, %v865
        %vm920 = vcmp.lt.f32.partialorder %v919, 0.0004427343
        %v921 = vsel %vm920, %v918, %v915
        %v922 = vadd.f32 %v866, 1.0
        %v923 = vlog2.pop %v922
        %v924 = vmul.f32 %v923, 0.6931472
        %v925 = vmul.f32 -0.5, %v866
        %v926 = vadd.f32 %v925, 1.0
        %v927 = vmul.f32 %v926, %v866
        %v928 = vand.u32 2147483647, %v866
        %vm929 = vcmp.lt.f32.partialorder %v928, 0.0004427343
        %v930 = vsel %vm929, %v927, %v924
        %v931 = vadd.f32 %v867, 1.0
        %v932 = vlog2.pop %v931
        %v933 = vmul.f32 %v932, 0.6931472
        %v934 = vmul.f32 -0.5, %v867
        %v935 = vadd.f32 %v934, 1.0
        %v936 = vmul.f32 %v935, %v867
        %v937 = vand.u32 2147483647, %v867
        %vm938 = vcmp.lt.f32.partialorder %v937, 0.0004427343
        %v939 = vsel %vm938, %v936, %v933
        %940 = vst [vmem:[#allocation2 + $0xc0] sm:$0xff] %v876
        %941 = vst [vmem:[#allocation2 + $0xc8] sm:$0xff] %v885
        %942 = vst [vmem:[#allocation2 + $0xd0] sm:$0xff] %v894
        %943 = vst [vmem:[#allocation2 + $0xd8] sm:$0xff] %v903
        %944 = vst [vmem:[#allocation2 + $0xe0] sm:$0xff] %v912
        %945 = vst [vmem:[#allocation2 + $0xe8] sm:$0xff] %v921
        %946 = vst [vmem:[#allocation2 + $0xf0] sm:$0xff] %v930
        %947 = vst [vmem:[#allocation2 + $0xf8] sm:$0xff] %v939
        %v948 = vld [vmem:[#allocation2] sm:$0xff]
        %v949 = vld [vmem:[#allocation2 + $0x8] sm:$0xff]
        %v950 = vld [vmem:[#allocation2 + $0x10] sm:$0xff]
        %v951 = vld [vmem:[#allocation2 + $0x18] sm:$0xff]
        %v952 = vld [vmem:[#allocation2 + $0x20] sm:$0xff]
        %v953 = vld [vmem:[#allocation2 + $0x28] sm:$0xff]
        %v954 = vld [vmem:[#allocation2 + $0x30] sm:$0xff]
        %v955 = vld [vmem:[#allocation2 + $0x38] sm:$0xff]
        %v956 = vld [vmem:[#allocation2 + $0x40] sm:$0xff]
        %v957 = vld [vmem:[#allocation2 + $0x48] sm:$0xff]
        %v958 = vld [vmem:[#allocation2 + $0x50] sm:$0xff]
        %v959 = vld [vmem:[#allocation2 + $0x58] sm:$0xff]
        %v960 = vld [vmem:[#allocation2 + $0x60] sm:$0xff]
        %v961 = vld [vmem:[#allocation2 + $0x68] sm:$0xff]
        %v962 = vld [vmem:[#allocation2 + $0x70] sm:$0xff]
        %v963 = vld [vmem:[#allocation2 + $0x78] sm:$0xff]
        %v964 = vld [vmem:[#allocation2 + $0x80] sm:$0xff]
        %v965 = vld [vmem:[#allocation2 + $0x88] sm:$0xff]
        %v966 = vld [vmem:[#allocation2 + $0x90] sm:$0xff]
        %v967 = vld [vmem:[#allocation2 + $0x98] sm:$0xff]
        %v968 = vld [vmem:[#allocation2 + $0xa0] sm:$0xff]
        %v969 = vld [vmem:[#allocation2 + $0xa8] sm:$0xff]
        %v970 = vld [vmem:[#allocation2 + $0xb0] sm:$0xff]
        %v971 = vld [vmem:[#allocation2 + $0xb8] sm:$0xff]
        %v972 = vld [vmem:[#allocation2 + $0xc0] sm:$0xff]
        %v973 = vld [vmem:[#allocation2 + $0xc8] sm:$0xff]
        %v974 = vld [vmem:[#allocation2 + $0xd0] sm:$0xff]
        %v975 = vld [vmem:[#allocation2 + $0xd8] sm:$0xff]
        %v976 = vld [vmem:[#allocation2 + $0xe0] sm:$0xff]
        %v977 = vld [vmem:[#allocation2 + $0xe8] sm:$0xff]
        %v978 = vld [vmem:[#allocation2 + $0xf0] sm:$0xff]
        %v979 = vld [vmem:[#allocation2 + $0xf8] sm:$0xff]
        %v980 = vld [vmem:[%s2] sm:$0xf]
        %v981 = vld [vmem:[%s2 + $0x4] sm:$0xf]
        %v982 = vld [vmem:[%s2 + $0x8] sm:$0xf]
        %v983 = vld [vmem:[%s2 + $0xc] sm:$0xf]
        %v984 = vld [vmem:[%s2 + $0x10] sm:$0xf]
        %v985 = vld [vmem:[%s2 + $0x14] sm:$0xf]
        %v986 = vld [vmem:[%s2 + $0x18] sm:$0xf]
        %v987 = vld [vmem:[%s2 + $0x1c] sm:$0xf]
        %v988 = vld [vmem:[%s2 + $0x20] sm:$0xf]
        %v989 = vld [vmem:[%s2 + $0x24] sm:$0xf]
        %v990 = vld [vmem:[%s2 + $0x28] sm:$0xf]
        %v991 = vld [vmem:[%s2 + $0x2c] sm:$0xf]
        %v992 = vld [vmem:[%s2 + $0x30] sm:$0xf]
        %v993 = vld [vmem:[%s2 + $0x34] sm:$0xf]
        %v994 = vld [vmem:[%s2 + $0x38] sm:$0xf]
        %v995 = vld [vmem:[%s2 + $0x3c] sm:$0xf]
        %v996 = vld [vmem:[%s2 + $0x40] sm:$0xf]
        %v997 = vld [vmem:[%s2 + $0x44] sm:$0xf]
        %v998 = vld [vmem:[%s2 + $0x48] sm:$0xf]
        %v999 = vld [vmem:[%s2 + $0x4c] sm:$0xf]
        %v1000 = vld [vmem:[%s2 + $0x50] sm:$0xf]
        %v1001 = vld [vmem:[%s2 + $0x54] sm:$0xf]
        %v1002 = vld [vmem:[%s2 + $0x58] sm:$0xf]
        %v1003 = vld [vmem:[%s2 + $0x5c] sm:$0xf]
        %v1004 = vld [vmem:[%s2 + $0x60] sm:$0xf]
        %v1005 = vld [vmem:[%s2 + $0x64] sm:$0xf]
        %v1006 = vld [vmem:[%s2 + $0x68] sm:$0xf]
        %v1007 = vld [vmem:[%s2 + $0x6c] sm:$0xf]
        %v1008 = vld [vmem:[%s2 + $0x70] sm:$0xf]
        %v1009 = vld [vmem:[%s2 + $0x74] sm:$0xf]
        %v1010 = vld [vmem:[%s2 + $0x78] sm:$0xf]
        %v1011 = vld [vmem:[%s2 + $0x7c] sm:$0xf]
        %v1012 = vld [vmem:[%s2 + $0x80] sm:$0xf]
        %v1013 = vld [vmem:[%s2 + $0x84] sm:$0xf]
        %v1014 = vld [vmem:[%s2 + $0x88] sm:$0xf]
        %v1015 = vld [vmem:[%s2 + $0x8c] sm:$0xf]
        %v1016 = vld [vmem:[%s2 + $0x90] sm:$0xf]
        %v1017 = vld [vmem:[%s2 + $0x94] sm:$0xf]
        %v1018 = vld [vmem:[%s2 + $0x98] sm:$0xf]
        %v1019 = vld [vmem:[%s2 + $0x9c] sm:$0xf]
        %v1020 = vld [vmem:[%s2 + $0xa0] sm:$0xf]
        %v1021 = vld [vmem:[%s2 + $0xa4] sm:$0xf]
        %v1022 = vld [vmem:[%s2 + $0xa8] sm:$0xf]
        %v1023 = vld [vmem:[%s2 + $0xac] sm:$0xf]
        %v1024 = vld [vmem:[%s2 + $0xb0] sm:$0xf]
        %v1025 = vld [vmem:[%s2 + $0xb4] sm:$0xf]
        %v1026 = vld [vmem:[%s2 + $0xb8] sm:$0xf]
        %v1027 = vld [vmem:[%s2 + $0xbc] sm:$0xf]
        %v1028 = vld [vmem:[%s2 + $0xc0] sm:$0xf]
        %v1029 = vld [vmem:[%s2 + $0xc4] sm:$0xf]
        %v1030 = vld [vmem:[%s2 + $0xc8] sm:$0xf]
        %v1031 = vld [vmem:[%s2 + $0xcc] sm:$0xf]
        %v1032 = vld [vmem:[%s2 + $0xd0] sm:$0xf]
        %v1033 = vld [vmem:[%s2 + $0xd4] sm:$0xf]
        %v1034 = vld [vmem:[%s2 + $0xd8] sm:$0xf]
        %v1035 = vld [vmem:[%s2 + $0xdc] sm:$0xf]
        %v1036 = vld [vmem:[%s2 + $0xe0] sm:$0xf]
        %v1037 = vld [vmem:[%s2 + $0xe4] sm:$0xf]
        %v1038 = vld [vmem:[%s2 + $0xe8] sm:$0xf]
        %v1039 = vld [vmem:[%s2 + $0xec] sm:$0xf]
        %v1040 = vld [vmem:[%s2 + $0xf0] sm:$0xf]
        %v1041 = vld [vmem:[%s2 + $0xf4] sm:$0xf]
        %v1042 = vld [vmem:[%s2 + $0xf8] sm:$0xf]
        %v1043 = vld [vmem:[%s2 + $0xfc] sm:$0xf]
        %v1044 = vpack.c.bf16 %v952, %v948
        %v1045 = vpack.c.bf16 %v953, %v949
        %v1046 = vpack.c.bf16 %v954, %v950
        %v1047 = vpack.c.bf16 %v955, %v951
        %v1048 = vpack.c.bf16 %v960, %v956
        %v1049 = vpack.c.bf16 %v961, %v957
        %v1050 = vpack.c.bf16 %v962, %v958
        %v1051 = vpack.c.bf16 %v963, %v959
        %v1052 = vpack.c.bf16 %v968, %v964
        %v1053 = vpack.c.bf16 %v969, %v965
        %v1054 = vpack.c.bf16 %v970, %v966
        %v1055 = vpack.c.bf16 %v971, %v967
        %v1056 = vpack.c.bf16 %v976, %v972
        %v1057 = vpack.c.bf16 %v977, %v973
        %v1058 = vpack.c.bf16 %v978, %v974
        %v1059 = vpack.c.bf16 %v979, %v975
        %v1060 = vld [vmem:[#allocation2] sm:$0xfe]
        %v1061 = vld [vmem:[#allocation2 + $0x8] sm:$0xfe]
        %v1062 = vld [vmem:[#allocation2 + $0x10] sm:$0xfe]
        %v1063 = vld [vmem:[#allocation2 + $0x18] sm:$0xfe]
        %v1064 = vld [vmem:[#allocation2 + $0x100] sm:$0x1]
        %v1065 = vld [vmem:[#allocation2 + $0x108] sm:$0x1]
        %v1066 = vld [vmem:[#allocation2 + $0x110] sm:$0x1]
        %v1067 = vld [vmem:[#allocation2 + $0x118] sm:$0x1]
        %v1068 = vld [vmem:[%s2 + $0x100] sm:$0xf]
        %v1069 = vld [vmem:[%s2 + $0x104] sm:$0xf]
        %v1070 = vld [vmem:[%s2 + $0x108] sm:$0xf]
        %v1071 = vld [vmem:[%s2 + $0x10c] sm:$0xf]
        %v1072 = vld [vmem:[%s2 + $0x110] sm:$0xf]
        %v1073 = vld [vmem:[%s2 + $0x114] sm:$0xf]
        %v1074 = vld [vmem:[%s2 + $0x118] sm:$0xf]
        %v1075 = vld [vmem:[%s2 + $0x11c] sm:$0xf]
        %v1076 = vld [vmem:[%s2 + $0x120] sm:$0xf]
        %v1077 = vld [vmem:[%s2 + $0x124] sm:$0xf]
        %v1078 = vld [vmem:[%s2 + $0x128] sm:$0xf]
        %v1079 = vld [vmem:[%s2 + $0x12c] sm:$0xf]
        %v1080 = vld [vmem:[%s2 + $0x130] sm:$0xf]
        %v1081 = vld [vmem:[%s2 + $0x134] sm:$0xf]
        %v1082 = vld [vmem:[%s2 + $0x138] sm:$0xf]
        %v1083 = vld [vmem:[%s2 + $0x13c] sm:$0xf]
        %v1084 = vld [vmem:[%s2 + $0x140] sm:$0xf]
        %v1085 = vld [vmem:[%s2 + $0x144] sm:$0xf]
        %v1086 = vld [vmem:[%s2 + $0x148] sm:$0xf]
        %v1087 = vld [vmem:[%s2 + $0x14c] sm:$0xf]
        %v1088 = vld [vmem:[%s2 + $0x150] sm:$0xf]
        %v1089 = vld [vmem:[%s2 + $0x154] sm:$0xf]
        %v1090 = vld [vmem:[%s2 + $0x158] sm:$0xf]
        %v1091 = vld [vmem:[%s2 + $0x15c] sm:$0xf]
        %v1092 = vld [vmem:[%s2 + $0x160] sm:$0xf]
        %v1093 = vld [vmem:[%s2 + $0x164] sm:$0xf]
        %v1094 = vld [vmem:[%s2 + $0x168] sm:$0xf]
        %v1095 = vld [vmem:[%s2 + $0x16c] sm:$0xf]
        %v1096 = vld [vmem:[%s2 + $0x170] sm:$0xf]
        %v1097 = vld [vmem:[%s2 + $0x174] sm:$0xf]
        %v1098 = vld [vmem:[%s2 + $0x178] sm:$0xf]
        %v1099 = vld [vmem:[%s2 + $0x17c] sm:$0xf]
        %v1100 = vld [vmem:[%s2 + $0x180] sm:$0xf]
        %v1101 = vld [vmem:[%s2 + $0x184] sm:$0xf]
        %v1102 = vld [vmem:[%s2 + $0x188] sm:$0xf]
        %v1103 = vld [vmem:[%s2 + $0x18c] sm:$0xf]
        %v1104 = vld [vmem:[%s2 + $0x190] sm:$0xf]
        %v1105 = vld [vmem:[%s2 + $0x194] sm:$0xf]
        %v1106 = vld [vmem:[%s2 + $0x198] sm:$0xf]
        %v1107 = vld [vmem:[%s2 + $0x19c] sm:$0xf]
        %v1108 = vld [vmem:[%s2 + $0x1a0] sm:$0xf]
        %v1109 = vld [vmem:[%s2 + $0x1a4] sm:$0xf]
        %v1110 = vld [vmem:[%s2 + $0x1a8] sm:$0xf]
        %v1111 = vld [vmem:[%s2 + $0x1ac] sm:$0xf]
        %v1112 = vld [vmem:[%s2 + $0x1b0] sm:$0xf]
        %v1113 = vld [vmem:[%s2 + $0x1b4] sm:$0xf]
        %v1114 = vld [vmem:[%s2 + $0x1b8] sm:$0xf]
        %v1115 = vld [vmem:[%s2 + $0x1bc] sm:$0xf]
        %v1116 = vld [vmem:[%s2 + $0x1c0] sm:$0xf]
        %v1117 = vld [vmem:[%s2 + $0x1c4] sm:$0xf]
        %v1118 = vld [vmem:[%s2 + $0x1c8] sm:$0xf]
        %v1119 = vld [vmem:[%s2 + $0x1cc] sm:$0xf]
        %v1120 = vld [vmem:[%s2 + $0x1d0] sm:$0xf]
        %v1121 = vld [vmem:[%s2 + $0x1d4] sm:$0xf]
        %v1122 = vld [vmem:[%s2 + $0x1d8] sm:$0xf]
        %v1123 = vld [vmem:[%s2 + $0x1dc] sm:$0xf]
        %v1124 = vld [vmem:[%s2 + $0x1e0] sm:$0xf]
        %v1125 = vld [vmem:[%s2 + $0x1e4] sm:$0xf]
        %v1126 = vld [vmem:[%s2 + $0x1e8] sm:$0xf]
        %v1127 = vld [vmem:[%s2 + $0x1ec] sm:$0xf]
        %v1128 = vld [vmem:[%s2 + $0x1f0] sm:$0xf]
        %v1129 = vld [vmem:[%s2 + $0x1f4] sm:$0xf]
        %v1130 = vld [vmem:[%s2 + $0x1f8] sm:$0xf]
        %v1131 = vld [vmem:[%s2 + $0x1fc] sm:$0xf]
        %v1132 = vpack.c.bf16 %v952, %v1060
        %v1133 = vpack.c.bf16 %v953, %v1061
        %v1134 = vpack.c.bf16 %v954, %v1062
        %v1135 = vpack.c.bf16 %v955, %v1063
        %v1136 = vpack.c.bf16 %v1064, %v1064
        %v1137 = vpack.c.bf16 %v1065, %v1065
        %v1138 = vpack.c.bf16 %v1066, %v1066
        %v1139 = vpack.c.bf16 %v1067, %v1067
        %vm1140 = vsmask.f32 7424
        %v1142 = vshrl.u32 %v1132, 16
        %v1144 = vshll.u32 %v1132, 16
        %v1146 = vrot.slane %v1144, 1
        %v1147 = vor.u32 %v1142, %v1146
        %v1149 = vshll.u32 %v1048, 16
        %v1151 = vrot.slane %v1149, 1
        %v1152 = vsel %vm1140, %v1147, %v1151
        %v1154 = vshrl.u32 %v1133, 16
        %v1156 = vshll.u32 %v1133, 16
        %v1158 = vrot.slane %v1156, 1
        %v1159 = vor.u32 %v1154, %v1158
        %v1161 = vshll.u32 %v1049, 16
        %v1163 = vrot.slane %v1161, 1
        %v1164 = vsel %vm1140, %v1159, %v1163
        %v1166 = vshrl.u32 %v1134, 16
        %v1168 = vshll.u32 %v1134, 16
        %v1170 = vrot.slane %v1168, 1
        %v1171 = vor.u32 %v1166, %v1170
        %v1173 = vshll.u32 %v1050, 16
        %v1175 = vrot.slane %v1173, 1
        %v1176 = vsel %vm1140, %v1171, %v1175
        %v1178 = vshrl.u32 %v1135, 16
        %v1180 = vshll.u32 %v1135, 16
        %v1182 = vrot.slane %v1180, 1
        %v1183 = vor.u32 %v1178, %v1182
        %v1185 = vshll.u32 %v1051, 16
        %v1187 = vrot.slane %v1185, 1
        %v1188 = vsel %vm1140, %v1183, %v1187
        %v1189 = vshrl.u32 %v1048, 16
        %v1191 = vor.u32 %v1189, %v1151
        %v1193 = vshll.u32 %v1052, 16
        %v1195 = vrot.slane %v1193, 1
        %v1196 = vsel %vm1140, %v1191, %v1195
        %v1197 = vshrl.u32 %v1049, 16
        %v1199 = vor.u32 %v1197, %v1163
        %v1201 = vshll.u32 %v1053, 16
        %v1203 = vrot.slane %v1201, 1
        %v1204 = vsel %vm1140, %v1199, %v1203
        %v1205 = vshrl.u32 %v1050, 16
        %v1207 = vor.u32 %v1205, %v1175
        %v1209 = vshll.u32 %v1054, 16
        %v1211 = vrot.slane %v1209, 1
        %v1212 = vsel %vm1140, %v1207, %v1211
        %v1213 = vshrl.u32 %v1051, 16
        %v1215 = vor.u32 %v1213, %v1187
        %v1217 = vshll.u32 %v1055, 16
        %v1219 = vrot.slane %v1217, 1
        %v1220 = vsel %vm1140, %v1215, %v1219
        %v1221 = vshrl.u32 %v1052, 16
        %v1223 = vor.u32 %v1221, %v1195
        %v1225 = vshll.u32 %v1056, 16
        %v1227 = vrot.slane %v1225, 1
        %v1228 = vsel %vm1140, %v1223, %v1227
        %v1229 = vshrl.u32 %v1053, 16
        %v1231 = vor.u32 %v1229, %v1203
        %v1233 = vshll.u32 %v1057, 16
        %v1235 = vrot.slane %v1233, 1
        %v1236 = vsel %vm1140, %v1231, %v1235
        %v1237 = vshrl.u32 %v1054, 16
        %v1239 = vor.u32 %v1237, %v1211
        %v1241 = vshll.u32 %v1058, 16
        %v1243 = vrot.slane %v1241, 1
        %v1244 = vsel %vm1140, %v1239, %v1243
        %v1245 = vshrl.u32 %v1055, 16
        %v1247 = vor.u32 %v1245, %v1219
        %v1249 = vshll.u32 %v1059, 16
        %v1251 = vrot.slane %v1249, 1
        %v1252 = vsel %vm1140, %v1247, %v1251
        %v1253 = vshrl.u32 %v1056, 16
        %v1255 = vor.u32 %v1253, %v1227
        %v1257 = vshll.u32 %v1136, 16
        %v1259 = vrot.slane %v1257, 1
        %v1260 = vsel %vm1140, %v1255, %v1259
        %v1261 = vshrl.u32 %v1057, 16
        %v1263 = vor.u32 %v1261, %v1235
        %v1265 = vshll.u32 %v1137, 16
        %v1267 = vrot.slane %v1265, 1
        %v1268 = vsel %vm1140, %v1263, %v1267
        %v1269 = vshrl.u32 %v1058, 16
        %v1271 = vor.u32 %v1269, %v1243
        %v1273 = vshll.u32 %v1138, 16
        %v1275 = vrot.slane %v1273, 1
        %v1276 = vsel %vm1140, %v1271, %v1275
        %v1277 = vshrl.u32 %v1059, 16
        %v1279 = vor.u32 %v1277, %v1251
        %v1281 = vshll.u32 %v1139, 16
        %v1283 = vrot.slane %v1281, 1
        %v1284 = vsel %vm1140, %v1279, %v1283
        %v1365 = vunpack.c.l.b16 %v1068
        %v1366 = vunpack.c.l.b16 %v1069
        %v1367 = vunpack.c.l.b16 %v1070
        %v1368 = vunpack.c.l.b16 %v1071
        %v1369 = vunpack.c.l.b16 %v1072
        %v1370 = vunpack.c.l.b16 %v1073
        %v1371 = vunpack.c.l.b16 %v1074
        %v1372 = vunpack.c.l.b16 %v1075
        %v1373 = vunpack.c.l.b16 %v1076
        %v1374 = vunpack.c.l.b16 %v1077
        %v1375 = vunpack.c.l.b16 %v1078
        %v1376 = vunpack.c.l.b16 %v1079
        %v1377 = vunpack.c.l.b16 %v1080
        %v1378 = vunpack.c.l.b16 %v1081
        %v1379 = vunpack.c.l.b16 %v1082
        %v1380 = vunpack.c.l.b16 %v1083
        %v1381 = vunpack.c.l.b16 %v1084
        %v1382 = vunpack.c.l.b16 %v1085
        %v1383 = vunpack.c.l.b16 %v1086
        %v1384 = vunpack.c.l.b16 %v1087
        %v1385 = vunpack.c.l.b16 %v1088
        %v1386 = vunpack.c.l.b16 %v1089
        %v1387 = vunpack.c.l.b16 %v1090
        %v1388 = vunpack.c.l.b16 %v1091
        %v1389 = vunpack.c.l.b16 %v1092
        %v1390 = vunpack.c.l.b16 %v1093
        %v1391 = vunpack.c.l.b16 %v1094
        %v1392 = vunpack.c.l.b16 %v1095
        %v1393 = vunpack.c.l.b16 %v1096
        %v1394 = vunpack.c.l.b16 %v1097
        %v1395 = vunpack.c.l.b16 %v1098
        %v1396 = vunpack.c.l.b16 %v1099
        %v1397 = vunpack.c.l.b16 %v1100
        %v1398 = vunpack.c.l.b16 %v1101
        %v1399 = vunpack.c.l.b16 %v1102
        %v1400 = vunpack.c.l.b16 %v1103
        %v1401 = vunpack.c.l.b16 %v1104
        %v1402 = vunpack.c.l.b16 %v1105
        %v1403 = vunpack.c.l.b16 %v1106
        %v1404 = vunpack.c.l.b16 %v1107
        %v1405 = vunpack.c.l.b16 %v1108
        %v1406 = vunpack.c.l.b16 %v1109
        %v1407 = vunpack.c.l.b16 %v1110
        %v1408 = vunpack.c.l.b16 %v1111
        %v1409 = vunpack.c.l.b16 %v1112
        %v1410 = vunpack.c.l.b16 %v1113
        %v1411 = vunpack.c.l.b16 %v1114
        %v1412 = vunpack.c.l.b16 %v1115
        %v1413 = vunpack.c.l.b16 %v1116
        %v1414 = vunpack.c.l.b16 %v1117
        %v1415 = vunpack.c.l.b16 %v1118
        %v1416 = vunpack.c.l.b16 %v1119
        %v1417 = vunpack.c.l.b16 %v1120
        %v1418 = vunpack.c.l.b16 %v1121
        %v1419 = vunpack.c.l.b16 %v1122
        %v1420 = vunpack.c.l.b16 %v1123
        %v1421 = vunpack.c.l.b16 %v1124
        %v1422 = vunpack.c.l.b16 %v1125
        %v1423 = vunpack.c.l.b16 %v1126
        %v1424 = vunpack.c.l.b16 %v1127
        %v1425 = vunpack.c.l.b16 %v1128
        %v1426 = vunpack.c.l.b16 %v1129
        %v1427 = vunpack.c.l.b16 %v1130
        %v1428 = vunpack.c.l.b16 %v1131
        %v1429 = vpack.c.b16 %v1366, %v1365
        %v1430 = vpack.c.b16 %v1368, %v1367
        %v1431 = vpack.c.b16 %v1370, %v1369
        %v1432 = vpack.c.b16 %v1372, %v1371
        %v1433 = vpack.c.b16 %v1374, %v1373
        %v1434 = vpack.c.b16 %v1376, %v1375
        %v1435 = vpack.c.b16 %v1378, %v1377
        %v1436 = vpack.c.b16 %v1380, %v1379
        %v1437 = vpack.c.b16 %v1382, %v1381
        %v1438 = vpack.c.b16 %v1384, %v1383
        %v1439 = vpack.c.b16 %v1386, %v1385
        %v1440 = vpack.c.b16 %v1388, %v1387
        %v1441 = vpack.c.b16 %v1390, %v1389
        %v1442 = vpack.c.b16 %v1392, %v1391
        %v1443 = vpack.c.b16 %v1394, %v1393
        %v1444 = vpack.c.b16 %v1396, %v1395
        %v1445 = vpack.c.b16 %v1398, %v1397
        %v1446 = vpack.c.b16 %v1400, %v1399
        %v1447 = vpack.c.b16 %v1402, %v1401
        %v1448 = vpack.c.b16 %v1404, %v1403
        %v1449 = vpack.c.b16 %v1406, %v1405
        %v1450 = vpack.c.b16 %v1408, %v1407
        %v1451 = vpack.c.b16 %v1410, %v1409
        %v1452 = vpack.c.b16 %v1412, %v1411
        %v1453 = vpack.c.b16 %v1414, %v1413
        %v1454 = vpack.c.b16 %v1416, %v1415
        %v1455 = vpack.c.b16 %v1418, %v1417
        %v1456 = vpack.c.b16 %v1420, %v1419
        %v1457 = vpack.c.b16 %v1422, %v1421
        %v1458 = vpack.c.b16 %v1424, %v1423
        %v1459 = vpack.c.b16 %v1426, %v1425
        %v1460 = vpack.c.b16 %v1428, %v1427
        %1493 = vmatprep.subr.bf16.mxu0 0
        %1494 = vmatpush1.bf16.msra.mxu0 %v1436
        %1495 = vmatprep.subr.bf16.mxu0 0
        %1496 = vmatpush1.bf16.msra.mxu0 %v1435
        %1497 = vmatprep.subr.bf16.mxu0 0
        %1498 = vmatpush1.bf16.msra.mxu0 %v1434
        %1499 = vmatprep.subr.bf16.mxu0 0
        %1500 = vmatpush1.bf16.msra.mxu0 %v1433
        %1501 = vmatprep.subr.bf16.mxu0 0
        %1502 = vmatpush1.bf16.msra.mxu0 %v1432
        %1503 = vmatprep.subr.bf16.mxu0 0
        %1504 = vmatpush1.bf16.msra.mxu0 %v1431
        %1505 = vmatprep.subr.bf16.mxu0 0
        %1506 = vmatpush1.bf16.msra.mxu0 %v1430
        %1507 = vmatprep.subr.bf16.mxu0 0
        %1508 = vmatpush1.bf16.msra.mxu0 %v1429
        %1509 = vmatprep.subr.bf16.mxu0 0
        %1510 = vmatpush2.bf16.msra.mxu0 %v1444
        %1511 = vmatprep.subr.bf16.mxu0 0
        %1512 = vmatpush2.bf16.msra.mxu0 %v1443
        %1513 = vmatprep.subr.bf16.mxu0 0
        %1514 = vmatpush2.bf16.msra.mxu0 %v1442
        %1515 = vmatprep.subr.bf16.mxu0 0
        %1516 = vmatpush2.bf16.msra.mxu0 %v1441
        %1517 = vmatprep.subr.bf16.mxu0 0
        %1518 = vmatpush2.bf16.msra.mxu0 %v1440
        %1519 = vmatprep.subr.bf16.mxu0 0
        %1520 = vmatpush2.bf16.msra.mxu0 %v1439
        %1521 = vmatprep.subr.bf16.mxu0 0
        %1522 = vmatpush2.bf16.msra.mxu0 %v1438
        %1523 = vmatprep.subr.bf16.mxu0 0
        %1524 = vmatpush2.bf16.msra.mxu0 %v1437
        %1525 = vmatprep.mubr.bf16.mxu0 %v1164
        %1526 = vmatmul.mubr.bf16.gmra.mxu0 %v1152
        %v1527 = vpop.f32.mrf.mxu0
        %v1528 = vadd.f32 0.0, %v1527
        %v1529 = vpop.f32.mrf.mxu0
        %v1530 = vpop.f32.mrf.mxu0
        %v1531 = vadd.f32 0.0, %v1530
        %v1532 = vpop.f32.mrf.mxu0
        %1533 = vmatprep.mubr.bf16.mxu0 %v1204
        %1534 = vmatmul.mubr.bf16.gmra.mxu0 %v1196
        %v1535 = vpop.f32.mrf.mxu0
        %v1536 = vadd.f32 0.0, %v1535
        %v1537 = vpop.f32.mrf.mxu0
        %v1538 = vpop.f32.mrf.mxu0
        %v1539 = vadd.f32 0.0, %v1538
        %v1540 = vpop.f32.mrf.mxu0
        %1541 = vmatprep.mubr.bf16.mxu0 %v1236
        %1542 = vmatmul.mubr.bf16.gmra.mxu0 %v1228
        %v1543 = vpop.f32.mrf.mxu0
        %v1544 = vadd.f32 0.0, %v1543
        %v1545 = vpop.f32.mrf.mxu0
        %v1546 = vpop.f32.mrf.mxu0
        %v1547 = vadd.f32 0.0, %v1546
        %v1548 = vpop.f32.mrf.mxu0
        %1549 = vmatprep.mubr.bf16.mxu0 %v1268
        %1550 = vmatmul.mubr.bf16.gmra.mxu0 %v1260
        %v1551 = vpop.f32.mrf.mxu0
        %v1552 = vadd.f32 0.0, %v1551
        %v1553 = vpop.f32.mrf.mxu0
        %v1554 = vpop.f32.mrf.mxu0
        %v1555 = vadd.f32 0.0, %v1554
        %v1556 = vpop.f32.mrf.mxu0
        %1557 = vdwg.mxu0
        %1558 = vmatprep.subr.bf16.mxu0 0
        %1559 = vmatpush1.bf16.msra.mxu0 %v1452
        %1560 = vmatprep.subr.bf16.mxu0 0
        %1561 = vmatpush1.bf16.msra.mxu0 %v1451
        %1562 = vmatprep.subr.bf16.mxu0 0
        %1563 = vmatpush1.bf16.msra.mxu0 %v1450
        %1564 = vmatprep.subr.bf16.mxu0 0
        %1565 = vmatpush1.bf16.msra.mxu0 %v1449
        %1566 = vmatprep.subr.bf16.mxu0 0
        %1567 = vmatpush1.bf16.msra.mxu0 %v1448
        %1568 = vmatprep.subr.bf16.mxu0 0
        %1569 = vmatpush1.bf16.msra.mxu0 %v1447
        %1570 = vmatprep.subr.bf16.mxu0 0
        %1571 = vmatpush1.bf16.msra.mxu0 %v1446
        %1572 = vmatprep.subr.bf16.mxu0 0
        %1573 = vmatpush1.bf16.msra.mxu0 %v1445
        %1574 = vmatprep.subr.bf16.mxu0 0
        %1575 = vmatpush2.bf16.msra.mxu0 %v1460
        %1576 = vmatprep.subr.bf16.mxu0 0
        %1577 = vmatpush2.bf16.msra.mxu0 %v1459
        %1578 = vmatprep.subr.bf16.mxu0 0
        %1579 = vmatpush2.bf16.msra.mxu0 %v1458
        %1580 = vmatprep.subr.bf16.mxu0 0
        %1581 = vmatpush2.bf16.msra.mxu0 %v1457
        %1582 = vmatprep.subr.bf16.mxu0 0
        %1583 = vmatpush2.bf16.msra.mxu0 %v1456
        %1584 = vmatprep.subr.bf16.mxu0 0
        %1585 = vmatpush2.bf16.msra.mxu0 %v1455
        %1586 = vmatprep.subr.bf16.mxu0 0
        %1587 = vmatpush2.bf16.msra.mxu0 %v1454
        %1588 = vmatprep.subr.bf16.mxu0 0
        %1589 = vmatpush2.bf16.msra.mxu0 %v1453
        %1590 = vmatprep.mubr.bf16.mxu0 %v1188
        %1591 = vmatmul.mubr.bf16.gmra.mxu0 %v1176
        %v1592 = vpop.f32.mrf.mxu0
        %v1593 = vadd.f32 %v1528, %v1592
        %v1594 = vpop.f32.mrf.mxu0
        %v1595 = vpop.f32.mrf.mxu0
        %v1596 = vadd.f32 %v1531, %v1595
        %v1597 = vpop.f32.mrf.mxu0
        %1598 = vmatprep.mubr.bf16.mxu0 %v1220
        %1599 = vmatmul.mubr.bf16.gmra.mxu0 %v1212
        %v1600 = vpop.f32.mrf.mxu0
        %v1601 = vadd.f32 %v1536, %v1600
        %v1602 = vpop.f32.mrf.mxu0
        %v1603 = vpop.f32.mrf.mxu0
        %v1604 = vadd.f32 %v1539, %v1603
        %v1605 = vpop.f32.mrf.mxu0
        %1606 = vmatprep.mubr.bf16.mxu0 %v1252
        %1607 = vmatmul.mubr.bf16.gmra.mxu0 %v1244
        %v1608 = vpop.f32.mrf.mxu0
        %v1609 = vadd.f32 %v1544, %v1608
        %v1610 = vpop.f32.mrf.mxu0
        %v1611 = vpop.f32.mrf.mxu0
        %v1612 = vadd.f32 %v1547, %v1611
        %v1613 = vpop.f32.mrf.mxu0
        %1614 = vmatprep.mubr.bf16.mxu0 %v1284
        %1615 = vmatmul.mubr.bf16.gmra.mxu0 %v1276
        %v1616 = vpop.f32.mrf.mxu0
        %v1617 = vadd.f32 %v1552, %v1616
        %v1618 = vpop.f32.mrf.mxu0
        %v1619 = vpop.f32.mrf.mxu0
        %v1620 = vadd.f32 %v1555, %v1619
        %v1621 = vpop.f32.mrf.mxu0
        %1622 = vdwg.mxu0
        %v1687 = vunpack.c.l.b16 %v980
        %v1688 = vunpack.c.l.b16 %v981
        %v1689 = vunpack.c.l.b16 %v982
        %v1690 = vunpack.c.l.b16 %v983
        %v1691 = vunpack.c.l.b16 %v984
        %v1692 = vunpack.c.l.b16 %v985
        %v1693 = vunpack.c.l.b16 %v986
        %v1694 = vunpack.c.l.b16 %v987
        %v1695 = vunpack.c.l.b16 %v988
        %v1696 = vunpack.c.l.b16 %v989
        %v1697 = vunpack.c.l.b16 %v990
        %v1698 = vunpack.c.l.b16 %v991
        %v1699 = vunpack.c.l.b16 %v992
        %v1700 = vunpack.c.l.b16 %v993
        %v1701 = vunpack.c.l.b16 %v994
        %v1702 = vunpack.c.l.b16 %v995
        %v1703 = vunpack.c.l.b16 %v996
        %v1704 = vunpack.c.l.b16 %v997
        %v1705 = vunpack.c.l.b16 %v998
        %v1706 = vunpack.c.l.b16 %v999
        %v1707 = vunpack.c.l.b16 %v1000
        %v1708 = vunpack.c.l.b16 %v1001
        %v1709 = vunpack.c.l.b16 %v1002
        %v1710 = vunpack.c.l.b16 %v1003
        %v1711 = vunpack.c.l.b16 %v1004
        %v1712 = vunpack.c.l.b16 %v1005
        %v1713 = vunpack.c.l.b16 %v1006
        %v1714 = vunpack.c.l.b16 %v1007
        %v1715 = vunpack.c.l.b16 %v1008
        %v1716 = vunpack.c.l.b16 %v1009
        %v1717 = vunpack.c.l.b16 %v1010
        %v1718 = vunpack.c.l.b16 %v1011
        %v1719 = vunpack.c.l.b16 %v1012
        %v1720 = vunpack.c.l.b16 %v1013
        %v1721 = vunpack.c.l.b16 %v1014
        %v1722 = vunpack.c.l.b16 %v1015
        %v1723 = vunpack.c.l.b16 %v1016
        %v1724 = vunpack.c.l.b16 %v1017
        %v1725 = vunpack.c.l.b16 %v1018
        %v1726 = vunpack.c.l.b16 %v1019
        %v1727 = vunpack.c.l.b16 %v1020
        %v1728 = vunpack.c.l.b16 %v1021
        %v1729 = vunpack.c.l.b16 %v1022
        %v1730 = vunpack.c.l.b16 %v1023
        %v1731 = vunpack.c.l.b16 %v1024
        %v1732 = vunpack.c.l.b16 %v1025
        %v1733 = vunpack.c.l.b16 %v1026
        %v1734 = vunpack.c.l.b16 %v1027
        %v1735 = vunpack.c.l.b16 %v1028
        %v1736 = vunpack.c.l.b16 %v1029
        %v1737 = vunpack.c.l.b16 %v1030
        %v1738 = vunpack.c.l.b16 %v1031
        %v1739 = vunpack.c.l.b16 %v1032
        %v1740 = vunpack.c.l.b16 %v1033
        %v1741 = vunpack.c.l.b16 %v1034
        %v1742 = vunpack.c.l.b16 %v1035
        %v1743 = vunpack.c.l.b16 %v1036
        %v1744 = vunpack.c.l.b16 %v1037
        %v1745 = vunpack.c.l.b16 %v1038
        %v1746 = vunpack.c.l.b16 %v1039
        %v1747 = vunpack.c.l.b16 %v1040
        %v1748 = vunpack.c.l.b16 %v1041
        %v1749 = vunpack.c.l.b16 %v1042
        %v1750 = vunpack.c.l.b16 %v1043
        %v1751 = vpack.c.b16 %v1688, %v1687
        %v1752 = vpack.c.b16 %v1690, %v1689
        %v1753 = vpack.c.b16 %v1692, %v1691
        %v1754 = vpack.c.b16 %v1694, %v1693
        %v1755 = vpack.c.b16 %v1696, %v1695
        %v1756 = vpack.c.b16 %v1698, %v1697
        %v1757 = vpack.c.b16 %v1700, %v1699
        %v1758 = vpack.c.b16 %v1702, %v1701
        %v1759 = vpack.c.b16 %v1704, %v1703
        %v1760 = vpack.c.b16 %v1706, %v1705
        %v1761 = vpack.c.b16 %v1708, %v1707
        %v1762 = vpack.c.b16 %v1710, %v1709
        %v1763 = vpack.c.b16 %v1712, %v1711
        %v1764 = vpack.c.b16 %v1714, %v1713
        %v1765 = vpack.c.b16 %v1716, %v1715
        %v1766 = vpack.c.b16 %v1718, %v1717
        %v1767 = vpack.c.b16 %v1720, %v1719
        %v1768 = vpack.c.b16 %v1722, %v1721
        %v1769 = vpack.c.b16 %v1724, %v1723
        %v1770 = vpack.c.b16 %v1726, %v1725
        %v1771 = vpack.c.b16 %v1728, %v1727
        %v1772 = vpack.c.b16 %v1730, %v1729
        %v1773 = vpack.c.b16 %v1732, %v1731
        %v1774 = vpack.c.b16 %v1734, %v1733
        %v1775 = vpack.c.b16 %v1736, %v1735
        %v1776 = vpack.c.b16 %v1738, %v1737
        %v1777 = vpack.c.b16 %v1740, %v1739
        %v1778 = vpack.c.b16 %v1742, %v1741
        %v1779 = vpack.c.b16 %v1744, %v1743
        %v1780 = vpack.c.b16 %v1746, %v1745
        %v1781 = vpack.c.b16 %v1748, %v1747
        %v1782 = vpack.c.b16 %v1750, %v1749
        %1815 = vmatprep.subr.bf16.mxu0 0
        %1816 = vmatpush1.bf16.msra.mxu0 %v1758
        %1817 = vmatprep.subr.bf16.mxu0 0
        %1818 = vmatpush1.bf16.msra.mxu0 %v1757
        %1819 = vmatprep.subr.bf16.mxu0 0
        %1820 = vmatpush1.bf16.msra.mxu0 %v1756
        %1821 = vmatprep.subr.bf16.mxu0 0
        %1822 = vmatpush1.bf16.msra.mxu0 %v1755
        %1823 = vmatprep.subr.bf16.mxu0 0
        %1824 = vmatpush1.bf16.msra.mxu0 %v1754
        %1825 = vmatprep.subr.bf16.mxu0 0
        %1826 = vmatpush1.bf16.msra.mxu0 %v1753
        %1827 = vmatprep.subr.bf16.mxu0 0
        %1828 = vmatpush1.bf16.msra.mxu0 %v1752
        %1829 = vmatprep.subr.bf16.mxu0 0
        %1830 = vmatpush1.bf16.msra.mxu0 %v1751
        %1831 = vmatprep.subr.bf16.mxu0 0
        %1832 = vmatpush2.bf16.msra.mxu0 %v1766
        %1833 = vmatprep.subr.bf16.mxu0 0
        %1834 = vmatpush2.bf16.msra.mxu0 %v1765
        %1835 = vmatprep.subr.bf16.mxu0 0
        %1836 = vmatpush2.bf16.msra.mxu0 %v1764
        %1837 = vmatprep.subr.bf16.mxu0 0
        %1838 = vmatpush2.bf16.msra.mxu0 %v1763
        %1839 = vmatprep.subr.bf16.mxu0 0
        %1840 = vmatpush2.bf16.msra.mxu0 %v1762
        %1841 = vmatprep.subr.bf16.mxu0 0
        %1842 = vmatpush2.bf16.msra.mxu0 %v1761
        %1843 = vmatprep.subr.bf16.mxu0 0
        %1844 = vmatpush2.bf16.msra.mxu0 %v1760
        %1845 = vmatprep.subr.bf16.mxu0 0
        %1846 = vmatpush2.bf16.msra.mxu0 %v1759
        %1847 = vmatprep.mubr.bf16.mxu0 %v1045
        %1848 = vmatmul.mubr.bf16.gmra.mxu0 %v1044
        %v1849 = vpop.f32.mrf.mxu0
        %v1850 = vadd.f32 %v1593, %v1849
        %v1851 = vpop.f32.mrf.mxu0
        %v1852 = vpop.f32.mrf.mxu0
        %v1853 = vadd.f32 %v1596, %v1852
        %v1854 = vpop.f32.mrf.mxu0
        %1855 = vmatprep.mubr.bf16.mxu0 %v1049
        %1856 = vmatmul.mubr.bf16.gmra.mxu0 %v1048
        %v1857 = vpop.f32.mrf.mxu0
        %v1858 = vadd.f32 %v1601, %v1857
        %v1859 = vpop.f32.mrf.mxu0
        %v1860 = vpop.f32.mrf.mxu0
        %v1861 = vadd.f32 %v1604, %v1860
        %v1862 = vpop.f32.mrf.mxu0
        %1863 = vmatprep.mubr.bf16.mxu0 %v1053
        %1864 = vmatmul.mubr.bf16.gmra.mxu0 %v1052
        %v1865 = vpop.f32.mrf.mxu0
        %v1866 = vadd.f32 %v1609, %v1865
        %v1867 = vpop.f32.mrf.mxu0
        %v1868 = vpop.f32.mrf.mxu0
        %v1869 = vadd.f32 %v1612, %v1868
        %v1870 = vpop.f32.mrf.mxu0
        %1871 = vmatprep.mubr.bf16.mxu0 %v1057
        %1872 = vmatmul.mubr.bf16.gmra.mxu0 %v1056
        %v1873 = vpop.f32.mrf.mxu0
        %v1874 = vadd.f32 %v1617, %v1873
        %v1875 = vpop.f32.mrf.mxu0
        %v1876 = vpop.f32.mrf.mxu0
        %v1877 = vadd.f32 %v1620, %v1876
        %v1878 = vpop.f32.mrf.mxu0
        %1879 = vdwg.mxu0
        %1880 = vmatprep.subr.bf16.mxu0 0
        %1881 = vmatpush1.bf16.msra.mxu0 %v1774
        %1882 = vmatprep.subr.bf16.mxu0 0
        %1883 = vmatpush1.bf16.msra.mxu0 %v1773
        %1884 = vmatprep.subr.bf16.mxu0 0
        %1885 = vmatpush1.bf16.msra.mxu0 %v1772
        %1886 = vmatprep.subr.bf16.mxu0 0
        %1887 = vmatpush1.bf16.msra.mxu0 %v1771
        %1888 = vmatprep.subr.bf16.mxu0 0
        %1889 = vmatpush1.bf16.msra.mxu0 %v1770
        %1890 = vmatprep.subr.bf16.mxu0 0
        %1891 = vmatpush1.bf16.msra.mxu0 %v1769
        %1892 = vmatprep.subr.bf16.mxu0 0
        %1893 = vmatpush1.bf16.msra.mxu0 %v1768
        %1894 = vmatprep.subr.bf16.mxu0 0
        %1895 = vmatpush1.bf16.msra.mxu0 %v1767
        %1896 = vmatprep.subr.bf16.mxu0 0
        %1897 = vmatpush2.bf16.msra.mxu0 %v1782
        %1898 = vmatprep.subr.bf16.mxu0 0
        %1899 = vmatpush2.bf16.msra.mxu0 %v1781
        %1900 = vmatprep.subr.bf16.mxu0 0
        %1901 = vmatpush2.bf16.msra.mxu0 %v1780
        %1902 = vmatprep.subr.bf16.mxu0 0
        %1903 = vmatpush2.bf16.msra.mxu0 %v1779
        %1904 = vmatprep.subr.bf16.mxu0 0
        %1905 = vmatpush2.bf16.msra.mxu0 %v1778
        %1906 = vmatprep.subr.bf16.mxu0 0
        %1907 = vmatpush2.bf16.msra.mxu0 %v1777
        %1908 = vmatprep.subr.bf16.mxu0 0
        %1909 = vmatpush2.bf16.msra.mxu0 %v1776
        %1910 = vmatprep.subr.bf16.mxu0 0
        %1911 = vmatpush2.bf16.msra.mxu0 %v1775
        %1912 = vmatprep.mubr.bf16.mxu0 %v1047
        %1913 = vmatmul.mubr.bf16.gmra.mxu0 %v1046
        %v1914 = vpop.f32.mrf.mxu0
        %v1915 = vadd.f32 %v1850, %v1914
        %v1916 = vpop.f32.mrf.mxu0
        %v1917 = vpop.f32.mrf.mxu0
        %v1918 = vadd.f32 %v1853, %v1917
        %v1919 = vpop.f32.mrf.mxu0
        %1920 = vmatprep.mubr.bf16.mxu0 %v1051
        %1921 = vmatmul.mubr.bf16.gmra.mxu0 %v1050
        %v1922 = vpop.f32.mrf.mxu0
        %v1923 = vadd.f32 %v1858, %v1922
        %v1924 = vpop.f32.mrf.mxu0
        %v1925 = vpop.f32.mrf.mxu0
        %v1926 = vadd.f32 %v1861, %v1925
        %v1927 = vpop.f32.mrf.mxu0
        %1928 = vmatprep.mubr.bf16.mxu0 %v1055
        %1929 = vmatmul.mubr.bf16.gmra.mxu0 %v1054
        %v1930 = vpop.f32.mrf.mxu0
        %v1931 = vadd.f32 %v1866, %v1930
        %v1932 = vpop.f32.mrf.mxu0
        %v1933 = vpop.f32.mrf.mxu0
        %v1934 = vadd.f32 %v1869, %v1933
        %v1935 = vpop.f32.mrf.mxu0
        %1936 = vmatprep.mubr.bf16.mxu0 %v1059
        %1937 = vmatmul.mubr.bf16.gmra.mxu0 %v1058
        %v1938 = vpop.f32.mrf.mxu0
        %v1939 = vadd.f32 %v1874, %v1938
        %v1940 = vpop.f32.mrf.mxu0
        %v1941 = vpop.f32.mrf.mxu0
        %v1942 = vadd.f32 %v1877, %v1941
        %v1943 = vpop.f32.mrf.mxu0
        %1944 = vdwg.mxu0
        %v1945 = vld [vmem:[#allocation2 + $0x100] sm:$0xff]
        %v1946 = vld [vmem:[#allocation2 + $0x108] sm:$0xff]
        %v1947 = vld [vmem:[#allocation2 + $0x110] sm:$0xff]
        %v1948 = vld [vmem:[#allocation2 + $0x118] sm:$0xff]
        %v1949 = vld [vmem:[%s2 + $0x200] sm:$0xf]
        %v1950 = vld [vmem:[%s2 + $0x204] sm:$0xf]
        %v1951 = vld [vmem:[%s2 + $0x208] sm:$0xf]
        %v1952 = vld [vmem:[%s2 + $0x20c] sm:$0xf]
        %v1953 = vld [vmem:[%s2 + $0x210] sm:$0xf]
        %v1954 = vld [vmem:[%s2 + $0x214] sm:$0xf]
        %v1955 = vld [vmem:[%s2 + $0x218] sm:$0xf]
        %v1956 = vld [vmem:[%s2 + $0x21c] sm:$0xf]
        %v1957 = vld [vmem:[%s2 + $0x220] sm:$0xf]
        %v1958 = vld [vmem:[%s2 + $0x224] sm:$0xf]
        %v1959 = vld [vmem:[%s2 + $0x228] sm:$0xf]
        %v1960 = vld [vmem:[%s2 + $0x22c] sm:$0xf]
        %v1961 = vld [vmem:[%s2 + $0x230] sm:$0xf]
        %v1962 = vld [vmem:[%s2 + $0x234] sm:$0xf]
        %v1963 = vld [vmem:[%s2 + $0x238] sm:$0xf]
        %v1964 = vld [vmem:[%s2 + $0x23c] sm:$0xf]
        %v1965 = vld [vmem:[%s2 + $0x240] sm:$0xf]
        %v1966 = vld [vmem:[%s2 + $0x244] sm:$0xf]
        %v1967 = vld [vmem:[%s2 + $0x248] sm:$0xf]
        %v1968 = vld [vmem:[%s2 + $0x24c] sm:$0xf]
        %v1969 = vld [vmem:[%s2 + $0x250] sm:$0xf]
        %v1970 = vld [vmem:[%s2 + $0x254] sm:$0xf]
        %v1971 = vld [vmem:[%s2 + $0x258] sm:$0xf]
        %v1972 = vld [vmem:[%s2 + $0x25c] sm:$0xf]
        %v1973 = vld [vmem:[%s2 + $0x260] sm:$0xf]
        %v1974 = vld [vmem:[%s2 + $0x264] sm:$0xf]
        %v1975 = vld [vmem:[%s2 + $0x268] sm:$0xf]
        %v1976 = vld [vmem:[%s2 + $0x26c] sm:$0xf]
        %v1977 = vld [vmem:[%s2 + $0x270] sm:$0xf]
        %v1978 = vld [vmem:[%s2 + $0x274] sm:$0xf]
        %v1979 = vld [vmem:[%s2 + $0x278] sm:$0xf]
        %v1980 = vld [vmem:[%s2 + $0x27c] sm:$0xf]
        %v1981 = vld [vmem:[%s2 + $0x280] sm:$0xf]
        %v1982 = vld [vmem:[%s2 + $0x284] sm:$0xf]
        %v1983 = vld [vmem:[%s2 + $0x288] sm:$0xf]
        %v1984 = vld [vmem:[%s2 + $0x28c] sm:$0xf]
        %v1985 = vld [vmem:[%s2 + $0x290] sm:$0xf]
        %v1986 = vld [vmem:[%s2 + $0x294] sm:$0xf]
        %v1987 = vld [vmem:[%s2 + $0x298] sm:$0xf]
        %v1988 = vld [vmem:[%s2 + $0x29c] sm:$0xf]
        %v1989 = vld [vmem:[%s2 + $0x2a0] sm:$0xf]
        %v1990 = vld [vmem:[%s2 + $0x2a4] sm:$0xf]
        %v1991 = vld [vmem:[%s2 + $0x2a8] sm:$0xf]
        %v1992 = vld [vmem:[%s2 + $0x2ac] sm:$0xf]
        %v1993 = vld [vmem:[%s2 + $0x2b0] sm:$0xf]
        %v1994 = vld [vmem:[%s2 + $0x2b4] sm:$0xf]
        %v1995 = vld [vmem:[%s2 + $0x2b8] sm:$0xf]
        %v1996 = vld [vmem:[%s2 + $0x2bc] sm:$0xf]
        %v1997 = vld [vmem:[%s2 + $0x2c0] sm:$0xf]
        %v1998 = vld [vmem:[%s2 + $0x2c4] sm:$0xf]
        %v1999 = vld [vmem:[%s2 + $0x2c8] sm:$0xf]
        %v2000 = vld [vmem:[%s2 + $0x2cc] sm:$0xf]
        %v2001 = vld [vmem:[%s2 + $0x2d0] sm:$0xf]
        %v2002 = vld [vmem:[%s2 + $0x2d4] sm:$0xf]
        %v2003 = vld [vmem:[%s2 + $0x2d8] sm:$0xf]
        %v2004 = vld [vmem:[%s2 + $0x2dc] sm:$0xf]
        %v2005 = vld [vmem:[%s2 + $0x2e0] sm:$0xf]
        %v2006 = vld [vmem:[%s2 + $0x2e4] sm:$0xf]
        %v2007 = vld [vmem:[%s2 + $0x2e8] sm:$0xf]
        %v2008 = vld [vmem:[%s2 + $0x2ec] sm:$0xf]
        %v2009 = vld [vmem:[%s2 + $0x2f0] sm:$0xf]
        %v2010 = vld [vmem:[%s2 + $0x2f4] sm:$0xf]
        %v2011 = vld [vmem:[%s2 + $0x2f8] sm:$0xf]
        %v2012 = vld [vmem:[%s2 + $0x2fc] sm:$0xf]
        %v2013 = vpack.c.bf16 %v956, %v952
        %v2014 = vpack.c.bf16 %v957, %v953
        %v2015 = vpack.c.bf16 %v958, %v954
        %v2016 = vpack.c.bf16 %v959, %v955
        %v2017 = vpack.c.bf16 %v964, %v960
        %v2018 = vpack.c.bf16 %v965, %v961
        %v2019 = vpack.c.bf16 %v966, %v962
        %v2020 = vpack.c.bf16 %v967, %v963
        %v2021 = vpack.c.bf16 %v972, %v968
        %v2022 = vpack.c.bf16 %v973, %v969
        %v2023 = vpack.c.bf16 %v974, %v970
        %v2024 = vpack.c.bf16 %v975, %v971
        %v2025 = vpack.c.bf16 %v1945, %v976
        %v2026 = vpack.c.bf16 %v1946, %v977
        %v2027 = vpack.c.bf16 %v1947, %v978
        %v2028 = vpack.c.bf16 %v1948, %v979
        %v2093 = vunpack.c.l.b16 %v1949
        %v2094 = vunpack.c.l.b16 %v1950
        %v2095 = vunpack.c.l.b16 %v1951
        %v2096 = vunpack.c.l.b16 %v1952
        %v2097 = vunpack.c.l.b16 %v1953
        %v2098 = vunpack.c.l.b16 %v1954
        %v2099 = vunpack.c.l.b16 %v1955
        %v2100 = vunpack.c.l.b16 %v1956
        %v2101 = vunpack.c.l.b16 %v1957
        %v2102 = vunpack.c.l.b16 %v1958
        %v2103 = vunpack.c.l.b16 %v1959
        %v2104 = vunpack.c.l.b16 %v1960
        %v2105 = vunpack.c.l.b16 %v1961
        %v2106 = vunpack.c.l.b16 %v1962
        %v2107 = vunpack.c.l.b16 %v1963
        %v2108 = vunpack.c.l.b16 %v1964
        %v2109 = vunpack.c.l.b16 %v1965
        %v2110 = vunpack.c.l.b16 %v1966
        %v2111 = vunpack.c.l.b16 %v1967
        %v2112 = vunpack.c.l.b16 %v1968
        %v2113 = vunpack.c.l.b16 %v1969
        %v2114 = vunpack.c.l.b16 %v1970
        %v2115 = vunpack.c.l.b16 %v1971
        %v2116 = vunpack.c.l.b16 %v1972
        %v2117 = vunpack.c.l.b16 %v1973
        %v2118 = vunpack.c.l.b16 %v1974
        %v2119 = vunpack.c.l.b16 %v1975
        %v2120 = vunpack.c.l.b16 %v1976
        %v2121 = vunpack.c.l.b16 %v1977
        %v2122 = vunpack.c.l.b16 %v1978
        %v2123 = vunpack.c.l.b16 %v1979
        %v2124 = vunpack.c.l.b16 %v1980
        %v2125 = vunpack.c.l.b16 %v1981
        %v2126 = vunpack.c.l.b16 %v1982
        %v2127 = vunpack.c.l.b16 %v1983
        %v2128 = vunpack.c.l.b16 %v1984
        %v2129 = vunpack.c.l.b16 %v1985
        %v2130 = vunpack.c.l.b16 %v1986
        %v2131 = vunpack.c.l.b16 %v1987
        %v2132 = vunpack.c.l.b16 %v1988
        %v2133 = vunpack.c.l.b16 %v1989
        %v2134 = vunpack.c.l.b16 %v1990
        %v2135 = vunpack.c.l.b16 %v1991
        %v2136 = vunpack.c.l.b16 %v1992
        %v2137 = vunpack.c.l.b16 %v1993
        %v2138 = vunpack.c.l.b16 %v1994
        %v2139 = vunpack.c.l.b16 %v1995
        %v2140 = vunpack.c.l.b16 %v1996
        %v2141 = vunpack.c.l.b16 %v1997
        %v2142 = vunpack.c.l.b16 %v1998
        %v2143 = vunpack.c.l.b16 %v1999
        %v2144 = vunpack.c.l.b16 %v2000
        %v2145 = vunpack.c.l.b16 %v2001
        %v2146 = vunpack.c.l.b16 %v2002
        %v2147 = vunpack.c.l.b16 %v2003
        %v2148 = vunpack.c.l.b16 %v2004
        %v2149 = vunpack.c.l.b16 %v2005
        %v2150 = vunpack.c.l.b16 %v2006
        %v2151 = vunpack.c.l.b16 %v2007
        %v2152 = vunpack.c.l.b16 %v2008
        %v2153 = vunpack.c.l.b16 %v2009
        %v2154 = vunpack.c.l.b16 %v2010
        %v2155 = vunpack.c.l.b16 %v2011
        %v2156 = vunpack.c.l.b16 %v2012
        %v2157 = vpack.c.b16 %v2094, %v2093
        %v2158 = vpack.c.b16 %v2096, %v2095
        %v2159 = vpack.c.b16 %v2098, %v2097
        %v2160 = vpack.c.b16 %v2100, %v2099
        %v2161 = vpack.c.b16 %v2102, %v2101
        %v2162 = vpack.c.b16 %v2104, %v2103
        %v2163 = vpack.c.b16 %v2106, %v2105
        %v2164 = vpack.c.b16 %v2108, %v2107
        %v2165 = vpack.c.b16 %v2110, %v2109
        %v2166 = vpack.c.b16 %v2112, %v2111
        %v2167 = vpack.c.b16 %v2114, %v2113
        %v2168 = vpack.c.b16 %v2116, %v2115
        %v2169 = vpack.c.b16 %v2118, %v2117
        %v2170 = vpack.c.b16 %v2120, %v2119
        %v2171 = vpack.c.b16 %v2122, %v2121
        %v2172 = vpack.c.b16 %v2124, %v2123
        %v2173 = vpack.c.b16 %v2126, %v2125
        %v2174 = vpack.c.b16 %v2128, %v2127
        %v2175 = vpack.c.b16 %v2130, %v2129
        %v2176 = vpack.c.b16 %v2132, %v2131
        %v2177 = vpack.c.b16 %v2134, %v2133
        %v2178 = vpack.c.b16 %v2136, %v2135
        %v2179 = vpack.c.b16 %v2138, %v2137
        %v2180 = vpack.c.b16 %v2140, %v2139
        %v2181 = vpack.c.b16 %v2142, %v2141
        %v2182 = vpack.c.b16 %v2144, %v2143
        %v2183 = vpack.c.b16 %v2146, %v2145
        %v2184 = vpack.c.b16 %v2148, %v2147
        %v2185 = vpack.c.b16 %v2150, %v2149
        %v2186 = vpack.c.b16 %v2152, %v2151
        %v2187 = vpack.c.b16 %v2154, %v2153
        %v2188 = vpack.c.b16 %v2156, %v2155
        %2221 = vmatprep.subr.bf16.mxu0 0
        %2222 = vmatpush1.bf16.msra.mxu0 %v2164
        %2223 = vmatprep.subr.bf16.mxu0 0
        %2224 = vmatpush1.bf16.msra.mxu0 %v2163
        %2225 = vmatprep.subr.bf16.mxu0 0
        %2226 = vmatpush1.bf16.msra.mxu0 %v2162
        %2227 = vmatprep.subr.bf16.mxu0 0
        %2228 = vmatpush1.bf16.msra.mxu0 %v2161
        %2229 = vmatprep.subr.bf16.mxu0 0
        %2230 = vmatpush1.bf16.msra.mxu0 %v2160
        %2231 = vmatprep.subr.bf16.mxu0 0
        %2232 = vmatpush1.bf16.msra.mxu0 %v2159
        %2233 = vmatprep.subr.bf16.mxu0 0
        %2234 = vmatpush1.bf16.msra.mxu0 %v2158
        %2235 = vmatprep.subr.bf16.mxu0 0
        %2236 = vmatpush1.bf16.msra.mxu0 %v2157
        %2237 = vmatprep.subr.bf16.mxu0 0
        %2238 = vmatpush2.bf16.msra.mxu0 %v2172
        %2239 = vmatprep.subr.bf16.mxu0 0
        %2240 = vmatpush2.bf16.msra.mxu0 %v2171
        %2241 = vmatprep.subr.bf16.mxu0 0
        %2242 = vmatpush2.bf16.msra.mxu0 %v2170
        %2243 = vmatprep.subr.bf16.mxu0 0
        %2244 = vmatpush2.bf16.msra.mxu0 %v2169
        %2245 = vmatprep.subr.bf16.mxu0 0
        %2246 = vmatpush2.bf16.msra.mxu0 %v2168
        %2247 = vmatprep.subr.bf16.mxu0 0
        %2248 = vmatpush2.bf16.msra.mxu0 %v2167
        %2249 = vmatprep.subr.bf16.mxu0 0
        %2250 = vmatpush2.bf16.msra.mxu0 %v2166
        %2251 = vmatprep.subr.bf16.mxu0 0
        %2252 = vmatpush2.bf16.msra.mxu0 %v2165
        %2253 = vmatprep.mubr.bf16.mxu0 %v2014
        %2254 = vmatmul.mubr.bf16.gmra.mxu0 %v2013
        %v2255 = vpop.f32.mrf.mxu0
        %v2256 = vadd.f32 0.0, %v2255
        %v2257 = vpop.f32.mrf.mxu0
        %v2258 = vpop.f32.mrf.mxu0
        %v2259 = vadd.f32 0.0, %v2258
        %v2260 = vpop.f32.mrf.mxu0
        %2261 = vmatprep.mubr.bf16.mxu0 %v2018
        %2262 = vmatmul.mubr.bf16.gmra.mxu0 %v2017
        %v2263 = vpop.f32.mrf.mxu0
        %v2264 = vadd.f32 0.0, %v2263
        %v2265 = vpop.f32.mrf.mxu0
        %v2266 = vpop.f32.mrf.mxu0
        %v2267 = vadd.f32 0.0, %v2266
        %v2268 = vpop.f32.mrf.mxu0
        %2269 = vmatprep.mubr.bf16.mxu0 %v2022
        %2270 = vmatmul.mubr.bf16.gmra.mxu0 %v2021
        %v2271 = vpop.f32.mrf.mxu0
        %v2272 = vadd.f32 0.0, %v2271
        %v2273 = vpop.f32.mrf.mxu0
        %v2274 = vpop.f32.mrf.mxu0
        %v2275 = vadd.f32 0.0, %v2274
        %v2276 = vpop.f32.mrf.mxu0
        %2277 = vmatprep.mubr.bf16.mxu0 %v2026
        %2278 = vmatmul.mubr.bf16.gmra.mxu0 %v2025
        %v2279 = vpop.f32.mrf.mxu0
        %v2280 = vadd.f32 0.0, %v2279
        %v2281 = vpop.f32.mrf.mxu0
        %v2282 = vpop.f32.mrf.mxu0
        %v2283 = vadd.f32 0.0, %v2282
        %v2284 = vpop.f32.mrf.mxu0
        %2285 = vdwg.mxu0
        %2286 = vmatprep.subr.bf16.mxu0 0
        %2287 = vmatpush1.bf16.msra.mxu0 %v2180
        %2288 = vmatprep.subr.bf16.mxu0 0
        %2289 = vmatpush1.bf16.msra.mxu0 %v2179
        %2290 = vmatprep.subr.bf16.mxu0 0
        %2291 = vmatpush1.bf16.msra.mxu0 %v2178
        %2292 = vmatprep.subr.bf16.mxu0 0
        %2293 = vmatpush1.bf16.msra.mxu0 %v2177
        %2294 = vmatprep.subr.bf16.mxu0 0
        %2295 = vmatpush1.bf16.msra.mxu0 %v2176
        %2296 = vmatprep.subr.bf16.mxu0 0
        %2297 = vmatpush1.bf16.msra.mxu0 %v2175
        %2298 = vmatprep.subr.bf16.mxu0 0
        %2299 = vmatpush1.bf16.msra.mxu0 %v2174
        %2300 = vmatprep.subr.bf16.mxu0 0
        %2301 = vmatpush1.bf16.msra.mxu0 %v2173
        %2302 = vmatprep.subr.bf16.mxu0 0
        %2303 = vmatpush2.bf16.msra.mxu0 %v2188
        %2304 = vmatprep.subr.bf16.mxu0 0
        %2305 = vmatpush2.bf16.msra.mxu0 %v2187
        %2306 = vmatprep.subr.bf16.mxu0 0
        %2307 = vmatpush2.bf16.msra.mxu0 %v2186
        %2308 = vmatprep.subr.bf16.mxu0 0
        %2309 = vmatpush2.bf16.msra.mxu0 %v2185
        %2310 = vmatprep.subr.bf16.mxu0 0
        %2311 = vmatpush2.bf16.msra.mxu0 %v2184
        %2312 = vmatprep.subr.bf16.mxu0 0
        %2313 = vmatpush2.bf16.msra.mxu0 %v2183
        %2314 = vmatprep.subr.bf16.mxu0 0
        %2315 = vmatpush2.bf16.msra.mxu0 %v2182
        %2316 = vmatprep.subr.bf16.mxu0 0
        %2317 = vmatpush2.bf16.msra.mxu0 %v2181
        %2318 = vmatprep.mubr.bf16.mxu0 %v2016
        %2319 = vmatmul.mubr.bf16.gmra.mxu0 %v2015
        %v2320 = vpop.f32.mrf.mxu0
        %v2321 = vadd.f32 %v2256, %v2320
        %v2322 = vpop.f32.mrf.mxu0
        %v2323 = vpop.f32.mrf.mxu0
        %v2324 = vadd.f32 %v2259, %v2323
        %v2325 = vpop.f32.mrf.mxu0
        %2326 = vmatprep.mubr.bf16.mxu0 %v2020
        %2327 = vmatmul.mubr.bf16.gmra.mxu0 %v2019
        %v2328 = vpop.f32.mrf.mxu0
        %v2329 = vadd.f32 %v2264, %v2328
        %v2330 = vpop.f32.mrf.mxu0
        %v2331 = vpop.f32.mrf.mxu0
        %v2332 = vadd.f32 %v2267, %v2331
        %v2333 = vpop.f32.mrf.mxu0
        %2334 = vmatprep.mubr.bf16.mxu0 %v2024
        %2335 = vmatmul.mubr.bf16.gmra.mxu0 %v2023
        %v2336 = vpop.f32.mrf.mxu0
        %v2337 = vadd.f32 %v2272, %v2336
        %v2338 = vpop.f32.mrf.mxu0
        %v2339 = vpop.f32.mrf.mxu0
        %v2340 = vadd.f32 %v2275, %v2339
        %v2341 = vpop.f32.mrf.mxu0
        %2342 = vmatprep.mubr.bf16.mxu0 %v2028
        %2343 = vmatmul.mubr.bf16.gmra.mxu0 %v2027
        %v2344 = vpop.f32.mrf.mxu0
        %v2345 = vadd.f32 %v2280, %v2344
        %v2346 = vpop.f32.mrf.mxu0
        %v2347 = vpop.f32.mrf.mxu0
        %v2348 = vadd.f32 %v2283, %v2347
        %v2349 = vpop.f32.mrf.mxu0
        %2350 = vdwg.mxu0
        %v2351 = vadd.f32 %v1915, %v2321
        %v2352 = vadd.f32 %v1918, %v2324
        %v2353 = vadd.f32 %v1923, %v2329
        %v2354 = vadd.f32 %v1926, %v2332
        %v2355 = vadd.f32 %v1931, %v2337
        %v2356 = vadd.f32 %v1934, %v2340
        %v2357 = vadd.f32 %v1939, %v2345
        %v2358 = vadd.f32 %v1942, %v2348
        %v2359 = vld [vmem:[#allocation2 + $0x20] sm:$0xfe]
        %v2360 = vld [vmem:[#allocation2 + $0x28] sm:$0xfe]
        %v2361 = vld [vmem:[#allocation2 + $0x30] sm:$0xfe]
        %v2362 = vld [vmem:[#allocation2 + $0x38] sm:$0xfe]
        %v2363 = vld [vmem:[#allocation2 + $0x40] sm:$0xff]
        %v2364 = vld [vmem:[#allocation2 + $0x48] sm:$0xff]
        %v2365 = vld [vmem:[#allocation2 + $0x50] sm:$0xff]
        %v2366 = vld [vmem:[#allocation2 + $0x58] sm:$0xff]
        %v2367 = vld [vmem:[#allocation2 + $0x60] sm:$0xff]
        %v2368 = vld [vmem:[#allocation2 + $0x68] sm:$0xff]
        %v2369 = vld [vmem:[#allocation2 + $0x70] sm:$0xff]
        %v2370 = vld [vmem:[#allocation2 + $0x78] sm:$0xff]
        %v2371 = vld [vmem:[#allocation2 + $0x80] sm:$0xff]
        %v2372 = vld [vmem:[#allocation2 + $0x88] sm:$0xff]
        %v2373 = vld [vmem:[#allocation2 + $0x90] sm:$0xff]
        %v2374 = vld [vmem:[#allocation2 + $0x98] sm:$0xff]
        %v2375 = vld [vmem:[#allocation2 + $0xa0] sm:$0xff]
        %v2376 = vld [vmem:[#allocation2 + $0xa8] sm:$0xff]
        %v2377 = vld [vmem:[#allocation2 + $0xb0] sm:$0xff]
        %v2378 = vld [vmem:[#allocation2 + $0xb8] sm:$0xff]
        %v2379 = vld [vmem:[#allocation2 + $0xc0] sm:$0xff]
        %v2380 = vld [vmem:[#allocation2 + $0xc8] sm:$0xff]
        %v2381 = vld [vmem:[#allocation2 + $0xd0] sm:$0xff]
        %v2382 = vld [vmem:[#allocation2 + $0xd8] sm:$0xff]
        %v2383 = vld [vmem:[#allocation2 + $0xe0] sm:$0xff]
        %v2384 = vld [vmem:[#allocation2 + $0xe8] sm:$0xff]
        %v2385 = vld [vmem:[#allocation2 + $0xf0] sm:$0xff]
        %v2386 = vld [vmem:[#allocation2 + $0xf8] sm:$0xff]
        %v2387 = vld [vmem:[#allocation2 + $0x100] sm:$0xff]
        %v2388 = vld [vmem:[#allocation2 + $0x108] sm:$0xff]
        %v2389 = vld [vmem:[#allocation2 + $0x110] sm:$0xff]
        %v2390 = vld [vmem:[#allocation2 + $0x118] sm:$0xff]
        %v2391 = vld [vmem:[#allocation2 + $0x120] sm:$0x1]
        %v2392 = vld [vmem:[#allocation2 + $0x128] sm:$0x1]
        %v2393 = vld [vmem:[#allocation2 + $0x130] sm:$0x1]
        %v2394 = vld [vmem:[#allocation2 + $0x138] sm:$0x1]
        %v2395 = vld [vmem:[%s2 + $0x300] sm:$0xf]
        %v2396 = vld [vmem:[%s2 + $0x304] sm:$0xf]
        %v2397 = vld [vmem:[%s2 + $0x308] sm:$0xf]
        %v2398 = vld [vmem:[%s2 + $0x30c] sm:$0xf]
        %v2399 = vld [vmem:[%s2 + $0x310] sm:$0xf]
        %v2400 = vld [vmem:[%s2 + $0x314] sm:$0xf]
        %v2401 = vld [vmem:[%s2 + $0x318] sm:$0xf]
        %v2402 = vld [vmem:[%s2 + $0x31c] sm:$0xf]
        %v2403 = vld [vmem:[%s2 + $0x320] sm:$0xf]
        %v2404 = vld [vmem:[%s2 + $0x324] sm:$0xf]
        %v2405 = vld [vmem:[%s2 + $0x328] sm:$0xf]
        %v2406 = vld [vmem:[%s2 + $0x32c] sm:$0xf]
        %v2407 = vld [vmem:[%s2 + $0x330] sm:$0xf]
        %v2408 = vld [vmem:[%s2 + $0x334] sm:$0xf]
        %v2409 = vld [vmem:[%s2 + $0x338] sm:$0xf]
        %v2410 = vld [vmem:[%s2 + $0x33c] sm:$0xf]
        %v2411 = vld [vmem:[%s2 + $0x340] sm:$0xf]
        %v2412 = vld [vmem:[%s2 + $0x344] sm:$0xf]
        %v2413 = vld [vmem:[%s2 + $0x348] sm:$0xf]
        %v2414 = vld [vmem:[%s2 + $0x34c] sm:$0xf]
        %v2415 = vld [vmem:[%s2 + $0x350] sm:$0xf]
        %v2416 = vld [vmem:[%s2 + $0x354] sm:$0xf]
        %v2417 = vld [vmem:[%s2 + $0x358] sm:$0xf]
        %v2418 = vld [vmem:[%s2 + $0x35c] sm:$0xf]
        %v2419 = vld [vmem:[%s2 + $0x360] sm:$0xf]
        %v2420 = vld [vmem:[%s2 + $0x364] sm:$0xf]
        %v2421 = vld [vmem:[%s2 + $0x368] sm:$0xf]
        %v2422 = vld [vmem:[%s2 + $0x36c] sm:$0xf]
        %v2423 = vld [vmem:[%s2 + $0x370] sm:$0xf]
        %v2424 = vld [vmem:[%s2 + $0x374] sm:$0xf]
        %v2425 = vld [vmem:[%s2 + $0x378] sm:$0xf]
        %v2426 = vld [vmem:[%s2 + $0x37c] sm:$0xf]
        %v2427 = vld [vmem:[%s2 + $0x380] sm:$0xf]
        %v2428 = vld [vmem:[%s2 + $0x384] sm:$0xf]
        %v2429 = vld [vmem:[%s2 + $0x388] sm:$0xf]
        %v2430 = vld [vmem:[%s2 + $0x38c] sm:$0xf]
        %v2431 = vld [vmem:[%s2 + $0x390] sm:$0xf]
        %v2432 = vld [vmem:[%s2 + $0x394] sm:$0xf]
        %v2433 = vld [vmem:[%s2 + $0x398] sm:$0xf]
        %v2434 = vld [vmem:[%s2 + $0x39c] sm:$0xf]
        %v2435 = vld [vmem:[%s2 + $0x3a0] sm:$0xf]
        %v2436 = vld [vmem:[%s2 + $0x3a4] sm:$0xf]
        %v2437 = vld [vmem:[%s2 + $0x3a8] sm:$0xf]
        %v2438 = vld [vmem:[%s2 + $0x3ac] sm:$0xf]
        %v2439 = vld [vmem:[%s2 + $0x3b0] sm:$0xf]
        %v2440 = vld [vmem:[%s2 + $0x3b4] sm:$0xf]
        %v2441 = vld [vmem:[%s2 + $0x3b8] sm:$0xf]
        %v2442 = vld [vmem:[%s2 + $0x3bc] sm:$0xf]
        %v2443 = vld [vmem:[%s2 + $0x3c0] sm:$0xf]
        %v2444 = vld [vmem:[%s2 + $0x3c4] sm:$0xf]
        %v2445 = vld [vmem:[%s2 + $0x3c8] sm:$0xf]
        %v2446 = vld [vmem:[%s2 + $0x3cc] sm:$0xf]
        %v2447 = vld [vmem:[%s2 + $0x3d0] sm:$0xf]
        %v2448 = vld [vmem:[%s2 + $0x3d4] sm:$0xf]
        %v2449 = vld [vmem:[%s2 + $0x3d8] sm:$0xf]
        %v2450 = vld [vmem:[%s2 + $0x3dc] sm:$0xf]
        %v2451 = vld [vmem:[%s2 + $0x3e0] sm:$0xf]
        %v2452 = vld [vmem:[%s2 + $0x3e4] sm:$0xf]
        %v2453 = vld [vmem:[%s2 + $0x3e8] sm:$0xf]
        %v2454 = vld [vmem:[%s2 + $0x3ec] sm:$0xf]
        %v2455 = vld [vmem:[%s2 + $0x3f0] sm:$0xf]
        %v2456 = vld [vmem:[%s2 + $0x3f4] sm:$0xf]
        %v2457 = vld [vmem:[%s2 + $0x3f8] sm:$0xf]
        %v2458 = vld [vmem:[%s2 + $0x3fc] sm:$0xf]
        %v2459 = vpack.c.bf16 %v2363, %v2359
        %v2460 = vpack.c.bf16 %v2364, %v2360
        %v2461 = vpack.c.bf16 %v2365, %v2361
        %v2462 = vpack.c.bf16 %v2366, %v2362
        %v2463 = vpack.c.bf16 %v2371, %v2367
        %v2464 = vpack.c.bf16 %v2372, %v2368
        %v2465 = vpack.c.bf16 %v2373, %v2369
        %v2466 = vpack.c.bf16 %v2374, %v2370
        %v2467 = vpack.c.bf16 %v2379, %v2375
        %v2468 = vpack.c.bf16 %v2380, %v2376
        %v2469 = vpack.c.bf16 %v2381, %v2377
        %v2470 = vpack.c.bf16 %v2382, %v2378
        %v2471 = vpack.c.bf16 %v2387, %v2383
        %v2472 = vpack.c.bf16 %v2388, %v2384
        %v2473 = vpack.c.bf16 %v2389, %v2385
        %v2474 = vpack.c.bf16 %v2390, %v2386
        %v2475 = vpack.c.bf16 %v2391, %v2391
        %v2476 = vpack.c.bf16 %v2392, %v2392
        %v2477 = vpack.c.bf16 %v2393, %v2393
        %v2478 = vpack.c.bf16 %v2394, %v2394
        %v2480 = vshrl.u32 %v2459, 16
        %v2482 = vshll.u32 %v2459, 16
        %v2484 = vrot.slane %v2482, 1
        %v2485 = vor.u32 %v2480, %v2484
        %v2487 = vshll.u32 %v2463, 16
        %v2489 = vrot.slane %v2487, 1
        %v2490 = vsel %vm1140, %v2485, %v2489
        %v2492 = vshrl.u32 %v2460, 16
        %v2494 = vshll.u32 %v2460, 16
        %v2496 = vrot.slane %v2494, 1
        %v2497 = vor.u32 %v2492, %v2496
        %v2499 = vshll.u32 %v2464, 16
        %v2501 = vrot.slane %v2499, 1
        %v2502 = vsel %vm1140, %v2497, %v2501
        %v2504 = vshrl.u32 %v2461, 16
        %v2506 = vshll.u32 %v2461, 16
        %v2508 = vrot.slane %v2506, 1
        %v2509 = vor.u32 %v2504, %v2508
        %v2511 = vshll.u32 %v2465, 16
        %v2513 = vrot.slane %v2511, 1
        %v2514 = vsel %vm1140, %v2509, %v2513
        %v2516 = vshrl.u32 %v2462, 16
        %v2518 = vshll.u32 %v2462, 16
        %v2520 = vrot.slane %v2518, 1
        %v2521 = vor.u32 %v2516, %v2520
        %v2523 = vshll.u32 %v2466, 16
        %v2525 = vrot.slane %v2523, 1
        %v2526 = vsel %vm1140, %v2521, %v2525
        %v2527 = vshrl.u32 %v2463, 16
        %v2529 = vor.u32 %v2527, %v2489
        %v2531 = vshll.u32 %v2467, 16
        %v2533 = vrot.slane %v2531, 1
        %v2534 = vsel %vm1140, %v2529, %v2533
        %v2535 = vshrl.u32 %v2464, 16
        %v2537 = vor.u32 %v2535, %v2501
        %v2539 = vshll.u32 %v2468, 16
        %v2541 = vrot.slane %v2539, 1
        %v2542 = vsel %vm1140, %v2537, %v2541
        %v2543 = vshrl.u32 %v2465, 16
        %v2545 = vor.u32 %v2543, %v2513
        %v2547 = vshll.u32 %v2469, 16
        %v2549 = vrot.slane %v2547, 1
        %v2550 = vsel %vm1140, %v2545, %v2549
        %v2551 = vshrl.u32 %v2466, 16
        %v2553 = vor.u32 %v2551, %v2525
        %v2555 = vshll.u32 %v2470, 16
        %v2557 = vrot.slane %v2555, 1
        %v2558 = vsel %vm1140, %v2553, %v2557
        %v2559 = vshrl.u32 %v2467, 16
        %v2561 = vor.u32 %v2559, %v2533
        %v2563 = vshll.u32 %v2471, 16
        %v2565 = vrot.slane %v2563, 1
        %v2566 = vsel %vm1140, %v2561, %v2565
        %v2567 = vshrl.u32 %v2468, 16
        %v2569 = vor.u32 %v2567, %v2541
        %v2571 = vshll.u32 %v2472, 16
        %v2573 = vrot.slane %v2571, 1
        %v2574 = vsel %vm1140, %v2569, %v2573
        %v2575 = vshrl.u32 %v2469, 16
        %v2577 = vor.u32 %v2575, %v2549
        %v2579 = vshll.u32 %v2473, 16
        %v2581 = vrot.slane %v2579, 1
        %v2582 = vsel %vm1140, %v2577, %v2581
        %v2583 = vshrl.u32 %v2470, 16
        %v2585 = vor.u32 %v2583, %v2557
        %v2587 = vshll.u32 %v2474, 16
        %v2589 = vrot.slane %v2587, 1
        %v2590 = vsel %vm1140, %v2585, %v2589
        %v2591 = vshrl.u32 %v2471, 16
        %v2593 = vor.u32 %v2591, %v2565
        %v2595 = vshll.u32 %v2475, 16
        %v2597 = vrot.slane %v2595, 1
        %v2598 = vsel %vm1140, %v2593, %v2597
        %v2599 = vshrl.u32 %v2472, 16
        %v2601 = vor.u32 %v2599, %v2573
        %v2603 = vshll.u32 %v2476, 16
        %v2605 = vrot.slane %v2603, 1
        %v2606 = vsel %vm1140, %v2601, %v2605
        %v2607 = vshrl.u32 %v2473, 16
        %v2609 = vor.u32 %v2607, %v2581
        %v2611 = vshll.u32 %v2477, 16
        %v2613 = vrot.slane %v2611, 1
        %v2614 = vsel %vm1140, %v2609, %v2613
        %v2615 = vshrl.u32 %v2474, 16
        %v2617 = vor.u32 %v2615, %v2589
        %v2619 = vshll.u32 %v2478, 16
        %v2621 = vrot.slane %v2619, 1
        %v2622 = vsel %vm1140, %v2617, %v2621
        %v2703 = vunpack.c.l.b16 %v2395
        %v2704 = vunpack.c.l.b16 %v2396
        %v2705 = vunpack.c.l.b16 %v2397
        %v2706 = vunpack.c.l.b16 %v2398
        %v2707 = vunpack.c.l.b16 %v2399
        %v2708 = vunpack.c.l.b16 %v2400
        %v2709 = vunpack.c.l.b16 %v2401
        %v2710 = vunpack.c.l.b16 %v2402
        %v2711 = vunpack.c.l.b16 %v2403
        %v2712 = vunpack.c.l.b16 %v2404
        %v2713 = vunpack.c.l.b16 %v2405
        %v2714 = vunpack.c.l.b16 %v2406
        %v2715 = vunpack.c.l.b16 %v2407
        %v2716 = vunpack.c.l.b16 %v2408
        %v2717 = vunpack.c.l.b16 %v2409
        %v2718 = vunpack.c.l.b16 %v2410
        %v2719 = vunpack.c.l.b16 %v2411
        %v2720 = vunpack.c.l.b16 %v2412
        %v2721 = vunpack.c.l.b16 %v2413
        %v2722 = vunpack.c.l.b16 %v2414
        %v2723 = vunpack.c.l.b16 %v2415
        %v2724 = vunpack.c.l.b16 %v2416
        %v2725 = vunpack.c.l.b16 %v2417
        %v2726 = vunpack.c.l.b16 %v2418
        %v2727 = vunpack.c.l.b16 %v2419
        %v2728 = vunpack.c.l.b16 %v2420
        %v2729 = vunpack.c.l.b16 %v2421
        %v2730 = vunpack.c.l.b16 %v2422
        %v2731 = vunpack.c.l.b16 %v2423
        %v2732 = vunpack.c.l.b16 %v2424
        %v2733 = vunpack.c.l.b16 %v2425
        %v2734 = vunpack.c.l.b16 %v2426
        %v2735 = vunpack.c.l.b16 %v2427
        %v2736 = vunpack.c.l.b16 %v2428
        %v2737 = vunpack.c.l.b16 %v2429
        %v2738 = vunpack.c.l.b16 %v2430
        %v2739 = vunpack.c.l.b16 %v2431
        %v2740 = vunpack.c.l.b16 %v2432
        %v2741 = vunpack.c.l.b16 %v2433
        %v2742 = vunpack.c.l.b16 %v2434
        %v2743 = vunpack.c.l.b16 %v2435
        %v2744 = vunpack.c.l.b16 %v2436
        %v2745 = vunpack.c.l.b16 %v2437
        %v2746 = vunpack.c.l.b16 %v2438
        %v2747 = vunpack.c.l.b16 %v2439
        %v2748 = vunpack.c.l.b16 %v2440
        %v2749 = vunpack.c.l.b16 %v2441
        %v2750 = vunpack.c.l.b16 %v2442
        %v2751 = vunpack.c.l.b16 %v2443
        %v2752 = vunpack.c.l.b16 %v2444
        %v2753 = vunpack.c.l.b16 %v2445
        %v2754 = vunpack.c.l.b16 %v2446
        %v2755 = vunpack.c.l.b16 %v2447
        %v2756 = vunpack.c.l.b16 %v2448
        %v2757 = vunpack.c.l.b16 %v2449
        %v2758 = vunpack.c.l.b16 %v2450
        %v2759 = vunpack.c.l.b16 %v2451
        %v2760 = vunpack.c.l.b16 %v2452
        %v2761 = vunpack.c.l.b16 %v2453
        %v2762 = vunpack.c.l.b16 %v2454
        %v2763 = vunpack.c.l.b16 %v2455
        %v2764 = vunpack.c.l.b16 %v2456
        %v2765 = vunpack.c.l.b16 %v2457
        %v2766 = vunpack.c.l.b16 %v2458
        %v2767 = vpack.c.b16 %v2704, %v2703
        %v2768 = vpack.c.b16 %v2706, %v2705
        %v2769 = vpack.c.b16 %v2708, %v2707
        %v2770 = vpack.c.b16 %v2710, %v2709
        %v2771 = vpack.c.b16 %v2712, %v2711
        %v2772 = vpack.c.b16 %v2714, %v2713
        %v2773 = vpack.c.b16 %v2716, %v2715
        %v2774 = vpack.c.b16 %v2718, %v2717
        %v2775 = vpack.c.b16 %v2720, %v2719
        %v2776 = vpack.c.b16 %v2722, %v2721
        %v2777 = vpack.c.b16 %v2724, %v2723
        %v2778 = vpack.c.b16 %v2726, %v2725
        %v2779 = vpack.c.b16 %v2728, %v2727
        %v2780 = vpack.c.b16 %v2730, %v2729
        %v2781 = vpack.c.b16 %v2732, %v2731
        %v2782 = vpack.c.b16 %v2734, %v2733
        %v2783 = vpack.c.b16 %v2736, %v2735
        %v2784 = vpack.c.b16 %v2738, %v2737
        %v2785 = vpack.c.b16 %v2740, %v2739
        %v2786 = vpack.c.b16 %v2742, %v2741
        %v2787 = vpack.c.b16 %v2744, %v2743
        %v2788 = vpack.c.b16 %v2746, %v2745
        %v2789 = vpack.c.b16 %v2748, %v2747
        %v2790 = vpack.c.b16 %v2750, %v2749
        %v2791 = vpack.c.b16 %v2752, %v2751
        %v2792 = vpack.c.b16 %v2754, %v2753
        %v2793 = vpack.c.b16 %v2756, %v2755
        %v2794 = vpack.c.b16 %v2758, %v2757
        %v2795 = vpack.c.b16 %v2760, %v2759
        %v2796 = vpack.c.b16 %v2762, %v2761
        %v2797 = vpack.c.b16 %v2764, %v2763
        %v2798 = vpack.c.b16 %v2766, %v2765
        %2831 = vmatprep.subr.bf16.mxu0 0
        %2832 = vmatpush1.bf16.msra.mxu0 %v2774
        %2833 = vmatprep.subr.bf16.mxu0 0
        %2834 = vmatpush1.bf16.msra.mxu0 %v2773
        %2835 = vmatprep.subr.bf16.mxu0 0
        %2836 = vmatpush1.bf16.msra.mxu0 %v2772
        %2837 = vmatprep.subr.bf16.mxu0 0
        %2838 = vmatpush1.bf16.msra.mxu0 %v2771
        %2839 = vmatprep.subr.bf16.mxu0 0
        %2840 = vmatpush1.bf16.msra.mxu0 %v2770
        %2841 = vmatprep.subr.bf16.mxu0 0
        %2842 = vmatpush1.bf16.msra.mxu0 %v2769
        %2843 = vmatprep.subr.bf16.mxu0 0
        %2844 = vmatpush1.bf16.msra.mxu0 %v2768
        %2845 = vmatprep.subr.bf16.mxu0 0
        %2846 = vmatpush1.bf16.msra.mxu0 %v2767
        %2847 = vmatprep.subr.bf16.mxu0 0
        %2848 = vmatpush2.bf16.msra.mxu0 %v2782
        %2849 = vmatprep.subr.bf16.mxu0 0
        %2850 = vmatpush2.bf16.msra.mxu0 %v2781
        %2851 = vmatprep.subr.bf16.mxu0 0
        %2852 = vmatpush2.bf16.msra.mxu0 %v2780
        %2853 = vmatprep.subr.bf16.mxu0 0
        %2854 = vmatpush2.bf16.msra.mxu0 %v2779
        %2855 = vmatprep.subr.bf16.mxu0 0
        %2856 = vmatpush2.bf16.msra.mxu0 %v2778
        %2857 = vmatprep.subr.bf16.mxu0 0
        %2858 = vmatpush2.bf16.msra.mxu0 %v2777
        %2859 = vmatprep.subr.bf16.mxu0 0
        %2860 = vmatpush2.bf16.msra.mxu0 %v2776
        %2861 = vmatprep.subr.bf16.mxu0 0
        %2862 = vmatpush2.bf16.msra.mxu0 %v2775
        %2863 = vmatprep.mubr.bf16.mxu0 %v2502
        %2864 = vmatmul.mubr.bf16.gmra.mxu0 %v2490
        %v2865 = vpop.f32.mrf.mxu0
        %v2866 = vadd.f32 0.0, %v2865
        %v2867 = vpop.f32.mrf.mxu0
        %v2868 = vpop.f32.mrf.mxu0
        %v2869 = vadd.f32 0.0, %v2868
        %v2870 = vpop.f32.mrf.mxu0
        %2871 = vmatprep.mubr.bf16.mxu0 %v2542
        %2872 = vmatmul.mubr.bf16.gmra.mxu0 %v2534
        %v2873 = vpop.f32.mrf.mxu0
        %v2874 = vadd.f32 0.0, %v2873
        %v2875 = vpop.f32.mrf.mxu0
        %v2876 = vpop.f32.mrf.mxu0
        %v2877 = vadd.f32 0.0, %v2876
        %v2878 = vpop.f32.mrf.mxu0
        %2879 = vmatprep.mubr.bf16.mxu0 %v2574
        %2880 = vmatmul.mubr.bf16.gmra.mxu0 %v2566
        %v2881 = vpop.f32.mrf.mxu0
        %v2882 = vadd.f32 0.0, %v2881
        %v2883 = vpop.f32.mrf.mxu0
        %v2884 = vpop.f32.mrf.mxu0
        %v2885 = vadd.f32 0.0, %v2884
        %v2886 = vpop.f32.mrf.mxu0
        %2887 = vmatprep.mubr.bf16.mxu0 %v2606
        %2888 = vmatmul.mubr.bf16.gmra.mxu0 %v2598
        %v2889 = vpop.f32.mrf.mxu0
        %v2890 = vadd.f32 0.0, %v2889
        %v2891 = vpop.f32.mrf.mxu0
        %v2892 = vpop.f32.mrf.mxu0
        %v2893 = vadd.f32 0.0, %v2892
        %v2894 = vpop.f32.mrf.mxu0
        %2895 = vdwg.mxu0
        %2896 = vmatprep.subr.bf16.mxu0 0
        %2897 = vmatpush1.bf16.msra.mxu0 %v2790
        %2898 = vmatprep.subr.bf16.mxu0 0
        %2899 = vmatpush1.bf16.msra.mxu0 %v2789
        %2900 = vmatprep.subr.bf16.mxu0 0
        %2901 = vmatpush1.bf16.msra.mxu0 %v2788
        %2902 = vmatprep.subr.bf16.mxu0 0
        %2903 = vmatpush1.bf16.msra.mxu0 %v2787
        %2904 = vmatprep.subr.bf16.mxu0 0
        %2905 = vmatpush1.bf16.msra.mxu0 %v2786
        %2906 = vmatprep.subr.bf16.mxu0 0
        %2907 = vmatpush1.bf16.msra.mxu0 %v2785
        %2908 = vmatprep.subr.bf16.mxu0 0
        %2909 = vmatpush1.bf16.msra.mxu0 %v2784
        %2910 = vmatprep.subr.bf16.mxu0 0
        %2911 = vmatpush1.bf16.msra.mxu0 %v2783
        %2912 = vmatprep.subr.bf16.mxu0 0
        %2913 = vmatpush2.bf16.msra.mxu0 %v2798
        %2914 = vmatprep.subr.bf16.mxu0 0
        %2915 = vmatpush2.bf16.msra.mxu0 %v2797
        %2916 = vmatprep.subr.bf16.mxu0 0
        %2917 = vmatpush2.bf16.msra.mxu0 %v2796
        %2918 = vmatprep.subr.bf16.mxu0 0
        %2919 = vmatpush2.bf16.msra.mxu0 %v2795
        %2920 = vmatprep.subr.bf16.mxu0 0
        %2921 = vmatpush2.bf16.msra.mxu0 %v2794
        %2922 = vmatprep.subr.bf16.mxu0 0
        %2923 = vmatpush2.bf16.msra.mxu0 %v2793
        %2924 = vmatprep.subr.bf16.mxu0 0
        %2925 = vmatpush2.bf16.msra.mxu0 %v2792
        %2926 = vmatprep.subr.bf16.mxu0 0
        %2927 = vmatpush2.bf16.msra.mxu0 %v2791
        %2928 = vmatprep.mubr.bf16.mxu0 %v2526
        %2929 = vmatmul.mubr.bf16.gmra.mxu0 %v2514
        %v2930 = vpop.f32.mrf.mxu0
        %v2931 = vadd.f32 %v2866, %v2930
        %v2932 = vpop.f32.mrf.mxu0
        %v2933 = vpop.f32.mrf.mxu0
        %v2934 = vadd.f32 %v2869, %v2933
        %v2935 = vpop.f32.mrf.mxu0
        %2936 = vmatprep.mubr.bf16.mxu0 %v2558
        %2937 = vmatmul.mubr.bf16.gmra.mxu0 %v2550
        %v2938 = vpop.f32.mrf.mxu0
        %v2939 = vadd.f32 %v2874, %v2938
        %v2940 = vpop.f32.mrf.mxu0
        %v2941 = vpop.f32.mrf.mxu0
        %v2942 = vadd.f32 %v2877, %v2941
        %v2943 = vpop.f32.mrf.mxu0
        %2944 = vmatprep.mubr.bf16.mxu0 %v2590
        %2945 = vmatmul.mubr.bf16.gmra.mxu0 %v2582
        %v2946 = vpop.f32.mrf.mxu0
        %v2947 = vadd.f32 %v2882, %v2946
        %v2948 = vpop.f32.mrf.mxu0
        %v2949 = vpop.f32.mrf.mxu0
        %v2950 = vadd.f32 %v2885, %v2949
        %v2951 = vpop.f32.mrf.mxu0
        %2952 = vmatprep.mubr.bf16.mxu0 %v2622
        %2953 = vmatmul.mubr.bf16.gmra.mxu0 %v2614
        %v2954 = vpop.f32.mrf.mxu0
        %v2955 = vadd.f32 %v2890, %v2954
        %v2956 = vpop.f32.mrf.mxu0
        %v2957 = vpop.f32.mrf.mxu0
        %v2958 = vadd.f32 %v2893, %v2957
        %v2959 = vpop.f32.mrf.mxu0
        %2960 = vdwg.mxu0
        %v2961 = vadd.f32 %v2351, %v2931
        %v2962 = vadd.f32 %v2352, %v2934
        %v2963 = vadd.f32 %v2353, %v2939
        %v2964 = vadd.f32 %v2354, %v2942
        %v2965 = vadd.f32 %v2355, %v2947
        %v2966 = vadd.f32 %v2356, %v2950
        %v2967 = vadd.f32 %v2357, %v2955
        %v2968 = vadd.f32 %v2358, %v2958
        %v2969 = vld [vmem:[%s3] sm:$0x1]
        %v2971 = vlaneseq
        %v2972 = vshrl.u32 %v2971, 7
        %v2973 = vsub.s32 0, %v2972
        %v2974 = vrot.slane %v2969, %v2973
        %v2976 = vadd.f32 %v2961, %v2974
        %v2977 = vadd.f32 %v2962, %v2974
        %v2978 = vadd.f32 %v2963, %v2974
        %v2979 = vadd.f32 %v2964, %v2974
        %v2980 = vadd.f32 %v2965, %v2974
        %v2981 = vadd.f32 %v2966, %v2974
        %v2982 = vadd.f32 %v2967, %v2974
        %v2983 = vadd.f32 %v2968, %v2974
        %v2984 = vmax.f32 %v2976, 0.0
        %v2985 = vmax.f32 %v2977, 0.0
        %v2986 = vmax.f32 %v2978, 0.0
        %v2987 = vmax.f32 %v2979, 0.0
        %v2988 = vmax.f32 %v2980, 0.0
        %v2989 = vmax.f32 %v2981, 0.0
        %v2990 = vmax.f32 %v2982, 0.0
        %v2991 = vmax.f32 %v2983, 0.0
        %2992 = vst.msk [vmem:[#allocation3] sm:$0xff] %vm396, %v2984
        %2993 = vst.msk [vmem:[#allocation3 + $0x8] sm:$0xff] %vm396, %v2985
        %2994 = vst.msk [vmem:[#allocation3 + $0x10] sm:$0xff] %vm396, %v2986
        %2995 = vst.msk [vmem:[#allocation3 + $0x18] sm:$0xff] %vm396, %v2987
        %2996 = vst.msk [vmem:[#allocation3 + $0x20] sm:$0xff] %vm396, %v2988
        %2997 = vst.msk [vmem:[#allocation3 + $0x28] sm:$0xff] %vm396, %v2989
        %2998 = vst.msk [vmem:[#allocation3 + $0x30] sm:$0xff] %vm396, %v2990
        %2999 = vst.msk [vmem:[#allocation3 + $0x38] sm:$0xff] %vm396, %v2991
        %v3000 = vld [vmem:[#allocation3] sm:$0xff]
        %v3001 = vld [vmem:[#allocation3 + $0x8] sm:$0xff]
        %v3002 = vld [vmem:[#allocation3 + $0x10] sm:$0xff]
        %v3003 = vld [vmem:[#allocation3 + $0x18] sm:$0xff]
        %v3004 = vld [vmem:[#allocation3 + $0x20] sm:$0xff]
        %v3005 = vld [vmem:[#allocation3 + $0x28] sm:$0xff]
        %v3006 = vld [vmem:[#allocation3 + $0x30] sm:$0xff]
        %v3007 = vld [vmem:[#allocation3 + $0x38] sm:$0xff]
        %3008 = vst.msk [vmem:[#allocation4] sm:$0xff] %vm396, %v3000
        %3009 = vst.msk [vmem:[#allocation4 + $0x8] sm:$0xff] %vm396, %v3001
        %3010 = vst.msk [vmem:[#allocation4 + $0x10] sm:$0xff] %vm396, %v3002
        %3011 = vst.msk [vmem:[#allocation4 + $0x18] sm:$0xff] %vm396, %v3003
        %3012 = vst.msk [vmem:[#allocation4 + $0x20] sm:$0xff] %vm396, %v3004
        %3013 = vst.msk [vmem:[#allocation4 + $0x28] sm:$0xff] %vm396, %v3005
        %3014 = vst.msk [vmem:[#allocation4 + $0x30] sm:$0xff] %vm396, %v3006
        %3015 = vst.msk [vmem:[#allocation4 + $0x38] sm:$0xff] %vm396, %v3007
        %v3016 = vld [vmem:[#allocation3 + $0x1] sm:$0xff]
        %v3017 = vld [vmem:[#allocation3 + $0x9] sm:$0xff]
        %v3018 = vld [vmem:[#allocation3 + $0x11] sm:$0xff]
        %v3019 = vld [vmem:[#allocation3 + $0x19] sm:$0xff]
        %v3020 = vld [vmem:[#allocation3 + $0x21] sm:$0xff]
        %v3021 = vld [vmem:[#allocation3 + $0x29] sm:$0xff]
        %v3022 = vld [vmem:[#allocation3 + $0x31] sm:$0xff]
        %v3023 = vld [vmem:[#allocation3 + $0x39] sm:$0xff]
        %3032 = vrot.lane.b32.xlu0 %v3016, 32
        %v3033 = vpop.permute.xlu0 %3032
        %3034 = vrot.lane.b32.xlu0 %v3017, 32
        %v3035 = vpop.permute.xlu0 %3034
        %3036 = vrot.lane.b32.xlu0 %v3018, 32
        %v3037 = vpop.permute.xlu0 %3036
        %3038 = vrot.lane.b32.xlu0 %v3019, 32
        %v3039 = vpop.permute.xlu0 %3038
        %3040 = vrot.lane.b32.xlu0 %v3020, 32
        %v3041 = vpop.permute.xlu0 %3040
        %3042 = vrot.lane.b32.xlu0 %v3021, 32
        %v3043 = vpop.permute.xlu0 %3042
        %3044 = vrot.lane.b32.xlu0 %v3022, 32
        %v3045 = vpop.permute.xlu0 %3044
        %3046 = vrot.lane.b32.xlu0 %v3023, 32
        %v3047 = vpop.permute.xlu0 %3046
        %vm3056 = vcmask 523520
        %3057 = vst.msk [vmem:[#allocation4] sm:$0xff] %vm3056, %v3033
        %3058 = vst.msk [vmem:[#allocation4 + $0x8] sm:$0xff] %vm3056, %v3035
        %3059 = vst.msk [vmem:[#allocation4 + $0x10] sm:$0xff] %vm3056, %v3037
        %3060 = vst.msk [vmem:[#allocation4 + $0x18] sm:$0xff] %vm3056, %v3039
        %3061 = vst.msk [vmem:[#allocation4 + $0x20] sm:$0xff] %vm3056, %v3041
        %3062 = vst.msk [vmem:[#allocation4 + $0x28] sm:$0xff] %vm3056, %v3043
        %3063 = vst.msk [vmem:[#allocation4 + $0x30] sm:$0xff] %vm3056, %v3045
        %3064 = vst.msk [vmem:[#allocation4 + $0x38] sm:$0xff] %vm3056, %v3047
        %v3065 = vld [vmem:[#allocation3 + $0x2] sm:$0xff]
        %v3066 = vld [vmem:[#allocation3 + $0xa] sm:$0xff]
        %v3067 = vld [vmem:[#allocation3 + $0x12] sm:$0xff]
        %v3068 = vld [vmem:[#allocation3 + $0x1a] sm:$0xff]
        %v3069 = vld [vmem:[#allocation3 + $0x22] sm:$0xff]
        %v3070 = vld [vmem:[#allocation3 + $0x2a] sm:$0xff]
        %v3071 = vld [vmem:[#allocation3 + $0x32] sm:$0xff]
        %v3072 = vld [vmem:[#allocation3 + $0x3a] sm:$0xff]
        %3081 = vrot.lane.b32.xlu0 %v3065, 64
        %v3082 = vpop.permute.xlu0 %3081
        %3083 = vrot.lane.b32.xlu0 %v3066, 64
        %v3084 = vpop.permute.xlu0 %3083
        %3085 = vrot.lane.b32.xlu0 %v3067, 64
        %v3086 = vpop.permute.xlu0 %3085
        %3087 = vrot.lane.b32.xlu0 %v3068, 64
        %v3088 = vpop.permute.xlu0 %3087
        %3089 = vrot.lane.b32.xlu0 %v3069, 64
        %v3090 = vpop.permute.xlu0 %3089
        %3091 = vrot.lane.b32.xlu0 %v3070, 64
        %v3092 = vpop.permute.xlu0 %3091
        %3093 = vrot.lane.b32.xlu0 %v3071, 64
        %v3094 = vpop.permute.xlu0 %3093
        %3095 = vrot.lane.b32.xlu0 %v3072, 64
        %v3096 = vpop.permute.xlu0 %3095
        %vm3105 = vcmask 785920
        %3106 = vst.msk [vmem:[#allocation4] sm:$0xff] %vm3105, %v3082
        %3107 = vst.msk [vmem:[#allocation4 + $0x8] sm:$0xff] %vm3105, %v3084
        %3108 = vst.msk [vmem:[#allocation4 + $0x10] sm:$0xff] %vm3105, %v3086
        %3109 = vst.msk [vmem:[#allocation4 + $0x18] sm:$0xff] %vm3105, %v3088
        %3110 = vst.msk [vmem:[#allocation4 + $0x20] sm:$0xff] %vm3105, %v3090
        %3111 = vst.msk [vmem:[#allocation4 + $0x28] sm:$0xff] %vm3105, %v3092
        %3112 = vst.msk [vmem:[#allocation4 + $0x30] sm:$0xff] %vm3105, %v3094
        %3113 = vst.msk [vmem:[#allocation4 + $0x38] sm:$0xff] %vm3105, %v3096
        %v3114 = vld [vmem:[#allocation3 + $0x3] sm:$0xff]
        %v3115 = vld [vmem:[#allocation3 + $0xb] sm:$0xff]
        %v3116 = vld [vmem:[#allocation3 + $0x13] sm:$0xff]
        %v3117 = vld [vmem:[#allocation3 + $0x1b] sm:$0xff]
        %v3118 = vld [vmem:[#allocation3 + $0x23] sm:$0xff]
        %v3119 = vld [vmem:[#allocation3 + $0x2b] sm:$0xff]
        %v3120 = vld [vmem:[#allocation3 + $0x33] sm:$0xff]
        %v3121 = vld [vmem:[#allocation3 + $0x3b] sm:$0xff]
        %3130 = vrot.lane.b32.xlu0 %v3114, 96
        %v3131 = vpop.permute.xlu0 %3130
        %3132 = vrot.lane.b32.xlu0 %v3115, 96
        %v3133 = vpop.permute.xlu0 %3132
        %3134 = vrot.lane.b32.xlu0 %v3116, 96
        %v3135 = vpop.permute.xlu0 %3134
        %3136 = vrot.lane.b32.xlu0 %v3117, 96
        %v3137 = vpop.permute.xlu0 %3136
        %3138 = vrot.lane.b32.xlu0 %v3118, 96
        %v3139 = vpop.permute.xlu0 %3138
        %3140 = vrot.lane.b32.xlu0 %v3119, 96
        %v3141 = vpop.permute.xlu0 %3140
        %3142 = vrot.lane.b32.xlu0 %v3120, 96
        %v3143 = vpop.permute.xlu0 %3142
        %3144 = vrot.lane.b32.xlu0 %v3121, 96
        %v3145 = vpop.permute.xlu0 %3144
        %vm3154 = vcmask 1048320
        %3155 = vst.msk [vmem:[#allocation4] sm:$0xff] %vm3154, %v3131
        %3156 = vst.msk [vmem:[#allocation4 + $0x8] sm:$0xff] %vm3154, %v3133
        %3157 = vst.msk [vmem:[#allocation4 + $0x10] sm:$0xff] %vm3154, %v3135
        %3158 = vst.msk [vmem:[#allocation4 + $0x18] sm:$0xff] %vm3154, %v3137
        %3159 = vst.msk [vmem:[#allocation4 + $0x20] sm:$0xff] %vm3154, %v3139
        %3160 = vst.msk [vmem:[#allocation4 + $0x28] sm:$0xff] %vm3154, %v3141
        %3161 = vst.msk [vmem:[#allocation4 + $0x30] sm:$0xff] %vm3154, %v3143
        %3162 = vst.msk [vmem:[#allocation4 + $0x38] sm:$0xff] %vm3154, %v3145
        %v3163 = vld [vmem:[#allocation4] ss:$2 sm:$0x3]
        %3164 = vst [vmem:[#allocation5] sm:$0x3] %v3163
        %s3165 = scalar_lea.vmem [#allocation4], 16
        %v3166 = vld [vmem:[%s3165] ss:$2 sm:$0x3]
        %v3168 = vrot.slane %v3166, 6
        %3170 = vst [vmem:[#allocation5] sm:$0xc] %v3168
        %s3171 = scalar_lea.vmem [#allocation4], 8
        %v3172 = vld [vmem:[%s3171] ss:$2 sm:$0x3]
        %3173 = vst [vmem:[#allocation5 + $0x8] sm:$0x3] %v3172
        %s3174 = scalar_lea.vmem [#allocation4], 24
        %v3175 = vld [vmem:[%s3174] ss:$2 sm:$0x3]
        %v3177 = vrot.slane %v3175, 6
        %3179 = vst [vmem:[#allocation5 + $0x8] sm:$0xc] %v3177
        %v3180 = vld [vmem:[%s3165] ss:$2 sm:$0x3]
        %3181 = vst [vmem:[#allocation5 + $0x10] sm:$0x3] %v3180
        %s3182 = scalar_lea.vmem [#allocation4], 32
        %v3183 = vld [vmem:[%s3182] ss:$2 sm:$0x3]
        %v3185 = vrot.slane %v3183, 6
        %3187 = vst [vmem:[#allocation5 + $0x10] sm:$0xc] %v3185
        %v3188 = vld [vmem:[%s3174] ss:$2 sm:$0x3]
        %3189 = vst [vmem:[#allocation5 + $0x18] sm:$0x3] %v3188
        %s3190 = scalar_lea.vmem [#allocation4], 40
        %v3191 = vld [vmem:[%s3190] ss:$2 sm:$0x3]
        %v3193 = vrot.slane %v3191, 6
        %3195 = vst [vmem:[#allocation5 + $0x18] sm:$0xc] %v3193
        %v3196 = vld [vmem:[#allocation5] sm:$0xff]
        %v3197 = vld [vmem:[#allocation5 + $0x8] sm:$0xff]
        %v3198 = vld [vmem:[#allocation5 + $0x10] sm:$0xff]
        %v3199 = vld [vmem:[#allocation5 + $0x18] sm:$0xff]
        %v3200 = vld [vmem:[%s4] sm:$0xf]
        %v3201 = vld [vmem:[%s4 + $0x4] sm:$0xf]
        %v3202 = vld [vmem:[%s4 + $0x8] sm:$0xf]
        %v3203 = vld [vmem:[%s4 + $0xc] sm:$0xf]
        %v3204 = vld [vmem:[%s4 + $0x10] sm:$0xf]
        %v3205 = vld [vmem:[%s4 + $0x14] sm:$0xf]
        %v3206 = vld [vmem:[%s4 + $0x18] sm:$0xf]
        %v3207 = vld [vmem:[%s4 + $0x1c] sm:$0xf]
        %v3208 = vld [vmem:[%s4 + $0x20] sm:$0xf]
        %v3209 = vld [vmem:[%s4 + $0x24] sm:$0xf]
        %v3210 = vld [vmem:[%s4 + $0x28] sm:$0xf]
        %v3211 = vld [vmem:[%s4 + $0x2c] sm:$0xf]
        %v3212 = vld [vmem:[%s4 + $0x30] sm:$0xf]
        %v3213 = vld [vmem:[%s4 + $0x34] sm:$0xf]
        %v3214 = vld [vmem:[%s4 + $0x38] sm:$0xf]
        %v3215 = vld [vmem:[%s4 + $0x3c] sm:$0xf]
        %v3216 = vld [vmem:[%s4 + $0x40] sm:$0xf]
        %v3217 = vld [vmem:[%s4 + $0x44] sm:$0xf]
        %v3218 = vld [vmem:[%s4 + $0x48] sm:$0xf]
        %v3219 = vld [vmem:[%s4 + $0x4c] sm:$0xf]
        %v3220 = vld [vmem:[%s4 + $0x50] sm:$0xf]
        %v3221 = vld [vmem:[%s4 + $0x54] sm:$0xf]
        %v3222 = vld [vmem:[%s4 + $0x58] sm:$0xf]
        %v3223 = vld [vmem:[%s4 + $0x5c] sm:$0xf]
        %v3224 = vld [vmem:[%s4 + $0x60] sm:$0xf]
        %v3225 = vld [vmem:[%s4 + $0x64] sm:$0xf]
        %v3226 = vld [vmem:[%s4 + $0x68] sm:$0xf]
        %v3227 = vld [vmem:[%s4 + $0x6c] sm:$0xf]
        %v3228 = vld [vmem:[%s4 + $0x70] sm:$0xf]
        %v3229 = vld [vmem:[%s4 + $0x74] sm:$0xf]
        %v3230 = vld [vmem:[%s4 + $0x78] sm:$0xf]
        %v3231 = vld [vmem:[%s4 + $0x7c] sm:$0xf]
        %v3232 = vld [vmem:[%s4 + $0x80] sm:$0xf]
        %v3233 = vld [vmem:[%s4 + $0x84] sm:$0xf]
        %v3234 = vld [vmem:[%s4 + $0x88] sm:$0xf]
        %v3235 = vld [vmem:[%s4 + $0x8c] sm:$0xf]
        %v3236 = vld [vmem:[%s4 + $0x90] sm:$0xf]
        %v3237 = vld [vmem:[%s4 + $0x94] sm:$0xf]
        %v3238 = vld [vmem:[%s4 + $0x98] sm:$0xf]
        %v3239 = vld [vmem:[%s4 + $0x9c] sm:$0xf]
        %v3240 = vld [vmem:[%s4 + $0xa0] sm:$0xf]
        %v3241 = vld [vmem:[%s4 + $0xa4] sm:$0xf]
        %v3242 = vld [vmem:[%s4 + $0xa8] sm:$0xf]
        %v3243 = vld [vmem:[%s4 + $0xac] sm:$0xf]
        %v3244 = vld [vmem:[%s4 + $0xb0] sm:$0xf]
        %v3245 = vld [vmem:[%s4 + $0xb4] sm:$0xf]
        %v3246 = vld [vmem:[%s4 + $0xb8] sm:$0xf]
        %v3247 = vld [vmem:[%s4 + $0xbc] sm:$0xf]
        %v3248 = vld [vmem:[%s4 + $0xc0] sm:$0xf]
        %v3249 = vld [vmem:[%s4 + $0xc4] sm:$0xf]
        %v3250 = vld [vmem:[%s4 + $0xc8] sm:$0xf]
        %v3251 = vld [vmem:[%s4 + $0xcc] sm:$0xf]
        %v3252 = vld [vmem:[%s4 + $0xd0] sm:$0xf]
        %v3253 = vld [vmem:[%s4 + $0xd4] sm:$0xf]
        %v3254 = vld [vmem:[%s4 + $0xd8] sm:$0xf]
        %v3255 = vld [vmem:[%s4 + $0xdc] sm:$0xf]
        %v3256 = vld [vmem:[%s4 + $0xe0] sm:$0xf]
        %v3257 = vld [vmem:[%s4 + $0xe4] sm:$0xf]
        %v3258 = vld [vmem:[%s4 + $0xe8] sm:$0xf]
        %v3259 = vld [vmem:[%s4 + $0xec] sm:$0xf]
        %v3260 = vld [vmem:[%s4 + $0xf0] sm:$0xf]
        %v3261 = vld [vmem:[%s4 + $0xf4] sm:$0xf]
        %v3262 = vld [vmem:[%s4 + $0xf8] sm:$0xf]
        %v3263 = vld [vmem:[%s4 + $0xfc] sm:$0xf]
        %v3264 = vpack.c.bf16 %v3196, %v3196
        %v3265 = vpack.c.bf16 %v3197, %v3197
        %v3266 = vpack.c.bf16 %v3198, %v3198
        %v3267 = vpack.c.bf16 %v3199, %v3199
        %v3268 = vld [vmem:[%s5] sm:$0x1]
        %v3270 = vlaneseq
        %v3271 = vshrl.u32 %v3270, 7
        %v3272 = vsub.s32 0, %v3271
        %v3273 = vrot.slane %v3268, %v3272
        %v3339 = vunpack.c.l.b16 %v3200
        %v3340 = vunpack.c.l.b16 %v3201
        %v3341 = vunpack.c.l.b16 %v3202
        %v3342 = vunpack.c.l.b16 %v3203
        %v3343 = vunpack.c.l.b16 %v3204
        %v3344 = vunpack.c.l.b16 %v3205
        %v3345 = vunpack.c.l.b16 %v3206
        %v3346 = vunpack.c.l.b16 %v3207
        %v3347 = vunpack.c.l.b16 %v3208
        %v3348 = vunpack.c.l.b16 %v3209
        %v3349 = vunpack.c.l.b16 %v3210
        %v3350 = vunpack.c.l.b16 %v3211
        %v3351 = vunpack.c.l.b16 %v3212
        %v3352 = vunpack.c.l.b16 %v3213
        %v3353 = vunpack.c.l.b16 %v3214
        %v3354 = vunpack.c.l.b16 %v3215
        %v3355 = vunpack.c.l.b16 %v3216
        %v3356 = vunpack.c.l.b16 %v3217
        %v3357 = vunpack.c.l.b16 %v3218
        %v3358 = vunpack.c.l.b16 %v3219
        %v3359 = vunpack.c.l.b16 %v3220
        %v3360 = vunpack.c.l.b16 %v3221
        %v3361 = vunpack.c.l.b16 %v3222
        %v3362 = vunpack.c.l.b16 %v3223
        %v3363 = vunpack.c.l.b16 %v3224
        %v3364 = vunpack.c.l.b16 %v3225
        %v3365 = vunpack.c.l.b16 %v3226
        %v3366 = vunpack.c.l.b16 %v3227
        %v3367 = vunpack.c.l.b16 %v3228
        %v3368 = vunpack.c.l.b16 %v3229
        %v3369 = vunpack.c.l.b16 %v3230
        %v3370 = vunpack.c.l.b16 %v3231
        %v3371 = vunpack.c.l.b16 %v3232
        %v3372 = vunpack.c.l.b16 %v3233
        %v3373 = vunpack.c.l.b16 %v3234
        %v3374 = vunpack.c.l.b16 %v3235
        %v3375 = vunpack.c.l.b16 %v3236
        %v3376 = vunpack.c.l.b16 %v3237
        %v3377 = vunpack.c.l.b16 %v3238
        %v3378 = vunpack.c.l.b16 %v3239
        %v3379 = vunpack.c.l.b16 %v3240
        %v3380 = vunpack.c.l.b16 %v3241
        %v3381 = vunpack.c.l.b16 %v3242
        %v3382 = vunpack.c.l.b16 %v3243
        %v3383 = vunpack.c.l.b16 %v3244
        %v3384 = vunpack.c.l.b16 %v3245
        %v3385 = vunpack.c.l.b16 %v3246
        %v3386 = vunpack.c.l.b16 %v3247
        %v3387 = vunpack.c.l.b16 %v3248
        %v3388 = vunpack.c.l.b16 %v3249
        %v3389 = vunpack.c.l.b16 %v3250
        %v3390 = vunpack.c.l.b16 %v3251
        %v3391 = vunpack.c.l.b16 %v3252
        %v3392 = vunpack.c.l.b16 %v3253
        %v3393 = vunpack.c.l.b16 %v3254
        %v3394 = vunpack.c.l.b16 %v3255
        %v3395 = vunpack.c.l.b16 %v3256
        %v3396 = vunpack.c.l.b16 %v3257
        %v3397 = vunpack.c.l.b16 %v3258
        %v3398 = vunpack.c.l.b16 %v3259
        %v3399 = vunpack.c.l.b16 %v3260
        %v3400 = vunpack.c.l.b16 %v3261
        %v3401 = vunpack.c.l.b16 %v3262
        %v3402 = vunpack.c.l.b16 %v3263
        %v3403 = vpack.c.b16 %v3340, %v3339
        %v3404 = vpack.c.b16 %v3342, %v3341
        %v3405 = vpack.c.b16 %v3344, %v3343
        %v3406 = vpack.c.b16 %v3346, %v3345
        %v3407 = vpack.c.b16 %v3348, %v3347
        %v3408 = vpack.c.b16 %v3350, %v3349
        %v3409 = vpack.c.b16 %v3352, %v3351
        %v3410 = vpack.c.b16 %v3354, %v3353
        %v3411 = vpack.c.b16 %v3356, %v3355
        %v3412 = vpack.c.b16 %v3358, %v3357
        %v3413 = vpack.c.b16 %v3360, %v3359
        %v3414 = vpack.c.b16 %v3362, %v3361
        %v3415 = vpack.c.b16 %v3364, %v3363
        %v3416 = vpack.c.b16 %v3366, %v3365
        %v3417 = vpack.c.b16 %v3368, %v3367
        %v3418 = vpack.c.b16 %v3370, %v3369
        %v3419 = vpack.c.b16 %v3372, %v3371
        %v3420 = vpack.c.b16 %v3374, %v3373
        %v3421 = vpack.c.b16 %v3376, %v3375
        %v3422 = vpack.c.b16 %v3378, %v3377
        %v3423 = vpack.c.b16 %v3380, %v3379
        %v3424 = vpack.c.b16 %v3382, %v3381
        %v3425 = vpack.c.b16 %v3384, %v3383
        %v3426 = vpack.c.b16 %v3386, %v3385
        %v3427 = vpack.c.b16 %v3388, %v3387
        %v3428 = vpack.c.b16 %v3390, %v3389
        %v3429 = vpack.c.b16 %v3392, %v3391
        %v3430 = vpack.c.b16 %v3394, %v3393
        %v3431 = vpack.c.b16 %v3396, %v3395
        %v3432 = vpack.c.b16 %v3398, %v3397
        %v3433 = vpack.c.b16 %v3400, %v3399
        %v3434 = vpack.c.b16 %v3402, %v3401
        %3467 = vmatprep.subr.bf16.mxu0 0
        %3468 = vmatpush1.bf16.msra.mxu0 %v3410
        %3469 = vmatprep.subr.bf16.mxu0 0
        %3470 = vmatpush1.bf16.msra.mxu0 %v3409
        %3471 = vmatprep.subr.bf16.mxu0 0
        %3472 = vmatpush1.bf16.msra.mxu0 %v3408
        %3473 = vmatprep.subr.bf16.mxu0 0
        %3474 = vmatpush1.bf16.msra.mxu0 %v3407
        %3475 = vmatprep.subr.bf16.mxu0 0
        %3476 = vmatpush1.bf16.msra.mxu0 %v3406
        %3477 = vmatprep.subr.bf16.mxu0 0
        %3478 = vmatpush1.bf16.msra.mxu0 %v3405
        %3479 = vmatprep.subr.bf16.mxu0 0
        %3480 = vmatpush1.bf16.msra.mxu0 %v3404
        %3481 = vmatprep.subr.bf16.mxu0 0
        %3482 = vmatpush1.bf16.msra.mxu0 %v3403
        %3483 = vmatprep.subr.bf16.mxu0 0
        %3484 = vmatpush2.bf16.msra.mxu0 %v3418
        %3485 = vmatprep.subr.bf16.mxu0 0
        %3486 = vmatpush2.bf16.msra.mxu0 %v3417
        %3487 = vmatprep.subr.bf16.mxu0 0
        %3488 = vmatpush2.bf16.msra.mxu0 %v3416
        %3489 = vmatprep.subr.bf16.mxu0 0
        %3490 = vmatpush2.bf16.msra.mxu0 %v3415
        %3491 = vmatprep.subr.bf16.mxu0 0
        %3492 = vmatpush2.bf16.msra.mxu0 %v3414
        %3493 = vmatprep.subr.bf16.mxu0 0
        %3494 = vmatpush2.bf16.msra.mxu0 %v3413
        %3495 = vmatprep.subr.bf16.mxu0 0
        %3496 = vmatpush2.bf16.msra.mxu0 %v3412
        %3497 = vmatprep.subr.bf16.mxu0 0
        %3498 = vmatpush2.bf16.msra.mxu0 %v3411
        %3499 = vmatprep.mubr.bf16.mxu0 %v3265
        %3500 = vmatmul.mubr.bf16.gmra.mxu0 %v3264
        %v3501 = vpop.f32.mrf.mxu0
        %v3502 = vadd.f32 %v3273, %v3501
        %v3503 = vpop.f32.mrf.mxu0
        %v3504 = vpop.f32.mrf.mxu0
        %v3505 = vpop.f32.mrf.mxu0
        %3506 = vdwg.mxu0
        %3507 = vmatprep.subr.bf16.mxu0 0
        %3508 = vmatpush1.bf16.msra.mxu0 %v3426
        %3509 = vmatprep.subr.bf16.mxu0 0
        %3510 = vmatpush1.bf16.msra.mxu0 %v3425
        %3511 = vmatprep.subr.bf16.mxu0 0
        %3512 = vmatpush1.bf16.msra.mxu0 %v3424
        %3513 = vmatprep.subr.bf16.mxu0 0
        %3514 = vmatpush1.bf16.msra.mxu0 %v3423
        %3515 = vmatprep.subr.bf16.mxu0 0
        %3516 = vmatpush1.bf16.msra.mxu0 %v3422
        %3517 = vmatprep.subr.bf16.mxu0 0
        %3518 = vmatpush1.bf16.msra.mxu0 %v3421
        %3519 = vmatprep.subr.bf16.mxu0 0
        %3520 = vmatpush1.bf16.msra.mxu0 %v3420
        %3521 = vmatprep.subr.bf16.mxu0 0
        %3522 = vmatpush1.bf16.msra.mxu0 %v3419
        %3523 = vmatprep.subr.bf16.mxu0 0
        %3524 = vmatpush2.bf16.msra.mxu0 %v3434
        %3525 = vmatprep.subr.bf16.mxu0 0
        %3526 = vmatpush2.bf16.msra.mxu0 %v3433
        %3527 = vmatprep.subr.bf16.mxu0 0
        %3528 = vmatpush2.bf16.msra.mxu0 %v3432
        %3529 = vmatprep.subr.bf16.mxu0 0
        %3530 = vmatpush2.bf16.msra.mxu0 %v3431
        %3531 = vmatprep.subr.bf16.mxu0 0
        %3532 = vmatpush2.bf16.msra.mxu0 %v3430
        %3533 = vmatprep.subr.bf16.mxu0 0
        %3534 = vmatpush2.bf16.msra.mxu0 %v3429
        %3535 = vmatprep.subr.bf16.mxu0 0
        %3536 = vmatpush2.bf16.msra.mxu0 %v3428
        %3537 = vmatprep.subr.bf16.mxu0 0
        %3538 = vmatpush2.bf16.msra.mxu0 %v3427
        %3539 = vmatprep.mubr.bf16.mxu0 %v3267
        %3540 = vmatmul.mubr.bf16.gmra.mxu0 %v3266
        %v3541 = vpop.f32.mrf.mxu0
        %v3542 = vadd.f32 %v3502, %v3541
        %v3543 = vpop.f32.mrf.mxu0
        %v3544 = vpop.f32.mrf.mxu0
        %v3545 = vpop.f32.mrf.mxu0
        %3546 = vdwg.mxu0
        %v3547 = vmax.f32 %v3542, 0.0
        %3548 = vst.msk [vmem:[#allocation6] sm:$0xff] %vm398, %v3547
        %v3549 = vld [vmem:[#allocation6] sm:$0xff]
        %3550 = vst.msk [vmem:[#allocation7] sm:$0xff] %vm398, %v3549
        %v3551 = vld [vmem:[#allocation6 + $0x1] sm:$0xff]
        %3553 = vrot.lane.b32.xlu0 %v3551, 64
        %v3554 = vpop.permute.xlu0 %3553
        %vm3556 = vcmask 1048064
        %3557 = vst.msk [vmem:[#allocation7] sm:$0xff] %vm3556, %v3554
        %v3558 = vld [vmem:[#allocation6 + $0x2] sm:$0xff]
        %3559 = vst.msk [vmem:[#allocation7 + $0x8] sm:$0xff] %vm398, %v3558
        %v3560 = vld [vmem:[#allocation6 + $0x3] sm:$0xff]
        %3562 = vrot.lane.b32.xlu0 %v3560, 64
        %v3563 = vpop.permute.xlu0 %3562
        %3565 = vst.msk [vmem:[#allocation7 + $0x8] sm:$0xff] %vm3556, %v3563
        %v3566 = vld [vmem:[#allocation7] sm:$0xff]
        %v3567 = vld [vmem:[#allocation7 + $0x8] sm:$0xff]
        %v3568 = vld [vmem:[%s6] sm:$0xf]
        %v3569 = vld [vmem:[%s6 + $0x4] sm:$0xf]
        %v3570 = vld [vmem:[%s6 + $0x8] sm:$0xf]
        %v3571 = vld [vmem:[%s6 + $0xc] sm:$0xf]
        %v3572 = vld [vmem:[%s6 + $0x10] sm:$0xf]
        %v3573 = vld [vmem:[%s6 + $0x14] sm:$0xf]
        %v3574 = vld [vmem:[%s6 + $0x18] sm:$0xf]
        %v3575 = vld [vmem:[%s6 + $0x1c] sm:$0xf]
        %v3576 = vld [vmem:[%s6 + $0x20] sm:$0xf]
        %v3577 = vld [vmem:[%s6 + $0x24] sm:$0xf]
        %v3578 = vld [vmem:[%s6 + $0x28] sm:$0xf]
        %v3579 = vld [vmem:[%s6 + $0x2c] sm:$0xf]
        %v3580 = vld [vmem:[%s6 + $0x30] sm:$0xf]
        %v3581 = vld [vmem:[%s6 + $0x34] sm:$0xf]
        %v3582 = vld [vmem:[%s6 + $0x38] sm:$0xf]
        %v3583 = vld [vmem:[%s6 + $0x3c] sm:$0xf]
        %v3584 = vld [vmem:[%s6 + $0x40] sm:$0xf]
        %v3585 = vld [vmem:[%s6 + $0x44] sm:$0xf]
        %v3586 = vld [vmem:[%s6 + $0x48] sm:$0xf]
        %v3587 = vld [vmem:[%s6 + $0x4c] sm:$0xf]
        %v3588 = vld [vmem:[%s6 + $0x50] sm:$0xf]
        %v3589 = vld [vmem:[%s6 + $0x54] sm:$0xf]
        %v3590 = vld [vmem:[%s6 + $0x58] sm:$0xf]
        %v3591 = vld [vmem:[%s6 + $0x5c] sm:$0xf]
        %v3592 = vld [vmem:[%s6 + $0x60] sm:$0xf]
        %v3593 = vld [vmem:[%s6 + $0x64] sm:$0xf]
        %v3594 = vld [vmem:[%s6 + $0x68] sm:$0xf]
        %v3595 = vld [vmem:[%s6 + $0x6c] sm:$0xf]
        %v3596 = vld [vmem:[%s6 + $0x70] sm:$0xf]
        %v3597 = vld [vmem:[%s6 + $0x74] sm:$0xf]
        %v3598 = vld [vmem:[%s6 + $0x78] sm:$0xf]
        %v3599 = vld [vmem:[%s6 + $0x7c] sm:$0xf]
        %v3600 = vpack.c.bf16 %v3566, %v3566
        %v3601 = vpack.c.bf16 %v3567, %v3567
        %v3602 = vld [vmem:[%s7] sm:$0x1]
        %v3604 = vlaneseq
        %v3605 = vshrl.u32 %v3604, 7
        %v3606 = vsub.s32 0, %v3605
        %v3607 = vrot.slane %v3602, %v3606
        %v3641 = vunpack.c.l.b16 %v3568
        %v3642 = vunpack.c.l.b16 %v3569
        %v3643 = vunpack.c.l.b16 %v3570
        %v3644 = vunpack.c.l.b16 %v3571
        %v3645 = vunpack.c.l.b16 %v3572
        %v3646 = vunpack.c.l.b16 %v3573
        %v3647 = vunpack.c.l.b16 %v3574
        %v3648 = vunpack.c.l.b16 %v3575
        %v3649 = vunpack.c.l.b16 %v3576
        %v3650 = vunpack.c.l.b16 %v3577
        %v3651 = vunpack.c.l.b16 %v3578
        %v3652 = vunpack.c.l.b16 %v3579
        %v3653 = vunpack.c.l.b16 %v3580
        %v3654 = vunpack.c.l.b16 %v3581
        %v3655 = vunpack.c.l.b16 %v3582
        %v3656 = vunpack.c.l.b16 %v3583
        %v3657 = vunpack.c.l.b16 %v3584
        %v3658 = vunpack.c.l.b16 %v3585
        %v3659 = vunpack.c.l.b16 %v3586
        %v3660 = vunpack.c.l.b16 %v3587
        %v3661 = vunpack.c.l.b16 %v3588
        %v3662 = vunpack.c.l.b16 %v3589
        %v3663 = vunpack.c.l.b16 %v3590
        %v3664 = vunpack.c.l.b16 %v3591
        %v3665 = vunpack.c.l.b16 %v3592
        %v3666 = vunpack.c.l.b16 %v3593
        %v3667 = vunpack.c.l.b16 %v3594
        %v3668 = vunpack.c.l.b16 %v3595
        %v3669 = vunpack.c.l.b16 %v3596
        %v3670 = vunpack.c.l.b16 %v3597
        %v3671 = vunpack.c.l.b16 %v3598
        %v3672 = vunpack.c.l.b16 %v3599
        %v3673 = vpack.c.b16 %v3642, %v3641
        %v3674 = vpack.c.b16 %v3644, %v3643
        %v3675 = vpack.c.b16 %v3646, %v3645
        %v3676 = vpack.c.b16 %v3648, %v3647
        %v3677 = vpack.c.b16 %v3650, %v3649
        %v3678 = vpack.c.b16 %v3652, %v3651
        %v3679 = vpack.c.b16 %v3654, %v3653
        %v3680 = vpack.c.b16 %v3656, %v3655
        %v3681 = vpack.c.b16 %v3658, %v3657
        %v3682 = vpack.c.b16 %v3660, %v3659
        %v3683 = vpack.c.b16 %v3662, %v3661
        %v3684 = vpack.c.b16 %v3664, %v3663
        %v3685 = vpack.c.b16 %v3666, %v3665
        %v3686 = vpack.c.b16 %v3668, %v3667
        %v3687 = vpack.c.b16 %v3670, %v3669
        %v3688 = vpack.c.b16 %v3672, %v3671
        %3705 = vmatprep.subr.bf16.mxu0 0
        %3706 = vmatpush1.bf16.msra.mxu0 %v3680
        %3707 = vmatprep.subr.bf16.mxu0 0
        %3708 = vmatpush1.bf16.msra.mxu0 %v3679
        %3709 = vmatprep.subr.bf16.mxu0 0
        %3710 = vmatpush1.bf16.msra.mxu0 %v3678
        %3711 = vmatprep.subr.bf16.mxu0 0
        %3712 = vmatpush1.bf16.msra.mxu0 %v3677
        %3713 = vmatprep.subr.bf16.mxu0 0
        %3714 = vmatpush1.bf16.msra.mxu0 %v3676
        %3715 = vmatprep.subr.bf16.mxu0 0
        %3716 = vmatpush1.bf16.msra.mxu0 %v3675
        %3717 = vmatprep.subr.bf16.mxu0 0
        %3718 = vmatpush1.bf16.msra.mxu0 %v3674
        %3719 = vmatprep.subr.bf16.mxu0 0
        %3720 = vmatpush1.bf16.msra.mxu0 %v3673
        %3721 = vmatprep.subr.bf16.mxu0 0
        %3722 = vmatpush2.bf16.msra.mxu0 %v3688
        %3723 = vmatprep.subr.bf16.mxu0 0
        %3724 = vmatpush2.bf16.msra.mxu0 %v3687
        %3725 = vmatprep.subr.bf16.mxu0 0
        %3726 = vmatpush2.bf16.msra.mxu0 %v3686
        %3727 = vmatprep.subr.bf16.mxu0 0
        %3728 = vmatpush2.bf16.msra.mxu0 %v3685
        %3729 = vmatprep.subr.bf16.mxu0 0
        %3730 = vmatpush2.bf16.msra.mxu0 %v3684
        %3731 = vmatprep.subr.bf16.mxu0 0
        %3732 = vmatpush2.bf16.msra.mxu0 %v3683
        %3733 = vmatprep.subr.bf16.mxu0 0
        %3734 = vmatpush2.bf16.msra.mxu0 %v3682
        %3735 = vmatprep.subr.bf16.mxu0 0
        %3736 = vmatpush2.bf16.msra.mxu0 %v3681
        %3737 = vmatprep.mubr.bf16.mxu0 %v3601
        %3738 = vmatmul.mubr.bf16.gmra.mxu0 %v3600
        %v3739 = vpop.f32.mrf.mxu0
        %v3740 = vadd.f32 %v3607, %v3739
        %v3741 = vpop.f32.mrf.mxu0
        %v3742 = vpop.f32.mrf.mxu0
        %v3743 = vpop.f32.mrf.mxu0
        %3744 = vdwg.mxu0
        %v3745 = vmax.f32 %v3740, 0.0
        %vm3746 = vcmask 253952
        %3747 = vst.msk [vmem:[#allocation8] sm:$0x1] %vm3746, %v3745
        %v3748 = vld [vmem:[#allocation8] sm:$0x1]
        %v3749 = vld [vmem:[%s8] sm:$0xf]
        %v3750 = vld [vmem:[%s8 + $0x4] sm:$0xf]
        %v3751 = vld [vmem:[%s8 + $0x8] sm:$0xf]
        %v3752 = vld [vmem:[%s8 + $0xc] sm:$0xf]
        %v3753 = vpack.c.bf16 %v3748, %v3748
        %v3754 = vld [vmem:[%s9] sm:$0x1]
        %v3759 = vunpack.c.l.b16 %v3749
        %v3760 = vunpack.c.l.b16 %v3750
        %v3761 = vunpack.c.l.b16 %v3751
        %v3762 = vunpack.c.l.b16 %v3752
        %v3763 = vpack.c.b16 %v3760, %v3759
        %v3764 = vpack.c.b16 %v3762, %v3761
        %v3768 = vsel %vm396, %v3753, 0
        %3770 = vmatprep.subr.bf16.mxu0 0
        %3771 = vmatpush1.bf16.msra.mxu0 0
        %3772 = vmatprep.subr.bf16.mxu0 0
        %3773 = vmatpush1.bf16.msra.mxu0 0
        %3774 = vmatprep.subr.bf16.mxu0 0
        %3775 = vmatpush1.bf16.msra.mxu0 0
        %3776 = vmatprep.subr.bf16.mxu0 0
        %3777 = vmatpush1.bf16.msra.mxu0 0
        %3778 = vmatprep.subr.bf16.mxu0 0
        %3779 = vmatpush1.bf16.msra.mxu0 0
        %3780 = vmatprep.subr.bf16.mxu0 0
        %3781 = vmatpush1.bf16.msra.mxu0 0
        %3782 = vmatprep.subr.bf16.mxu0 0
        %3783 = vmatpush1.bf16.msra.mxu0 %v3764
        %3784 = vmatprep.subr.bf16.mxu0 0
        %3785 = vmatpush1.bf16.msra.mxu0 %v3763
        %3786 = vmatprep.subr.bf16.mxu0 0
        %3787 = vmatpush2.bf16.msra.mxu0 0
        %3788 = vmatprep.subr.bf16.mxu0 0
        %3789 = vmatpush2.bf16.msra.mxu0 0
        %3790 = vmatprep.subr.bf16.mxu0 0
        %3791 = vmatpush2.bf16.msra.mxu0 0
        %3792 = vmatprep.subr.bf16.mxu0 0
        %3793 = vmatpush2.bf16.msra.mxu0 0
        %3794 = vmatprep.subr.bf16.mxu0 0
        %3795 = vmatpush2.bf16.msra.mxu0 0
        %3796 = vmatprep.subr.bf16.mxu0 0
        %3797 = vmatpush2.bf16.msra.mxu0 0
        %3798 = vmatprep.subr.bf16.mxu0 0
        %3799 = vmatpush2.bf16.msra.mxu0 0
        %3800 = vmatprep.subr.bf16.mxu0 0
        %3801 = vmatpush2.bf16.msra.mxu0 0
        %3802 = vmatprep.mubr.bf16.mxu0 0
        %3803 = vmatmul.mubr.bf16.gmra.mxu0 %v3768
        %v3804 = vpop.f32.mrf.mxu0
        %v3805 = vadd.f32 %v3754, %v3804
        %v3806 = vpop.f32.mrf.mxu0
        %v3807 = vpop.f32.mrf.mxu0
        %v3808 = vpop.f32.mrf.mxu0
        %3809 = vdwg.mxu0
        %v3810 = vmax.f32 %v3805, 0.0
        %3811 = vst.msk [vmem:[%s372] sm:$0x1] %vm3746, %v3810
        %s3812 = sand.u32 %s252, 1
        %s3813 = scalar_lea.sflag [#allocation10], %s3812
        %s3814 = sand.u32 %s252, 1
        %s3815 = scalar_lea.vmem [#allocation9], %s3814
        // Predicated region
        $region61: #{audio_cnn_forward.1} parent=59 // pred_check
          %p3816 = pneg %p262
        $region62: #{audio_cnn_forward.1} parent=59 // pred_check_branch
          %3818 = sbr.rel (%p3816) target = $region64
        $region63: #{audio_cnn_forward.1} parent=59 // pred_region
          %s3820 = ssub.s32 16, 16
          %3821 = vsyncadd %s3813, %s3820
          %s3822 = smul.addr %s24, 16
          %s3823 = scalar_lea.hbm %s10, %s3822
          %s3825 = sshll.u32 %s3815, 4
          %s3826 = int_to_ptr.vmem [resolvable:$true] %s3825
          %3828 = dma.vmem_to_hbm [thread:$0]  %s3826, 16, %s3823, %s3813
        $region64: #{audio_cnn_forward.1} parent=59 // pred_fallthru
          _
      $region60: #{audio_cnn_forward.1} parent=5 // pred_fallthru
        _
      %p3829 = scmp.le.s32.totalorder 2, %s19
      // Predicated region
      $region65: #{audio_cnn_forward.1} parent=5 // pred_check
        %p3830 = pneg %p3829
      $region66: #{audio_cnn_forward.1} parent=5 // pred_check_branch
        %3832 = sbr.rel (%p3830) target = $region68
      $region67: #{audio_cnn_forward.1} parent=5 // pred_region
        %s3833 = ssub.s32 %s19, 2
        // Predicated region
        $region69: #{audio_cnn_forward.1} parent=67 // pred_check
          %p3834 = pneg %p268
        $region70: #{audio_cnn_forward.1} parent=67 // pred_check_branch
          %3836 = sbr.rel (%p3834) target = $region72
        $region71: #{audio_cnn_forward.1} parent=67 // pred_region
          %s3837 = sand.u32 %s253, 1
          %s3838 = scalar_lea.sflag [#allocation10], %s3837
          %s3839 = sand.u32 %s253, 1
          %s3840 = scalar_lea.vmem [#allocation9], %s3839
          %3841 = dma.done %s3838, 16
        $region72: #{audio_cnn_forward.1} parent=67 // pred_fallthru
          _
      $region68: #{audio_cnn_forward.1} parent=5 // pred_fallthru
        _
    $region6: #{audio_cnn_forward.1} parent=1 // loop_footer
      %s23 = sadd.s32 1, %s19
    $region7: #{audio_cnn_forward.1} parent=1 // loop_footer_branch
      %18 = sbr.rel target = $region3
    $region8: #{audio_cnn_forward.1} parent=1 // loop_exit
      _
    %3842 = vsyncpa [#allocation10], 1
    %s3843 = scalar_lea.sflag [#allocation10], 1
    %3844 = vsyncpa %s3843, 1

</llo_original>
